<compile_context>
chip_gen: v5e
topology: v5e:2x2
jax: 0.10.0
libtpu: 0.0.40
codegen_flags: <defaults>
</compile_context>

<pallas_src>
import numpy as np
import jax
import jax.numpy as jnp
from jax import lax
from jax.experimental import pallas as pl
from jax.experimental.pallas import tpu as pltpu

_F32 = jnp.float32
_BF16 = jnp.bfloat16


def _softmax_last(x):
    # numerically stable softmax over the last axis (matches torch.F.softmax), f32
    m = jnp.max(x, axis=-1, keepdims=True)
    e = jnp.exp(x - m)
    return e / jnp.sum(e, axis=-1, keepdims=True)


def _pool_matrix_np(l, n):
    # mean-pooling matrix P (l, n): P[li, ni] = 1/chunk for ni in chunk li
    # (implements einops reduce 'b (l n) d -> b l d' mean via a matmul)
    chunk = n // l
    p = np.zeros((l, n), dtype=np.float32)
    for i in range(l):
        p[i, i * chunk:(i + 1) * chunk] = 1.0 / chunk
    return p


def _make_kernel(N, M, L, H, d, d_out_pad, n_inv_iter=8):
    HD = H * d
    fmax = float(jnp.finfo(jnp.float32).max)
    dn_t = (((1,), (1,)), ((), ()))       # a @ b.T  (contract last dims)
    dn_b = (((2,), (1,)), ((0,), (0,)))   # head-batched matmul (batch = axis 0)

    def kernel(x_ref, ctx_ref, qm_ref, kvm_ref, kvr_ref, pq_ref, pk_ref,
               wq_ref, wkv_ref, wo_ref, bo_ref, o_ref):
        xb = x_ref[0]          # (N, Din)  bf16
        cb = ctx_ref[0]        # (M, Din)  bf16
        qm = qm_ref[0]         # (N, 1)    f32  (= q_mask * sqrt(scale))
        kvm = kvm_ref[0]       # (M, 1)    f32  (= kv_mask * sqrt(scale))
        kvr = kvr_ref[0]       # (1, M)    f32  (= kv_mask, {0,1})

        # fused all-head projections: lane-dense bf16 MXU matmuls, f32 accumulate,
        # scale + mask applied in one multiply (scale folded into the mask)
        q = jnp.dot(xb, wq_ref[...], preferred_element_type=_F32) * qm      # (N, HD)
        kv = jnp.dot(cb, wkv_ref[...], preferred_element_type=_F32) * kvm   # (M, 2HD)
        q_bf = q.astype(_BF16)
        k_bf = kv[:, :HD].astype(_BF16)
        v_bf = kv[:, HD:].astype(_BF16)

        # landmark means over contiguous token chunks via precomputed pooling matrices
        ql_bf = jnp.dot(pq_ref[...], q_bf, preferred_element_type=_F32).astype(_BF16)  # (L, HD)
        kl_bf = jnp.dot(pk_ref[...], k_bf, preferred_element_type=_F32).astype(_BF16)  # (L, HD)

        k1_list, kv3_list, k2_list, z0_list = [], [], [], []
        for h in range(H):                      # small static head loop (unrolled)
            sl = slice(h * d, (h + 1) * d)
            qh, kh, vh = q_bf[:, sl], k_bf[:, sl], v_bf[:, sl]
            qlh, klh = ql_bf[:, sl], kl_bf[:, sl]

            k1 = _softmax_last(
                lax.dot_general(qh, klh, dn_t, preferred_element_type=_F32))     # (N, L)
            sim2 = lax.dot_general(qlh, klh, dn_t, preferred_element_type=_F32)  # (L, L)
            k2 = _softmax_last(sim2)
            # k2^T without a transpose / eye-matmul on the pinv chain:
            # column softmax of sim2^T (= klh @ qlh^T) == (row softmax of sim2)^T
            sim2t = lax.dot_general(klh, qlh, dn_t, preferred_element_type=_F32)
            e = jnp.exp(sim2t - jnp.max(sim2t, axis=0, keepdims=True))
            k2t = e / jnp.sum(e, axis=0, keepdims=True)

            # reproduces the module exactly: subtract float32-max where kv_mask is True
            sim3 = lax.dot_general(qlh, kh, dn_t, preferred_element_type=_F32)   # (L, M)
            k3 = _softmax_last(sim3 - kvr * fmax)
            kv3 = jnp.dot(k3.astype(_BF16), vh, preferred_element_type=_F32)     # (L, d)

            absk = jnp.abs(k2)
            s1 = 1.0 / jnp.max(jnp.sum(absk, axis=0, keepdims=True))  # max column-sum
            s2 = 1.0 / jnp.max(jnp.sum(absk, axis=1, keepdims=True))  # max row-sum
            k1_list.append(k1)
            kv3_list.append(kv3)
            k2_list.append(k2)
            z0_list.append(k2t * (s1 * s2))

        # Newton-Schulz iterative pseudo-inverse of kernel_2, batched over heads, f32.
        # 8 iterations matches the module's iterative_inv default.
        kmat = jnp.stack(k2_list, axis=0)    # (H, L, L)
        z = jnp.stack(z0_list, axis=0)       # (H, L, L)
        r = lax.broadcasted_iota(jnp.int32, (L, L), 0)
        c = lax.broadcasted_iota(jnp.int32, (L, L), 1)
        eye = jnp.broadcast_to((r == c).astype(_F32), (H, L, L))
        e7, e13, e15 = 7.0 * eye, 13.0 * eye, 15.0 * eye   # hoisted out of the loop
        for _ in range(n_inv_iter):
            kz = lax.dot_general(kmat, z, dn_b, preferred_element_type=_F32)
            t = e7 - kz
            t = e15 - lax.dot_general(kz, t, dn_b, preferred_element_type=_F32)
            t = e13 - lax.dot_general(kz, t, dn_b, preferred_element_type=_F32)
            z = 0.25 * lax.dot_general(z, t, dn_b, preferred_element_type=_F32)

        # x_h = kernel_1 @ pinv(kernel_2) @ (kernel_3 @ v); per-head outputs are
        # concatenated along lanes (== 'b n (h d)' layout) and contracted with the
        # full Wout in ONE matmul -> single lane-dense (padded-to-128) final store.
        oh_list = []
        for h in range(H):
            kw = jnp.dot(k1_list[h].astype(_BF16), z[h].astype(_BF16),
                         preferred_element_type=_F32)                 # (N, L)
            oh = jnp.dot(kw.astype(_BF16), kv3_list[h].astype(_BF16),
                         preferred_element_type=_F32)                 # (N, d)
            oh_list.append(oh.astype(_BF16))
        out_all = jnp.concatenate(oh_list, axis=-1)                   # (N, HD) bf16
        contrib = jnp.dot(out_all, wo_ref[...],
                          preferred_element_type=_F32)                # (N, Dp) f32
        o_ref[...] = (contrib + bo_ref[...])[None]

    return kernel


def nystrom_attention(x, mask, params, *, heads, head_dim, landmarks, context=None):
    # dropout arg of the module is unused in its forward pass -> no-op here.
    if context is None:
        context = x
    B, N, Din = x.shape
    M = context.shape[1]
    L = landmarks
    assert N % L == 0 and M % L == 0

    wq, wkv, wo, bo = params          # fused (all-head) weight layout
    inner = heads * head_dim
    assert wq.shape == (Din, inner) and wkv.shape == (Din, 2 * inner)
    Dout = wo.shape[-1]
    Dp = ((Dout + 127) // 128) * 128  # pad output features -> lane-dense store
    s = float(head_dim ** -0.25)      # sqrt(scale), folded into the masks

    # glue: boolean reductions of the rectangular mask
    qm = jnp.any(mask, axis=2).astype(_F32)    # (B, N) valid-query mask
    kvm = jnp.any(mask, axis=1).astype(_F32)   # (B, M) valid-kv mask
    qm_s = (qm * s)[:, :, None]                # (B, N, 1)
    kvm_s = (kvm * s)[:, :, None]              # (B, M, 1)
    kvr = kvm[:, None, :]                      # (B, 1, M), unscaled {0,1}

    # compile-time constant pooling matrices (chunk means)
    pool_q = jnp.asarray(_pool_matrix_np(L, N), dtype=_BF16)
    pool_k = jnp.asarray(_pool_matrix_np(L, M), dtype=_BF16)

    # zero-pad Wout / bias columns to the lane-dense output width
    wo_p = jnp.pad(wo, ((0, 0), (0, Dp - Dout))).astype(_BF16)
    bo_p = jnp.pad(bo.reshape(1, -1), ((0, 0), (0, Dp - Dout))).astype(_F32)

    kernel = _make_kernel(N, M, L, heads, head_dim, Dp)

    out = pl.pallas_call(
        kernel,
        out_shape=jax.ShapeDtypeStruct((B, N, Dp), jnp.float32),
        grid_spec=pltpu.PrefetchScalarGridSpec(
            num_scalar_prefetch=0,
            grid=(B,),                          # batch-parallel; heads fused in-body
            in_specs=[
                pl.BlockSpec((1, N, Din), lambda b: (b, 0, 0)),      # x (bf16)
                pl.BlockSpec((1, M, Din), lambda b: (b, 0, 0)),      # context (bf16)
                pl.BlockSpec((1, N, 1), lambda b: (b, 0, 0)),        # q_mask * sqrt(scale)
                pl.BlockSpec((1, M, 1), lambda b: (b, 0, 0)),        # kv_mask * sqrt(scale)
                pl.BlockSpec((1, 1, M), lambda b: (b, 0, 0)),        # kv_mask row
                pl.BlockSpec((L, N), lambda b: (0, 0)),              # pool matrix (q side)
                pl.BlockSpec((L, M), lambda b: (0, 0)),              # pool matrix (k side)
                pl.BlockSpec((Din, inner), lambda b: (0, 0)),        # Wq   (all heads)
                pl.BlockSpec((Din, 2 * inner), lambda b: (0, 0)),    # Wk|Wv (all heads)
                pl.BlockSpec((inner, Dp), lambda b: (0, 0)),         # Wout (padded)
                pl.BlockSpec((1, Dp), lambda b: (0, 0)),             # bias (padded)
            ],
            out_specs=pl.BlockSpec((1, N, Dp), lambda b: (b, 0, 0)),
        ),
        compiler_params=pltpu.CompilerParams(
            dimension_semantics=("parallel",)),
    )(x.astype(_BF16), context.astype(_BF16), qm_s, kvm_s, kvr,
      pool_q, pool_k, wq.astype(_BF16), wkv.astype(_BF16), wo_p, bo_p)

    return out[:, :, :Dout]


def init_params(key, input_dim, output_dim, heads, head_dim):
    inner = heads * head_dim
    k1, k2, k3, k4 = jax.random.split(key, 4)
    # fused layouts: columns [h*d:(h+1)*d] belong to head h, matching the
    # module's 'b n (h d)' split; to_kv columns are [K | V], matching .chunk(2, -1)
    wq = jax.random.normal(k1, (input_dim, inner), _F32) / jnp.sqrt(float(input_dim))
    wkv = jax.random.normal(k2, (input_dim, 2 * inner), _F32) / jnp.sqrt(float(input_dim))
    wo = jax.random.normal(k3, (inner, output_dim), _F32) / jnp.sqrt(float(inner))
    bo = jax.random.normal(k4, (output_dim,), _F32) * 0.01
    return wq, wkv, wo, bo


if __name__ == "__main__":
    B, N = 2, 64
    input_dim, output_dim = 32, 32
    heads, head_dim, landmarks = 2, 16, 8

    key = jax.random.PRNGKey(0)
    kx, kp = jax.random.split(key)
    x = jax.random.normal(kx, (B, N, input_dim), _F32)

    # rectangular boolean mask: sample b has n_valid[b] real tokens
    n_valid = jnp.array([64, 40], dtype=jnp.int32)
    tok = jnp.arange(N)
    valid = tok[None, :] < n_valid[:, None]          # (B, N)
    mask = valid[:, :, None] & valid[:, None, :]     # (B, N, N)

    params = init_params(kp, input_dim, output_dim, heads, head_dim)
    out = nystrom_attention(x, mask, params, heads=heads, head_dim=head_dim,
                            landmarks=landmarks)
    out = jax.block_until_ready(out)
    assert out.shape == (B, N, output_dim)
    assert bool(jnp.all(jnp.isfinite(out)))
    print("KERNEL_OK")
</pallas_src>

<mosaic_0001>
module attributes {stable_mosaic.version = 11 : i64} {
  func.func @kernel(%arg0: i32, %arg1: memref<1x64x32xbf16, #tpu.memory_space<vmem>>, %arg2: memref<1x64x32xbf16, #tpu.memory_space<vmem>>, %arg3: memref<1x64x1xf32, #tpu.memory_space<vmem>>, %arg4: memref<1x64x1xf32, #tpu.memory_space<vmem>>, %arg5: memref<1x1x64xf32, #tpu.memory_space<vmem>>, %arg6: memref<8x64xbf16, #tpu.memory_space<vmem>>, %arg7: memref<8x64xbf16, #tpu.memory_space<vmem>>, %arg8: memref<32x32xbf16, #tpu.memory_space<vmem>>, %arg9: memref<32x64xbf16, #tpu.memory_space<vmem>>, %arg10: memref<32x128xbf16, #tpu.memory_space<vmem>>, %arg11: memref<1x128xf32, #tpu.memory_space<vmem>>, %arg12: memref<1x64x128xf32, #tpu.memory_space<vmem>>) attributes {dimension_semantics = [#tpu.dimension_semantics<parallel>], iteration_bounds = array<i64: 2>, scalar_prefetch = 0 : i64, scratch_operands = 0 : i64, tpu.core_type = #tpu.core_type<tc>, window_params = [{transform_indices = @transform_0, window_bounds = array<i64: 1, 64, 32>}, {transform_indices = @transform_1, window_bounds = array<i64: 1, 64, 32>}, {transform_indices = @transform_2, window_bounds = array<i64: 1, 64, 1>}, {transform_indices = @transform_3, window_bounds = array<i64: 1, 64, 1>}, {transform_indices = @transform_4, window_bounds = array<i64: 1, 1, 64>}, {pipeline_mode = #tpu.pipeline_mode<synchronous>, transform_indices = @transform_5, window_bounds = array<i64: 8, 64>}, {pipeline_mode = #tpu.pipeline_mode<synchronous>, transform_indices = @transform_6, window_bounds = array<i64: 8, 64>}, {pipeline_mode = #tpu.pipeline_mode<synchronous>, transform_indices = @transform_7, window_bounds = array<i64: 32, 32>}, {pipeline_mode = #tpu.pipeline_mode<synchronous>, transform_indices = @transform_8, window_bounds = array<i64: 32, 64>}, {pipeline_mode = #tpu.pipeline_mode<synchronous>, transform_indices = @transform_9, window_bounds = array<i64: 32, 128>}, {pipeline_mode = #tpu.pipeline_mode<synchronous>, transform_indices = @transform_10, window_bounds = array<i64: 1, 128>}, {transform_indices = @transform_11, window_bounds = array<i64: 1, 64, 128>}]} {
    %c0 = arith.constant 0 : index
    %c0_0 = arith.constant 0 : index
    %c0_1 = arith.constant 0 : index
    %0 = vector.load %arg1[%c0, %c0_0, %c0_1] : memref<1x64x32xbf16, #tpu.memory_space<vmem>>, vector<1x64x32xbf16>
    %1 = vector.shape_cast %0 : vector<1x64x32xbf16> to vector<64x32xbf16>
    %c0_2 = arith.constant 0 : index
    %c0_3 = arith.constant 0 : index
    %c0_4 = arith.constant 0 : index
    %2 = vector.load %arg2[%c0_2, %c0_3, %c0_4] : memref<1x64x32xbf16, #tpu.memory_space<vmem>>, vector<1x64x32xbf16>
    %3 = vector.shape_cast %2 : vector<1x64x32xbf16> to vector<64x32xbf16>
    %c0_5 = arith.constant 0 : index
    %c0_6 = arith.constant 0 : index
    %c0_7 = arith.constant 0 : index
    %4 = vector.load %arg3[%c0_5, %c0_6, %c0_7] : memref<1x64x1xf32, #tpu.memory_space<vmem>>, vector<1x64x1xf32>
    %5 = vector.shape_cast %4 : vector<1x64x1xf32> to vector<64x1xf32>
    %c0_8 = arith.constant 0 : index
    %c0_9 = arith.constant 0 : index
    %c0_10 = arith.constant 0 : index
    %6 = vector.load %arg4[%c0_8, %c0_9, %c0_10] : memref<1x64x1xf32, #tpu.memory_space<vmem>>, vector<1x64x1xf32>
    %7 = vector.shape_cast %6 : vector<1x64x1xf32> to vector<64x1xf32>
    %c0_11 = arith.constant 0 : index
    %c0_12 = arith.constant 0 : index
    %c0_13 = arith.constant 0 : index
    %8 = vector.load %arg5[%c0_11, %c0_12, %c0_13] : memref<1x1x64xf32, #tpu.memory_space<vmem>>, vector<1x1x64xf32>
    %9 = vector.shape_cast %8 : vector<1x1x64xf32> to vector<1x64xf32>
    %c0_14 = arith.constant 0 : index
    %c0_15 = arith.constant 0 : index
    %10 = vector.load %arg8[%c0_14, %c0_15] : memref<32x32xbf16, #tpu.memory_space<vmem>>, vector<32x32xbf16>
    %cst = arith.constant dense<0.000000e+00> : vector<64x32xf32>
    %11 = tpu.matmul %1, %10, %cst {dimension_numbers = #tpu.dot_dimension_numbers<[1], [0], [0], [1], [0, 0, 1, 1], [], []>} : vector<64x32xbf16>, vector<32x32xbf16>, vector<64x32xf32> -> vector<64x32xf32>
    %12 = vector.broadcast %5 : vector<64x1xf32> to vector<64x32xf32>
    %13 = arith.mulf %11, %12 : vector<64x32xf32>
    %c0_16 = arith.constant 0 : index
    %c0_17 = arith.constant 0 : index
    %14 = vector.load %arg9[%c0_16, %c0_17] : memref<32x64xbf16, #tpu.memory_space<vmem>>, vector<32x64xbf16>
    %cst_18 = arith.constant dense<0.000000e+00> : vector<64x64xf32>
    %15 = tpu.matmul %3, %14, %cst_18 {dimension_numbers = #tpu.dot_dimension_numbers<[1], [0], [0], [1], [0, 0, 1, 1], [], []>} : vector<64x32xbf16>, vector<32x64xbf16>, vector<64x64xf32> -> vector<64x64xf32>
    %16 = vector.broadcast %7 : vector<64x1xf32> to vector<64x64xf32>
    %17 = arith.mulf %15, %16 : vector<64x64xf32>
    %18 = arith.truncf %13 : vector<64x32xf32> to vector<64x32xbf16>
    %19 = vector.extract_strided_slice %17 {offsets = [0, 0], sizes = [64, 32], strides = [1, 1]} : vector<64x64xf32> to vector<64x32xf32>
    %20 = arith.truncf %19 : vector<64x32xf32> to vector<64x32xbf16>
    %21 = vector.extract_strided_slice %17 {offsets = [0, 32], sizes = [64, 32], strides = [1, 1]} : vector<64x64xf32> to vector<64x32xf32>
    %22 = arith.truncf %21 : vector<64x32xf32> to vector<64x32xbf16>
    %c0_19 = arith.constant 0 : index
    %c0_20 = arith.constant 0 : index
    %23 = vector.load %arg6[%c0_19, %c0_20] : memref<8x64xbf16, #tpu.memory_space<vmem>>, vector<8x64xbf16>
    %cst_21 = arith.constant dense<0.000000e+00> : vector<8x32xf32>
    %24 = tpu.matmul %23, %18, %cst_21 {dimension_numbers = #tpu.dot_dimension_numbers<[1], [0], [0], [1], [0, 0, 1, 1], [], []>} : vector<8x64xbf16>, vector<64x32xbf16>, vector<8x32xf32> -> vector<8x32xf32>
    %25 = arith.truncf %24 : vector<8x32xf32> to vector<8x32xbf16>
    %c0_22 = arith.constant 0 : index
    %c0_23 = arith.constant 0 : index
    %26 = vector.load %arg7[%c0_22, %c0_23] : memref<8x64xbf16, #tpu.memory_space<vmem>>, vector<8x64xbf16>
    %cst_24 = arith.constant dense<0.000000e+00> : vector<8x32xf32>
    %27 = tpu.matmul %26, %20, %cst_24 {dimension_numbers = #tpu.dot_dimension_numbers<[1], [0], [0], [1], [0, 0, 1, 1], [], []>} : vector<8x64xbf16>, vector<64x32xbf16>, vector<8x32xf32> -> vector<8x32xf32>
    %28 = arith.truncf %27 : vector<8x32xf32> to vector<8x32xbf16>
    %29 = vector.extract_strided_slice %18 {offsets = [0, 0], sizes = [64, 16], strides = [1, 1]} : vector<64x32xbf16> to vector<64x16xbf16>
    %30 = vector.extract_strided_slice %20 {offsets = [0, 0], sizes = [64, 16], strides = [1, 1]} : vector<64x32xbf16> to vector<64x16xbf16>
    %31 = vector.extract_strided_slice %22 {offsets = [0, 0], sizes = [64, 16], strides = [1, 1]} : vector<64x32xbf16> to vector<64x16xbf16>
    %32 = vector.extract_strided_slice %25 {offsets = [0, 0], sizes = [8, 16], strides = [1, 1]} : vector<8x32xbf16> to vector<8x16xbf16>
    %33 = vector.extract_strided_slice %28 {offsets = [0, 0], sizes = [8, 16], strides = [1, 1]} : vector<8x32xbf16> to vector<8x16xbf16>
    %cst_25 = arith.constant dense<0.000000e+00> : vector<64x8xf32>
    %34 = tpu.matmul %29, %33, %cst_25 {dimension_numbers = #tpu.dot_dimension_numbers<[1], [1], [0], [0], [0, 0, 1, 0], [], []>} : vector<64x16xbf16>, vector<8x16xbf16>, vector<64x8xf32> -> vector<64x8xf32>
    %cst_26 = arith.constant dense<0xFF800000> : vector<64xf32>
    %35 = vector.multi_reduction <maximumf>, %34, %cst_26 [1] : vector<64x8xf32> to vector<64xf32>
    %36 = vector.shape_cast %35 : vector<64xf32> to vector<64x1xf32>
    %37 = vector.broadcast %36 : vector<64x1xf32> to vector<64x8xf32>
    %38 = arith.subf %34, %37 : vector<64x8xf32>
    %39 = math.exp %38 : vector<64x8xf32>
    %cst_27 = arith.constant dense<0.000000e+00> : vector<64xf32>
    %40 = vector.multi_reduction <add>, %39, %cst_27 [1] : vector<64x8xf32> to vector<64xf32>
    %41 = vector.shape_cast %40 : vector<64xf32> to vector<64x1xf32>
    %42 = vector.broadcast %41 : vector<64x1xf32> to vector<64x8xf32>
    %43 = arith.divf %39, %42 : vector<64x8xf32>
    %cst_28 = arith.constant dense<0.000000e+00> : vector<8x8xf32>
    %44 = tpu.matmul %32, %33, %cst_28 {dimension_numbers = #tpu.dot_dimension_numbers<[1], [1], [0], [0], [0, 0, 1, 0], [], []>} : vector<8x16xbf16>, vector<8x16xbf16>, vector<8x8xf32> -> vector<8x8xf32>
    %cst_29 = arith.constant dense<0xFF800000> : vector<8xf32>
    %45 = vector.multi_reduction <maximumf>, %44, %cst_29 [1] : vector<8x8xf32> to vector<8xf32>
    %46 = vector.shape_cast %45 : vector<8xf32> to vector<8x1xf32>
    %47 = vector.broadcast %46 : vector<8x1xf32> to vector<8x8xf32>
    %48 = arith.subf %44, %47 : vector<8x8xf32>
    %49 = math.exp %48 : vector<8x8xf32>
    %cst_30 = arith.constant dense<0.000000e+00> : vector<8xf32>
    %50 = vector.multi_reduction <add>, %49, %cst_30 [1] : vector<8x8xf32> to vector<8xf32>
    %51 = vector.shape_cast %50 : vector<8xf32> to vector<8x1xf32>
    %52 = vector.broadcast %51 : vector<8x1xf32> to vector<8x8xf32>
    %53 = arith.divf %49, %52 : vector<8x8xf32>
    %cst_31 = arith.constant dense<0.000000e+00> : vector<8x8xf32>
    %54 = tpu.matmul %33, %32, %cst_31 {dimension_numbers = #tpu.dot_dimension_numbers<[1], [1], [0], [0], [0, 0, 1, 0], [], []>} : vector<8x16xbf16>, vector<8x16xbf16>, vector<8x8xf32> -> vector<8x8xf32>
    %cst_32 = arith.constant dense<0xFF800000> : vector<8xf32>
    %55 = vector.multi_reduction <maximumf>, %54, %cst_32 [0] : vector<8x8xf32> to vector<8xf32>
    %56 = vector.shape_cast %55 : vector<8xf32> to vector<1x8xf32>
    %57 = vector.broadcast %56 : vector<1x8xf32> to vector<8x8xf32>
    %58 = arith.subf %54, %57 : vector<8x8xf32>
    %59 = math.exp %58 : vector<8x8xf32>
    %cst_33 = arith.constant dense<0.000000e+00> : vector<8xf32>
    %60 = vector.multi_reduction <add>, %59, %cst_33 [0] : vector<8x8xf32> to vector<8xf32>
    %61 = vector.shape_cast %60 : vector<8xf32> to vector<1x8xf32>
    %62 = vector.broadcast %61 : vector<1x8xf32> to vector<8x8xf32>
    %63 = arith.divf %59, %62 : vector<8x8xf32>
    %cst_34 = arith.constant dense<0.000000e+00> : vector<8x64xf32>
    %64 = tpu.matmul %32, %30, %cst_34 {dimension_numbers = #tpu.dot_dimension_numbers<[1], [1], [0], [0], [0, 0, 1, 0], [], []>} : vector<8x16xbf16>, vector<64x16xbf16>, vector<8x64xf32> -> vector<8x64xf32>
    %cst_35 = arith.constant 3.40282347E+38 : f32
    %65 = vector.broadcast %cst_35 : f32 to vector<1x64xf32>
    %66 = arith.mulf %9, %65 : vector<1x64xf32>
    %67 = vector.broadcast %66 : vector<1x64xf32> to vector<8x64xf32>
    %68 = arith.subf %64, %67 : vector<8x64xf32>
    %cst_36 = arith.constant dense<0xFF800000> : vector<8xf32>
    %69 = vector.multi_reduction <maximumf>, %68, %cst_36 [1] : vector<8x64xf32> to vector<8xf32>
    %70 = vector.shape_cast %69 : vector<8xf32> to vector<8x1xf32>
    %71 = vector.broadcast %70 : vector<8x1xf32> to vector<8x64xf32>
    %72 = arith.subf %68, %71 : vector<8x64xf32>
    %73 = math.exp %72 : vector<8x64xf32>
    %cst_37 = arith.constant dense<0.000000e+00> : vector<8xf32>
    %74 = vector.multi_reduction <add>, %73, %cst_37 [1] : vector<8x64xf32> to vector<8xf32>
    %75 = vector.shape_cast %74 : vector<8xf32> to vector<8x1xf32>
    %76 = vector.broadcast %75 : vector<8x1xf32> to vector<8x64xf32>
    %77 = arith.divf %73, %76 : vector<8x64xf32>
    %78 = arith.truncf %77 : vector<8x64xf32> to vector<8x64xbf16>
    %cst_38 = arith.constant dense<0.000000e+00> : vector<8x16xf32>
    %79 = tpu.matmul %78, %31, %cst_38 {dimension_numbers = #tpu.dot_dimension_numbers<[1], [0], [0], [1], [0, 0, 1, 1], [], []>} : vector<8x64xbf16>, vector<64x16xbf16>, vector<8x16xf32> -> vector<8x16xf32>
    %80 = math.absf %53 : vector<8x8xf32>
    %cst_39 = arith.constant dense<0.000000e+00> : vector<8xf32>
    %81 = vector.multi_reduction <add>, %80, %cst_39 [0] : vector<8x8xf32> to vector<8xf32>
    %82 = vector.shape_cast %81 : vector<8xf32> to vector<1x8xf32>
    %83 = vector.shape_cast %82 : vector<1x8xf32> to vector<1x1x8xf32>
    %cst_40 = arith.constant dense<0xFF800000> : vector<1xf32>
    %84 = vector.multi_reduction <maximumf>, %83, %cst_40 [1, 2] : vector<1x1x8xf32> to vector<1xf32>
    %85 = vector.shape_cast %84 : vector<1xf32> to vector<1x1x1xf32>
    %86 = vector.extract %85[0, 0, 0] : f32 from vector<1x1x1xf32>
    %cst_41 = arith.constant 1.000000e+00 : f32
    %87 = arith.divf %cst_41, %86 : f32
    %cst_42 = arith.constant dense<0.000000e+00> : vector<8xf32>
    %88 = vector.multi_reduction <add>, %80, %cst_42 [1] : vector<8x8xf32> to vector<8xf32>
    %89 = vector.shape_cast %88 : vector<8xf32> to vector<8x1xf32>
    %90 = vector.shape_cast %89 : vector<8x1xf32> to vector<1x8x1xf32>
    %cst_43 = arith.constant dense<0xFF800000> : vector<1xf32>
    %91 = vector.multi_reduction <maximumf>, %90, %cst_43 [1, 2] : vector<1x8x1xf32> to vector<1xf32>
    %92 = vector.shape_cast %91 : vector<1xf32> to vector<1x1x1xf32>
    %93 = vector.extract %92[0, 0, 0] : f32 from vector<1x1x1xf32>
    %cst_44 = arith.constant 1.000000e+00 : f32
    %94 = arith.divf %cst_44, %93 : f32
    %95 = arith.mulf %87, %94 : f32
    %96 = vector.broadcast %95 : f32 to vector<8x8xf32>
    %97 = arith.mulf %63, %96 : vector<8x8xf32>
    %98 = vector.extract_strided_slice %18 {offsets = [0, 16], sizes = [64, 16], strides = [1, 1]} : vector<64x32xbf16> to vector<64x16xbf16>
    %99 = vector.extract_strided_slice %20 {offsets = [0, 16], sizes = [64, 16], strides = [1, 1]} : vector<64x32xbf16> to vector<64x16xbf16>
    %100 = vector.extract_strided_slice %22 {offsets = [0, 16], sizes = [64, 16], strides = [1, 1]} : vector<64x32xbf16> to vector<64x16xbf16>
    %101 = vector.extract_strided_slice %25 {offsets = [0, 16], sizes = [8, 16], strides = [1, 1]} : vector<8x32xbf16> to vector<8x16xbf16>
    %102 = vector.extract_strided_slice %28 {offsets = [0, 16], sizes = [8, 16], strides = [1, 1]} : vector<8x32xbf16> to vector<8x16xbf16>
    %cst_45 = arith.constant dense<0.000000e+00> : vector<64x8xf32>
    %103 = tpu.matmul %98, %102, %cst_45 {dimension_numbers = #tpu.dot_dimension_numbers<[1], [1], [0], [0], [0, 0, 1, 0], [], []>} : vector<64x16xbf16>, vector<8x16xbf16>, vector<64x8xf32> -> vector<64x8xf32>
    %cst_46 = arith.constant dense<0xFF800000> : vector<64xf32>
    %104 = vector.multi_reduction <maximumf>, %103, %cst_46 [1] : vector<64x8xf32> to vector<64xf32>
    %105 = vector.shape_cast %104 : vector<64xf32> to vector<64x1xf32>
    %106 = vector.broadcast %105 : vector<64x1xf32> to vector<64x8xf32>
    %107 = arith.subf %103, %106 : vector<64x8xf32>
    %108 = math.exp %107 : vector<64x8xf32>
    %cst_47 = arith.constant dense<0.000000e+00> : vector<64xf32>
    %109 = vector.multi_reduction <add>, %108, %cst_47 [1] : vector<64x8xf32> to vector<64xf32>
    %110 = vector.shape_cast %109 : vector<64xf32> to vector<64x1xf32>
    %111 = vector.broadcast %110 : vector<64x1xf32> to vector<64x8xf32>
    %112 = arith.divf %108, %111 : vector<64x8xf32>
    %cst_48 = arith.constant dense<0.000000e+00> : vector<8x8xf32>
    %113 = tpu.matmul %101, %102, %cst_48 {dimension_numbers = #tpu.dot_dimension_numbers<[1], [1], [0], [0], [0, 0, 1, 0], [], []>} : vector<8x16xbf16>, vector<8x16xbf16>, vector<8x8xf32> -> vector<8x8xf32>
    %cst_49 = arith.constant dense<0xFF800000> : vector<8xf32>
    %114 = vector.multi_reduction <maximumf>, %113, %cst_49 [1] : vector<8x8xf32> to vector<8xf32>
    %115 = vector.shape_cast %114 : vector<8xf32> to vector<8x1xf32>
    %116 = vector.broadcast %115 : vector<8x1xf32> to vector<8x8xf32>
    %117 = arith.subf %113, %116 : vector<8x8xf32>
    %118 = math.exp %117 : vector<8x8xf32>
    %cst_50 = arith.constant dense<0.000000e+00> : vector<8xf32>
    %119 = vector.multi_reduction <add>, %118, %cst_50 [1] : vector<8x8xf32> to vector<8xf32>
    %120 = vector.shape_cast %119 : vector<8xf32> to vector<8x1xf32>
    %121 = vector.broadcast %120 : vector<8x1xf32> to vector<8x8xf32>
    %122 = arith.divf %118, %121 : vector<8x8xf32>
    %cst_51 = arith.constant dense<0.000000e+00> : vector<8x8xf32>
    %123 = tpu.matmul %102, %101, %cst_51 {dimension_numbers = #tpu.dot_dimension_numbers<[1], [1], [0], [0], [0, 0, 1, 0], [], []>} : vector<8x16xbf16>, vector<8x16xbf16>, vector<8x8xf32> -> vector<8x8xf32>
    %cst_52 = arith.constant dense<0xFF800000> : vector<8xf32>
    %124 = vector.multi_reduction <maximumf>, %123, %cst_52 [0] : vector<8x8xf32> to vector<8xf32>
    %125 = vector.shape_cast %124 : vector<8xf32> to vector<1x8xf32>
    %126 = vector.broadcast %125 : vector<1x8xf32> to vector<8x8xf32>
    %127 = arith.subf %123, %126 : vector<8x8xf32>
    %128 = math.exp %127 : vector<8x8xf32>
    %cst_53 = arith.constant dense<0.000000e+00> : vector<8xf32>
    %129 = vector.multi_reduction <add>, %128, %cst_53 [0] : vector<8x8xf32> to vector<8xf32>
    %130 = vector.shape_cast %129 : vector<8xf32> to vector<1x8xf32>
    %131 = vector.broadcast %130 : vector<1x8xf32> to vector<8x8xf32>
    %132 = arith.divf %128, %131 : vector<8x8xf32>
    %cst_54 = arith.constant dense<0.000000e+00> : vector<8x64xf32>
    %133 = tpu.matmul %101, %99, %cst_54 {dimension_numbers = #tpu.dot_dimension_numbers<[1], [1], [0], [0], [0, 0, 1, 0], [], []>} : vector<8x16xbf16>, vector<64x16xbf16>, vector<8x64xf32> -> vector<8x64xf32>
    %cst_55 = arith.constant 3.40282347E+38 : f32
    %134 = vector.broadcast %cst_55 : f32 to vector<1x64xf32>
    %135 = arith.mulf %9, %134 : vector<1x64xf32>
    %136 = vector.broadcast %135 : vector<1x64xf32> to vector<8x64xf32>
    %137 = arith.subf %133, %136 : vector<8x64xf32>
    %cst_56 = arith.constant dense<0xFF800000> : vector<8xf32>
    %138 = vector.multi_reduction <maximumf>, %137, %cst_56 [1] : vector<8x64xf32> to vector<8xf32>
    %139 = vector.shape_cast %138 : vector<8xf32> to vector<8x1xf32>
    %140 = vector.broadcast %139 : vector<8x1xf32> to vector<8x64xf32>
    %141 = arith.subf %137, %140 : vector<8x64xf32>
    %142 = math.exp %141 : vector<8x64xf32>
    %cst_57 = arith.constant dense<0.000000e+00> : vector<8xf32>
    %143 = vector.multi_reduction <add>, %142, %cst_57 [1] : vector<8x64xf32> to vector<8xf32>
    %144 = vector.shape_cast %143 : vector<8xf32> to vector<8x1xf32>
    %145 = vector.broadcast %144 : vector<8x1xf32> to vector<8x64xf32>
    %146 = arith.divf %142, %145 : vector<8x64xf32>
    %147 = arith.truncf %146 : vector<8x64xf32> to vector<8x64xbf16>
    %cst_58 = arith.constant dense<0.000000e+00> : vector<8x16xf32>
    %148 = tpu.matmul %147, %100, %cst_58 {dimension_numbers = #tpu.dot_dimension_numbers<[1], [0], [0], [1], [0, 0, 1, 1], [], []>} : vector<8x64xbf16>, vector<64x16xbf16>, vector<8x16xf32> -> vector<8x16xf32>
    %149 = math.absf %122 : vector<8x8xf32>
    %cst_59 = arith.constant dense<0.000000e+00> : vector<8xf32>
    %150 = vector.multi_reduction <add>, %149, %cst_59 [0] : vector<8x8xf32> to vector<8xf32>
    %151 = vector.shape_cast %150 : vector<8xf32> to vector<1x8xf32>
    %152 = vector.shape_cast %151 : vector<1x8xf32> to vector<1x1x8xf32>
    %cst_60 = arith.constant dense<0xFF800000> : vector<1xf32>
    %153 = vector.multi_reduction <maximumf>, %152, %cst_60 [1, 2] : vector<1x1x8xf32> to vector<1xf32>
    %154 = vector.shape_cast %153 : vector<1xf32> to vector<1x1x1xf32>
    %155 = vector.extract %154[0, 0, 0] : f32 from vector<1x1x1xf32>
    %cst_61 = arith.constant 1.000000e+00 : f32
    %156 = arith.divf %cst_61, %155 : f32
    %cst_62 = arith.constant dense<0.000000e+00> : vector<8xf32>
    %157 = vector.multi_reduction <add>, %149, %cst_62 [1] : vector<8x8xf32> to vector<8xf32>
    %158 = vector.shape_cast %157 : vector<8xf32> to vector<8x1xf32>
    %159 = vector.shape_cast %158 : vector<8x1xf32> to vector<1x8x1xf32>
    %cst_63 = arith.constant dense<0xFF800000> : vector<1xf32>
    %160 = vector.multi_reduction <maximumf>, %159, %cst_63 [1, 2] : vector<1x8x1xf32> to vector<1xf32>
    %161 = vector.shape_cast %160 : vector<1xf32> to vector<1x1x1xf32>
    %162 = vector.extract %161[0, 0, 0] : f32 from vector<1x1x1xf32>
    %cst_64 = arith.constant 1.000000e+00 : f32
    %163 = arith.divf %cst_64, %162 : f32
    %164 = arith.mulf %156, %163 : f32
    %165 = vector.broadcast %164 : f32 to vector<8x8xf32>
    %166 = arith.mulf %132, %165 : vector<8x8xf32>
    %167 = vector.shape_cast %53 : vector<8x8xf32> to vector<1x8x8xf32>
    %168 = vector.shape_cast %122 : vector<8x8xf32> to vector<1x8x8xf32>
    %169 = tpu.concatenate %167, %168 in 0 : vector<1x8x8xf32>, vector<1x8x8xf32> -> vector<2x8x8xf32>
    %170 = vector.shape_cast %97 : vector<8x8xf32> to vector<1x8x8xf32>
    %171 = vector.shape_cast %166 : vector<8x8xf32> to vector<1x8x8xf32>
    %172 = tpu.concatenate %170, %171 in 0 : vector<1x8x8xf32>, vector<1x8x8xf32> -> vector<2x8x8xf32>
    %173 = tpu.iota {dimensions = array<i32: 0>} : vector<8x8xi32>
    %174 = tpu.iota {dimensions = array<i32: 1>} : vector<8x8xi32>
    %175 = arith.cmpi eq, %173, %174 : vector<8x8xi32>
    %176 = arith.extui %175 : vector<8x8xi1> to vector<8x8xi32>
    %177 = arith.sitofp %176 : vector<8x8xi32> to vector<8x8xf32>
    %178 = vector.shape_cast %177 : vector<8x8xf32> to vector<1x8x8xf32>
    %179 = vector.broadcast %178 : vector<1x8x8xf32> to vector<2x8x8xf32>
    %cst_65 = arith.constant 7.000000e+00 : f32
    %180 = vector.broadcast %cst_65 : f32 to vector<2x8x8xf32>
    %181 = arith.mulf %180, %179 : vector<2x8x8xf32>
    %cst_66 = arith.constant 1.300000e+01 : f32
    %182 = vector.broadcast %cst_66 : f32 to vector<2x8x8xf32>
    %183 = arith.mulf %182, %179 : vector<2x8x8xf32>
    %cst_67 = arith.constant 1.500000e+01 : f32
    %184 = vector.broadcast %cst_67 : f32 to vector<2x8x8xf32>
    %185 = arith.mulf %184, %179 : vector<2x8x8xf32>
    %cst_68 = arith.constant dense<0.000000e+00> : vector<2x8x8xf32>
    %186 = tpu.matmul %169, %172, %cst_68 {dimension_numbers = #tpu.dot_dimension_numbers<[2], [1], [1], [2], [0, 0, 0, 1, 1, 2], [0], [0]>} : vector<2x8x8xf32>, vector<2x8x8xf32>, vector<2x8x8xf32> -> vector<2x8x8xf32>
    %187 = arith.subf %181, %186 : vector<2x8x8xf32>
    %cst_69 = arith.constant dense<0.000000e+00> : vector<2x8x8xf32>
    %188 = tpu.matmul %186, %187, %cst_69 {dimension_numbers = #tpu.dot_dimension_numbers<[2], [1], [1], [2], [0, 0, 0, 1, 1, 2], [0], [0]>} : vector<2x8x8xf32>, vector<2x8x8xf32>, vector<2x8x8xf32> -> vector<2x8x8xf32>
    %189 = arith.subf %185, %188 : vector<2x8x8xf32>
    %cst_70 = arith.constant dense<0.000000e+00> : vector<2x8x8xf32>
    %190 = tpu.matmul %186, %189, %cst_70 {dimension_numbers = #tpu.dot_dimension_numbers<[2], [1], [1], [2], [0, 0, 0, 1, 1, 2], [0], [0]>} : vector<2x8x8xf32>, vector<2x8x8xf32>, vector<2x8x8xf32> -> vector<2x8x8xf32>
    %191 = arith.subf %183, %190 : vector<2x8x8xf32>
    %cst_71 = arith.constant dense<0.000000e+00> : vector<2x8x8xf32>
    %192 = tpu.matmul %172, %191, %cst_71 {dimension_numbers = #tpu.dot_dimension_numbers<[2], [1], [1], [2], [0, 0, 0, 1, 1, 2], [0], [0]>} : vector<2x8x8xf32>, vector<2x8x8xf32>, vector<2x8x8xf32> -> vector<2x8x8xf32>
    %cst_72 = arith.constant 2.500000e-01 : f32
    %193 = vector.broadcast %cst_72 : f32 to vector<2x8x8xf32>
    %194 = arith.mulf %193, %192 : vector<2x8x8xf32>
    %cst_73 = arith.constant dense<0.000000e+00> : vector<2x8x8xf32>
    %195 = tpu.matmul %169, %194, %cst_73 {dimension_numbers = #tpu.dot_dimension_numbers<[2], [1], [1], [2], [0, 0, 0, 1, 1, 2], [0], [0]>} : vector<2x8x8xf32>, vector<2x8x8xf32>, vector<2x8x8xf32> -> vector<2x8x8xf32>
    %196 = arith.subf %181, %195 : vector<2x8x8xf32>
    %cst_74 = arith.constant dense<0.000000e+00> : vector<2x8x8xf32>
    %197 = tpu.matmul %195, %196, %cst_74 {dimension_numbers = #tpu.dot_dimension_numbers<[2], [1], [1], [2], [0, 0, 0, 1, 1, 2], [0], [0]>} : vector<2x8x8xf32>, vector<2x8x8xf32>, vector<2x8x8xf32> -> vector<2x8x8xf32>
    %198 = arith.subf %185, %197 : vector<2x8x8xf32>
    %cst_75 = arith.constant dense<0.000000e+00> : vector<2x8x8xf32>
    %199 = tpu.matmul %195, %198, %cst_75 {dimension_numbers = #tpu.dot_dimension_numbers<[2], [1], [1], [2], [0, 0, 0, 1, 1, 2], [0], [0]>} : vector<2x8x8xf32>, vector<2x8x8xf32>, vector<2x8x8xf32> -> vector<2x8x8xf32>
    %200 = arith.subf %183, %199 : vector<2x8x8xf32>
    %cst_76 = arith.constant dense<0.000000e+00> : vector<2x8x8xf32>
    %201 = tpu.matmul %194, %200, %cst_76 {dimension_numbers = #tpu.dot_dimension_numbers<[2], [1], [1], [2], [0, 0, 0, 1, 1, 2], [0], [0]>} : vector<2x8x8xf32>, vector<2x8x8xf32>, vector<2x8x8xf32> -> vector<2x8x8xf32>
    %cst_77 = arith.constant 2.500000e-01 : f32
    %202 = vector.broadcast %cst_77 : f32 to vector<2x8x8xf32>
    %203 = arith.mulf %202, %201 : vector<2x8x8xf32>
    %cst_78 = arith.constant dense<0.000000e+00> : vector<2x8x8xf32>
    %204 = tpu.matmul %169, %203, %cst_78 {dimension_numbers = #tpu.dot_dimension_numbers<[2], [1], [1], [2], [0, 0, 0, 1, 1, 2], [0], [0]>} : vector<2x8x8xf32>, vector<2x8x8xf32>, vector<2x8x8xf32> -> vector<2x8x8xf32>
    %205 = arith.subf %181, %204 : vector<2x8x8xf32>
    %cst_79 = arith.constant dense<0.000000e+00> : vector<2x8x8xf32>
    %206 = tpu.matmul %204, %205, %cst_79 {dimension_numbers = #tpu.dot_dimension_numbers<[2], [1], [1], [2], [0, 0, 0, 1, 1, 2], [0], [0]>} : vector<2x8x8xf32>, vector<2x8x8xf32>, vector<2x8x8xf32> -> vector<2x8x8xf32>
    %207 = arith.subf %185, %206 : vector<2x8x8xf32>
    %cst_80 = arith.constant dense<0.000000e+00> : vector<2x8x8xf32>
    %208 = tpu.matmul %204, %207, %cst_80 {dimension_numbers = #tpu.dot_dimension_numbers<[2], [1], [1], [2], [0, 0, 0, 1, 1, 2], [0], [0]>} : vector<2x8x8xf32>, vector<2x8x8xf32>, vector<2x8x8xf32> -> vector<2x8x8xf32>
    %209 = arith.subf %183, %208 : vector<2x8x8xf32>
    %cst_81 = arith.constant dense<0.000000e+00> : vector<2x8x8xf32>
    %210 = tpu.matmul %203, %209, %cst_81 {dimension_numbers = #tpu.dot_dimension_numbers<[2], [1], [1], [2], [0, 0, 0, 1, 1, 2], [0], [0]>} : vector<2x8x8xf32>, vector<2x8x8xf32>, vector<2x8x8xf32> -> vector<2x8x8xf32>
    %cst_82 = arith.constant 2.500000e-01 : f32
    %211 = vector.broadcast %cst_82 : f32 to vector<2x8x8xf32>
    %212 = arith.mulf %211, %210 : vector<2x8x8xf32>
    %cst_83 = arith.constant dense<0.000000e+00> : vector<2x8x8xf32>
    %213 = tpu.matmul %169, %212, %cst_83 {dimension_numbers = #tpu.dot_dimension_numbers<[2], [1], [1], [2], [0, 0, 0, 1, 1, 2], [0], [0]>} : vector<2x8x8xf32>, vector<2x8x8xf32>, vector<2x8x8xf32> -> vector<2x8x8xf32>
    %214 = arith.subf %181, %213 : vector<2x8x8xf32>
    %cst_84 = arith.constant dense<0.000000e+00> : vector<2x8x8xf32>
    %215 = tpu.matmul %213, %214, %cst_84 {dimension_numbers = #tpu.dot_dimension_numbers<[2], [1], [1], [2], [0, 0, 0, 1, 1, 2], [0], [0]>} : vector<2x8x8xf32>, vector<2x8x8xf32>, vector<2x8x8xf32> -> vector<2x8x8xf32>
    %216 = arith.subf %185, %215 : vector<2x8x8xf32>
    %cst_85 = arith.constant dense<0.000000e+00> : vector<2x8x8xf32>
    %217 = tpu.matmul %213, %216, %cst_85 {dimension_numbers = #tpu.dot_dimension_numbers<[2], [1], [1], [2], [0, 0, 0, 1, 1, 2], [0], [0]>} : vector<2x8x8xf32>, vector<2x8x8xf32>, vector<2x8x8xf32> -> vector<2x8x8xf32>
    %218 = arith.subf %183, %217 : vector<2x8x8xf32>
    %cst_86 = arith.constant dense<0.000000e+00> : vector<2x8x8xf32>
    %219 = tpu.matmul %212, %218, %cst_86 {dimension_numbers = #tpu.dot_dimension_numbers<[2], [1], [1], [2], [0, 0, 0, 1, 1, 2], [0], [0]>} : vector<2x8x8xf32>, vector<2x8x8xf32>, vector<2x8x8xf32> -> vector<2x8x8xf32>
    %cst_87 = arith.constant 2.500000e-01 : f32
    %220 = vector.broadcast %cst_87 : f32 to vector<2x8x8xf32>
    %221 = arith.mulf %220, %219 : vector<2x8x8xf32>
    %cst_88 = arith.constant dense<0.000000e+00> : vector<2x8x8xf32>
    %222 = tpu.matmul %169, %221, %cst_88 {dimension_numbers = #tpu.dot_dimension_numbers<[2], [1], [1], [2], [0, 0, 0, 1, 1, 2], [0], [0]>} : vector<2x8x8xf32>, vector<2x8x8xf32>, vector<2x8x8xf32> -> vector<2x8x8xf32>
    %223 = arith.subf %181, %222 : vector<2x8x8xf32>
    %cst_89 = arith.constant dense<0.000000e+00> : vector<2x8x8xf32>
    %224 = tpu.matmul %222, %223, %cst_89 {dimension_numbers = #tpu.dot_dimension_numbers<[2], [1], [1], [2], [0, 0, 0, 1, 1, 2], [0], [0]>} : vector<2x8x8xf32>, vector<2x8x8xf32>, vector<2x8x8xf32> -> vector<2x8x8xf32>
    %225 = arith.subf %185, %224 : vector<2x8x8xf32>
    %cst_90 = arith.constant dense<0.000000e+00> : vector<2x8x8xf32>
    %226 = tpu.matmul %222, %225, %cst_90 {dimension_numbers = #tpu.dot_dimension_numbers<[2], [1], [1], [2], [0, 0, 0, 1, 1, 2], [0], [0]>} : vector<2x8x8xf32>, vector<2x8x8xf32>, vector<2x8x8xf32> -> vector<2x8x8xf32>
    %227 = arith.subf %183, %226 : vector<2x8x8xf32>
    %cst_91 = arith.constant dense<0.000000e+00> : vector<2x8x8xf32>
    %228 = tpu.matmul %221, %227, %cst_91 {dimension_numbers = #tpu.dot_dimension_numbers<[2], [1], [1], [2], [0, 0, 0, 1, 1, 2], [0], [0]>} : vector<2x8x8xf32>, vector<2x8x8xf32>, vector<2x8x8xf32> -> vector<2x8x8xf32>
    %cst_92 = arith.constant 2.500000e-01 : f32
    %229 = vector.broadcast %cst_92 : f32 to vector<2x8x8xf32>
    %230 = arith.mulf %229, %228 : vector<2x8x8xf32>
    %cst_93 = arith.constant dense<0.000000e+00> : vector<2x8x8xf32>
    %231 = tpu.matmul %169, %230, %cst_93 {dimension_numbers = #tpu.dot_dimension_numbers<[2], [1], [1], [2], [0, 0, 0, 1, 1, 2], [0], [0]>} : vector<2x8x8xf32>, vector<2x8x8xf32>, vector<2x8x8xf32> -> vector<2x8x8xf32>
    %232 = arith.subf %181, %231 : vector<2x8x8xf32>
    %cst_94 = arith.constant dense<0.000000e+00> : vector<2x8x8xf32>
    %233 = tpu.matmul %231, %232, %cst_94 {dimension_numbers = #tpu.dot_dimension_numbers<[2], [1], [1], [2], [0, 0, 0, 1, 1, 2], [0], [0]>} : vector<2x8x8xf32>, vector<2x8x8xf32>, vector<2x8x8xf32> -> vector<2x8x8xf32>
    %234 = arith.subf %185, %233 : vector<2x8x8xf32>
    %cst_95 = arith.constant dense<0.000000e+00> : vector<2x8x8xf32>
    %235 = tpu.matmul %231, %234, %cst_95 {dimension_numbers = #tpu.dot_dimension_numbers<[2], [1], [1], [2], [0, 0, 0, 1, 1, 2], [0], [0]>} : vector<2x8x8xf32>, vector<2x8x8xf32>, vector<2x8x8xf32> -> vector<2x8x8xf32>
    %236 = arith.subf %183, %235 : vector<2x8x8xf32>
    %cst_96 = arith.constant dense<0.000000e+00> : vector<2x8x8xf32>
    %237 = tpu.matmul %230, %236, %cst_96 {dimension_numbers = #tpu.dot_dimension_numbers<[2], [1], [1], [2], [0, 0, 0, 1, 1, 2], [0], [0]>} : vector<2x8x8xf32>, vector<2x8x8xf32>, vector<2x8x8xf32> -> vector<2x8x8xf32>
    %cst_97 = arith.constant 2.500000e-01 : f32
    %238 = vector.broadcast %cst_97 : f32 to vector<2x8x8xf32>
    %239 = arith.mulf %238, %237 : vector<2x8x8xf32>
    %cst_98 = arith.constant dense<0.000000e+00> : vector<2x8x8xf32>
    %240 = tpu.matmul %169, %239, %cst_98 {dimension_numbers = #tpu.dot_dimension_numbers<[2], [1], [1], [2], [0, 0, 0, 1, 1, 2], [0], [0]>} : vector<2x8x8xf32>, vector<2x8x8xf32>, vector<2x8x8xf32> -> vector<2x8x8xf32>
    %241 = arith.subf %181, %240 : vector<2x8x8xf32>
    %cst_99 = arith.constant dense<0.000000e+00> : vector<2x8x8xf32>
    %242 = tpu.matmul %240, %241, %cst_99 {dimension_numbers = #tpu.dot_dimension_numbers<[2], [1], [1], [2], [0, 0, 0, 1, 1, 2], [0], [0]>} : vector<2x8x8xf32>, vector<2x8x8xf32>, vector<2x8x8xf32> -> vector<2x8x8xf32>
    %243 = arith.subf %185, %242 : vector<2x8x8xf32>
    %cst_100 = arith.constant dense<0.000000e+00> : vector<2x8x8xf32>
    %244 = tpu.matmul %240, %243, %cst_100 {dimension_numbers = #tpu.dot_dimension_numbers<[2], [1], [1], [2], [0, 0, 0, 1, 1, 2], [0], [0]>} : vector<2x8x8xf32>, vector<2x8x8xf32>, vector<2x8x8xf32> -> vector<2x8x8xf32>
    %245 = arith.subf %183, %244 : vector<2x8x8xf32>
    %cst_101 = arith.constant dense<0.000000e+00> : vector<2x8x8xf32>
    %246 = tpu.matmul %239, %245, %cst_101 {dimension_numbers = #tpu.dot_dimension_numbers<[2], [1], [1], [2], [0, 0, 0, 1, 1, 2], [0], [0]>} : vector<2x8x8xf32>, vector<2x8x8xf32>, vector<2x8x8xf32> -> vector<2x8x8xf32>
    %cst_102 = arith.constant 2.500000e-01 : f32
    %247 = vector.broadcast %cst_102 : f32 to vector<2x8x8xf32>
    %248 = arith.mulf %247, %246 : vector<2x8x8xf32>
    %cst_103 = arith.constant dense<0.000000e+00> : vector<2x8x8xf32>
    %249 = tpu.matmul %169, %248, %cst_103 {dimension_numbers = #tpu.dot_dimension_numbers<[2], [1], [1], [2], [0, 0, 0, 1, 1, 2], [0], [0]>} : vector<2x8x8xf32>, vector<2x8x8xf32>, vector<2x8x8xf32> -> vector<2x8x8xf32>
    %250 = arith.subf %181, %249 : vector<2x8x8xf32>
    %cst_104 = arith.constant dense<0.000000e+00> : vector<2x8x8xf32>
    %251 = tpu.matmul %249, %250, %cst_104 {dimension_numbers = #tpu.dot_dimension_numbers<[2], [1], [1], [2], [0, 0, 0, 1, 1, 2], [0], [0]>} : vector<2x8x8xf32>, vector<2x8x8xf32>, vector<2x8x8xf32> -> vector<2x8x8xf32>
    %252 = arith.subf %185, %251 : vector<2x8x8xf32>
    %cst_105 = arith.constant dense<0.000000e+00> : vector<2x8x8xf32>
    %253 = tpu.matmul %249, %252, %cst_105 {dimension_numbers = #tpu.dot_dimension_numbers<[2], [1], [1], [2], [0, 0, 0, 1, 1, 2], [0], [0]>} : vector<2x8x8xf32>, vector<2x8x8xf32>, vector<2x8x8xf32> -> vector<2x8x8xf32>
    %254 = arith.subf %183, %253 : vector<2x8x8xf32>
    %cst_106 = arith.constant dense<0.000000e+00> : vector<2x8x8xf32>
    %255 = tpu.matmul %248, %254, %cst_106 {dimension_numbers = #tpu.dot_dimension_numbers<[2], [1], [1], [2], [0, 0, 0, 1, 1, 2], [0], [0]>} : vector<2x8x8xf32>, vector<2x8x8xf32>, vector<2x8x8xf32> -> vector<2x8x8xf32>
    %cst_107 = arith.constant 2.500000e-01 : f32
    %256 = vector.broadcast %cst_107 : f32 to vector<2x8x8xf32>
    %257 = arith.mulf %256, %255 : vector<2x8x8xf32>
    %258 = arith.truncf %43 : vector<64x8xf32> to vector<64x8xbf16>
    %259 = vector.extract_strided_slice %257 {offsets = [0, 0, 0], sizes = [1, 8, 8], strides = [1, 1, 1]} : vector<2x8x8xf32> to vector<1x8x8xf32>
    %260 = vector.shape_cast %259 : vector<1x8x8xf32> to vector<8x8xf32>
    %261 = arith.truncf %260 : vector<8x8xf32> to vector<8x8xbf16>
    %cst_108 = arith.constant dense<0.000000e+00> : vector<64x8xf32>
    %262 = tpu.matmul %258, %261, %cst_108 {dimension_numbers = #tpu.dot_dimension_numbers<[1], [0], [0], [1], [0, 0, 1, 1], [], []>} : vector<64x8xbf16>, vector<8x8xbf16>, vector<64x8xf32> -> vector<64x8xf32>
    %263 = arith.truncf %262 : vector<64x8xf32> to vector<64x8xbf16>
    %264 = arith.truncf %79 : vector<8x16xf32> to vector<8x16xbf16>
    %cst_109 = arith.constant dense<0.000000e+00> : vector<64x16xf32>
    %265 = tpu.matmul %263, %264, %cst_109 {dimension_numbers = #tpu.dot_dimension_numbers<[1], [0], [0], [1], [0, 0, 1, 1], [], []>} : vector<64x8xbf16>, vector<8x16xbf16>, vector<64x16xf32> -> vector<64x16xf32>
    %266 = arith.truncf %265 : vector<64x16xf32> to vector<64x16xbf16>
    %267 = arith.truncf %112 : vector<64x8xf32> to vector<64x8xbf16>
    %268 = vector.extract_strided_slice %257 {offsets = [1, 0, 0], sizes = [1, 8, 8], strides = [1, 1, 1]} : vector<2x8x8xf32> to vector<1x8x8xf32>
    %269 = vector.shape_cast %268 : vector<1x8x8xf32> to vector<8x8xf32>
    %270 = arith.truncf %269 : vector<8x8xf32> to vector<8x8xbf16>
    %cst_110 = arith.constant dense<0.000000e+00> : vector<64x8xf32>
    %271 = tpu.matmul %267, %270, %cst_110 {dimension_numbers = #tpu.dot_dimension_numbers<[1], [0], [0], [1], [0, 0, 1, 1], [], []>} : vector<64x8xbf16>, vector<8x8xbf16>, vector<64x8xf32> -> vector<64x8xf32>
    %272 = arith.truncf %271 : vector<64x8xf32> to vector<64x8xbf16>
    %273 = arith.truncf %148 : vector<8x16xf32> to vector<8x16xbf16>
    %cst_111 = arith.constant dense<0.000000e+00> : vector<64x16xf32>
    %274 = tpu.matmul %272, %273, %cst_111 {dimension_numbers = #tpu.dot_dimension_numbers<[1], [0], [0], [1], [0, 0, 1, 1], [], []>} : vector<64x8xbf16>, vector<8x16xbf16>, vector<64x16xf32> -> vector<64x16xf32>
    %275 = arith.truncf %274 : vector<64x16xf32> to vector<64x16xbf16>
    %276 = tpu.concatenate %266, %275 in 1 : vector<64x16xbf16>, vector<64x16xbf16> -> vector<64x32xbf16>
    %c0_112 = arith.constant 0 : index
    %c0_113 = arith.constant 0 : index
    %277 = vector.load %arg10[%c0_112, %c0_113] : memref<32x128xbf16, #tpu.memory_space<vmem>>, vector<32x128xbf16>
    %cst_114 = arith.constant dense<0.000000e+00> : vector<64x128xf32>
    %278 = tpu.matmul %276, %277, %cst_114 {dimension_numbers = #tpu.dot_dimension_numbers<[1], [0], [0], [1], [0, 0, 1, 1], [], []>} : vector<64x32xbf16>, vector<32x128xbf16>, vector<64x128xf32> -> vector<64x128xf32>
    %c0_115 = arith.constant 0 : index
    %c0_116 = arith.constant 0 : index
    %279 = vector.load %arg11[%c0_115, %c0_116] : memref<1x128xf32, #tpu.memory_space<vmem>>, vector<1x128xf32>
    %280 = vector.broadcast %279 : vector<1x128xf32> to vector<64x128xf32>
    %281 = arith.addf %278, %280 : vector<64x128xf32>
    %282 = vector.shape_cast %281 : vector<64x128xf32> to vector<1x64x128xf32>
    %c0_117 = arith.constant 0 : index
    %c0_118 = arith.constant 0 : index
    %c0_119 = arith.constant 0 : index
    %283 = vector.load %arg12[%c0_117, %c0_118, %c0_119] : memref<1x64x128xf32, #tpu.memory_space<vmem>>, vector<1x64x128xf32>
    tpu.vector_store %arg12[%c0_117, %c0_118, %c0_119], %282 {strides = array<i32>} : memref<1x64x128xf32, #tpu.memory_space<vmem>>, vector<1x64x128xf32>,
    return
  }
  func.func @transform_0(%arg0: i32) -> (i32, i32, i32) {
    %c0_i32 = arith.constant 0 : i32
    %c0_i32_0 = arith.constant 0 : i32
    %c0_i32_1 = arith.constant 0 : i32
    return %arg0, %c0_i32, %c0_i32_0 : i32, i32, i32
  }
  func.func @transform_1(%arg0: i32) -> (i32, i32, i32) {
    %c0_i32 = arith.constant 0 : i32
    %c0_i32_0 = arith.constant 0 : i32
    %c0_i32_1 = arith.constant 0 : i32
    return %arg0, %c0_i32, %c0_i32_0 : i32, i32, i32
  }
  func.func @transform_2(%arg0: i32) -> (i32, i32, i32) {
    %c0_i32 = arith.constant 0 : i32
    %c0_i32_0 = arith.constant 0 : i32
    %c0_i32_1 = arith.constant 0 : i32
    return %arg0, %c0_i32, %c0_i32_0 : i32, i32, i32
  }
  func.func @transform_3(%arg0: i32) -> (i32, i32, i32) {
    %c0_i32 = arith.constant 0 : i32
    %c0_i32_0 = arith.constant 0 : i32
    %c0_i32_1 = arith.constant 0 : i32
    return %arg0, %c0_i32, %c0_i32_0 : i32, i32, i32
  }
  func.func @transform_4(%arg0: i32) -> (i32, i32, i32) {
    %c0_i32 = arith.constant 0 : i32
    %c0_i32_0 = arith.constant 0 : i32
    %c0_i32_1 = arith.constant 0 : i32
    return %arg0, %c0_i32, %c0_i32_0 : i32, i32, i32
  }
  func.func @transform_5(%arg0: i32) -> (i32, i32) {
    %c0_i32 = arith.constant 0 : i32
    %c0_i32_0 = arith.constant 0 : i32
    %c0_i32_1 = arith.constant 0 : i32
    return %c0_i32, %c0_i32_0 : i32, i32
  }
  func.func @transform_6(%arg0: i32) -> (i32, i32) {
    %c0_i32 = arith.constant 0 : i32
    %c0_i32_0 = arith.constant 0 : i32
    %c0_i32_1 = arith.constant 0 : i32
    return %c0_i32, %c0_i32_0 : i32, i32
  }
  func.func @transform_7(%arg0: i32) -> (i32, i32) {
    %c0_i32 = arith.constant 0 : i32
    %c0_i32_0 = arith.constant 0 : i32
    %c0_i32_1 = arith.constant 0 : i32
    return %c0_i32, %c0_i32_0 : i32, i32
  }
  func.func @transform_8(%arg0: i32) -> (i32, i32) {
    %c0_i32 = arith.constant 0 : i32
    %c0_i32_0 = arith.constant 0 : i32
    %c0_i32_1 = arith.constant 0 : i32
    return %c0_i32, %c0_i32_0 : i32, i32
  }
  func.func @transform_9(%arg0: i32) -> (i32, i32) {
    %c0_i32 = arith.constant 0 : i32
    %c0_i32_0 = arith.constant 0 : i32
    %c0_i32_1 = arith.constant 0 : i32
    return %c0_i32, %c0_i32_0 : i32, i32
  }
  func.func @transform_10(%arg0: i32) -> (i32, i32) {
    %c0_i32 = arith.constant 0 : i32
    %c0_i32_0 = arith.constant 0 : i32
    %c0_i32_1 = arith.constant 0 : i32
    return %c0_i32, %c0_i32_0 : i32, i32
  }
  func.func @transform_11(%arg0: i32) -> (i32, i32, i32) {
    %c0_i32 = arith.constant 0 : i32
    %c0_i32_0 = arith.constant 0 : i32
    %c0_i32_1 = arith.constant 0 : i32
    return %arg0, %c0_i32, %c0_i32_0 : i32, i32, i32
  }
}

</mosaic_0001>

<llo_original>
// kernel: tpu_custom_call.1
$region0: #{tpu_custom_call.1}
  #allocation0 [shape = 'u32[]', space=smem, size = 0x4, offset = 0x4, fixed_abs, tag = 'smem constant byte address 0x4 - core index']
  #allocation1 [shape = 'u32[72,128]{1,0:T(1,128)}', space=vmem, size = 0x9000, scoped, tag = 'internal scratch']
  %s0 = inlined_call_operand.vmem [shape: bf16[2,64,32], index: 0, kind: input, shape index: {}]
  %s1 = inlined_call_operand.vmem [shape: bf16[2,64,32], index: 1, kind: input, shape index: {}]
  %s2 = inlined_call_operand.vmem [shape: f32[2,64,1], index: 2, kind: input, shape index: {}]
  %s3 = inlined_call_operand.vmem [shape: f32[2,64,1], index: 3, kind: input, shape index: {}]
  %s4 = inlined_call_operand.vmem [shape: f32[2,1,64], index: 4, kind: input, shape index: {}]
  %s5 = inlined_call_operand.vmem [shape: bf16[8,64], index: 5, kind: input, shape index: {}]
  %s6 = inlined_call_operand.vmem [shape: bf16[8,64], index: 6, kind: input, shape index: {}]
  %s7 = inlined_call_operand.vmem [shape: bf16[32,32], index: 7, kind: input, shape index: {}]
  %s8 = inlined_call_operand.vmem [shape: bf16[32,64], index: 8, kind: input, shape index: {}]
  %s9 = inlined_call_operand.vmem [shape: bf16[32,128], index: 9, kind: input, shape index: {}]
  %s10 = inlined_call_operand.vmem [shape: f32[1,128], index: 10, kind: input, shape index: {}]
  %s11 = inlined_call_operand.hbm [shape: f32[2,64,128], index: 11, kind: output, shape index: {}]
  %s12 = sld [smem:[#allocation0]]
  $region77: #{tpu_custom_call.1} parent=0
    _
  %s14 = ssub.s32 1, %s12
  %s15 = scalar_select 0, %s14, %s12
  $region1: #{tpu_custom_call.1} parent=0
    #allocation2 [shape = 'u8[65536]{0}', space=vmem, size = 0x10000, scoped, tag = 'output window, operand 0']
    #allocation3 [shape = 's32[2]{0}', space=sflag, size = 0x8, scoped, tag = 'scoped memory for tpu_custom_call.1']
    %16 = vsyncpa [#allocation3], 0
    %s17 = scalar_lea.sflag [#allocation3], 1
    %18 = vsyncpa %s17, 0
    loop: start=0, step=1, limit=4
    $region2: #{tpu_custom_call.1} parent=1 // loop_pre_header
      _
    $region3: #{tpu_custom_call.1} parent=1 // loop_header
      %s20 = sphi 0, %s24
      %p21 = scmp.ge.s32.totalorder %s20, 4
      %s30 = sphi 0, %s32
      %s33 = sphi 0, %s30
      %s34 = sphi 0, %s33
      %s50 = sphi 0, %s34
      %s56 = sphi 0, %s58
      %s59 = sphi 0, %s56
      %s60 = sphi 0, %s59
      %s76 = sphi 0, %s60
      %s82 = sphi 0, %s84
      %s85 = sphi 0, %s82
      %s86 = sphi 0, %s85
      %s102 = sphi 0, %s86
      %s108 = sphi 0, %s110
      %s111 = sphi 0, %s108
      %s112 = sphi 0, %s111
      %s128 = sphi 0, %s112
      %s134 = sphi 0, %s136
      %s137 = sphi 0, %s134
      %s138 = sphi 0, %s137
      %s154 = sphi 0, %s138
      %s158 = sphi 0, %s158
      %s160 = sphi 0, %s158
      %s161 = sphi 0, %s160
      %s175 = sphi 0, %s161
      %s179 = sphi 0, %s179
      %s181 = sphi 0, %s179
      %s182 = sphi 0, %s181
      %s196 = sphi 0, %s182
      %s200 = sphi 0, %s200
      %s202 = sphi 0, %s200
      %s203 = sphi 0, %s202
      %s217 = sphi 0, %s203
      %s221 = sphi 0, %s221
      %s223 = sphi 0, %s221
      %s224 = sphi 0, %s223
      %s238 = sphi 0, %s224
      %s242 = sphi 0, %s242
      %s244 = sphi 0, %s242
      %s245 = sphi 0, %s244
      %s259 = sphi 0, %s245
      %s263 = sphi 0, %s263
      %s265 = sphi 0, %s263
      %s266 = sphi 0, %s265
      %s280 = sphi 0, %s266
      %s286 = sphi 0, %s288
      %s289 = sphi 0, %s286
      %s290 = sphi 0, %s289
      %s306 = sphi 0, %s290
    $region4: #{tpu_custom_call.1} parent=1 // loop_header_branch
      %23 = sbr.rel (%p21) target = $region8
    $region5: #{tpu_custom_call.1} parent=1 // loop_body
      %s25 = ssub.s32 %s20, 1
      %s26 = ssub.s32 %s20, 2
      %s27 = sadd.s32 %s20, 1
      %s28 = ssub.s32 %s20, %s27
      %p29 = scmp.eq.s32.totalorder %s28, 0
      %s31 = sadd.s32 %s30, 1
      %s32 = scalar_select %p29, %s30, %s31
      %p35 = pneg %p29
      %p36 = scmp.eq.s32.totalorder %s20, 1
      %p37 = por %p35, %p36
      %p38 = scmp.ne.s32.totalorder %s30, %s33
      %p39 = scmp.eq.s32.totalorder %s20, 0
      %p40 = por %p38, %p39
      %p41 = scmp.ne.s32.totalorder %s30, %s33
      %p42 = scmp.eq.s32.totalorder %s25, 1
      %p43 = por %p41, %p42
      %p44 = scmp.ne.s32.totalorder %s33, %s34
      %p45 = scmp.eq.s32.totalorder %s25, 0
      %p46 = por %p44, %p45
      %p47 = scmp.ne.s32.totalorder %s33, %s34
      %p48 = scmp.eq.s32.totalorder %s26, 1
      %p49 = por %p47, %p48
      %p51 = scmp.ne.s32.totalorder %s34, %s50
      %p52 = scmp.eq.s32.totalorder %s26, 0
      %p53 = por %p51, %p52
      %s54 = ssub.s32 %s20, %s27
      %p55 = scmp.eq.s32.totalorder %s54, 0
      %s57 = sadd.s32 %s56, 1
      %s58 = scalar_select %p55, %s56, %s57
      %p61 = pneg %p55
      %p62 = scmp.eq.s32.totalorder %s20, 1
      %p63 = por %p61, %p62
      %p64 = scmp.ne.s32.totalorder %s56, %s59
      %p65 = scmp.eq.s32.totalorder %s20, 0
      %p66 = por %p64, %p65
      %p67 = scmp.ne.s32.totalorder %s56, %s59
      %p68 = scmp.eq.s32.totalorder %s25, 1
      %p69 = por %p67, %p68
      %p70 = scmp.ne.s32.totalorder %s59, %s60
      %p71 = scmp.eq.s32.totalorder %s25, 0
      %p72 = por %p70, %p71
      %p73 = scmp.ne.s32.totalorder %s59, %s60
      %p74 = scmp.eq.s32.totalorder %s26, 1
      %p75 = por %p73, %p74
      %p77 = scmp.ne.s32.totalorder %s60, %s76
      %p78 = scmp.eq.s32.totalorder %s26, 0
      %p79 = por %p77, %p78
      %s80 = ssub.s32 %s20, %s27
      %p81 = scmp.eq.s32.totalorder %s80, 0
      %s83 = sadd.s32 %s82, 1
      %s84 = scalar_select %p81, %s82, %s83
      %p87 = pneg %p81
      %p88 = scmp.eq.s32.totalorder %s20, 1
      %p89 = por %p87, %p88
      %p90 = scmp.ne.s32.totalorder %s82, %s85
      %p91 = scmp.eq.s32.totalorder %s20, 0
      %p92 = por %p90, %p91
      %p93 = scmp.ne.s32.totalorder %s82, %s85
      %p94 = scmp.eq.s32.totalorder %s25, 1
      %p95 = por %p93, %p94
      %p96 = scmp.ne.s32.totalorder %s85, %s86
      %p97 = scmp.eq.s32.totalorder %s25, 0
      %p98 = por %p96, %p97
      %p99 = scmp.ne.s32.totalorder %s85, %s86
      %p100 = scmp.eq.s32.totalorder %s26, 1
      %p101 = por %p99, %p100
      %p103 = scmp.ne.s32.totalorder %s86, %s102
      %p104 = scmp.eq.s32.totalorder %s26, 0
      %p105 = por %p103, %p104
      %s106 = ssub.s32 %s20, %s27
      %p107 = scmp.eq.s32.totalorder %s106, 0
      %s109 = sadd.s32 %s108, 1
      %s110 = scalar_select %p107, %s108, %s109
      %p113 = pneg %p107
      %p114 = scmp.eq.s32.totalorder %s20, 1
      %p115 = por %p113, %p114
      %p116 = scmp.ne.s32.totalorder %s108, %s111
      %p117 = scmp.eq.s32.totalorder %s20, 0
      %p118 = por %p116, %p117
      %p119 = scmp.ne.s32.totalorder %s108, %s111
      %p120 = scmp.eq.s32.totalorder %s25, 1
      %p121 = por %p119, %p120
      %p122 = scmp.ne.s32.totalorder %s111, %s112
      %p123 = scmp.eq.s32.totalorder %s25, 0
      %p124 = por %p122, %p123
      %p125 = scmp.ne.s32.totalorder %s111, %s112
      %p126 = scmp.eq.s32.totalorder %s26, 1
      %p127 = por %p125, %p126
      %p129 = scmp.ne.s32.totalorder %s112, %s128
      %p130 = scmp.eq.s32.totalorder %s26, 0
      %p131 = por %p129, %p130
      %s132 = ssub.s32 %s20, %s27
      %p133 = scmp.eq.s32.totalorder %s132, 0
      %s135 = sadd.s32 %s134, 1
      %s136 = scalar_select %p133, %s134, %s135
      %p139 = pneg %p133
      %p140 = scmp.eq.s32.totalorder %s20, 1
      %p141 = por %p139, %p140
      %p142 = scmp.ne.s32.totalorder %s134, %s137
      %p143 = scmp.eq.s32.totalorder %s20, 0
      %p144 = por %p142, %p143
      %p145 = scmp.ne.s32.totalorder %s134, %s137
      %p146 = scmp.eq.s32.totalorder %s25, 1
      %p147 = por %p145, %p146
      %p148 = scmp.ne.s32.totalorder %s137, %s138
      %p149 = scmp.eq.s32.totalorder %s25, 0
      %p150 = por %p148, %p149
      %p151 = scmp.ne.s32.totalorder %s137, %s138
      %p152 = scmp.eq.s32.totalorder %s26, 1
      %p153 = por %p151, %p152
      %p155 = scmp.ne.s32.totalorder %s138, %s154
      %p156 = scmp.eq.s32.totalorder %s26, 0
      %p157 = por %p155, %p156
      %s159 = sadd.s32 %s158, 1
      %p162 = scmp.eq.s32.totalorder %s20, 1
      %p163 = scmp.ne.s32.totalorder %s158, %s160
      %p164 = scmp.eq.s32.totalorder %s20, 0
      %p165 = por %p163, %p164
      %p166 = scmp.ne.s32.totalorder %s158, %s160
      %p167 = scmp.eq.s32.totalorder %s25, 1
      %p168 = por %p166, %p167
      %p169 = scmp.ne.s32.totalorder %s160, %s161
      %p170 = scmp.eq.s32.totalorder %s25, 0
      %p171 = por %p169, %p170
      %p172 = scmp.ne.s32.totalorder %s160, %s161
      %p173 = scmp.eq.s32.totalorder %s26, 1
      %p174 = por %p172, %p173
      %p176 = scmp.ne.s32.totalorder %s161, %s175
      %p177 = scmp.eq.s32.totalorder %s26, 0
      %p178 = por %p176, %p177
      %s180 = sadd.s32 %s179, 1
      %p183 = scmp.eq.s32.totalorder %s20, 1
      %p184 = scmp.ne.s32.totalorder %s179, %s181
      %p185 = scmp.eq.s32.totalorder %s20, 0
      %p186 = por %p184, %p185
      %p187 = scmp.ne.s32.totalorder %s179, %s181
      %p188 = scmp.eq.s32.totalorder %s25, 1
      %p189 = por %p187, %p188
      %p190 = scmp.ne.s32.totalorder %s181, %s182
      %p191 = scmp.eq.s32.totalorder %s25, 0
      %p192 = por %p190, %p191
      %p193 = scmp.ne.s32.totalorder %s181, %s182
      %p194 = scmp.eq.s32.totalorder %s26, 1
      %p195 = por %p193, %p194
      %p197 = scmp.ne.s32.totalorder %s182, %s196
      %p198 = scmp.eq.s32.totalorder %s26, 0
      %p199 = por %p197, %p198
      %s201 = sadd.s32 %s200, 1
      %p204 = scmp.eq.s32.totalorder %s20, 1
      %p205 = scmp.ne.s32.totalorder %s200, %s202
      %p206 = scmp.eq.s32.totalorder %s20, 0
      %p207 = por %p205, %p206
      %p208 = scmp.ne.s32.totalorder %s200, %s202
      %p209 = scmp.eq.s32.totalorder %s25, 1
      %p210 = por %p208, %p209
      %p211 = scmp.ne.s32.totalorder %s202, %s203
      %p212 = scmp.eq.s32.totalorder %s25, 0
      %p213 = por %p211, %p212
      %p214 = scmp.ne.s32.totalorder %s202, %s203
      %p215 = scmp.eq.s32.totalorder %s26, 1
      %p216 = por %p214, %p215
      %p218 = scmp.ne.s32.totalorder %s203, %s217
      %p219 = scmp.eq.s32.totalorder %s26, 0
      %p220 = por %p218, %p219
      %s222 = sadd.s32 %s221, 1
      %p225 = scmp.eq.s32.totalorder %s20, 1
      %p226 = scmp.ne.s32.totalorder %s221, %s223
      %p227 = scmp.eq.s32.totalorder %s20, 0
      %p228 = por %p226, %p227
      %p229 = scmp.ne.s32.totalorder %s221, %s223
      %p230 = scmp.eq.s32.totalorder %s25, 1
      %p231 = por %p229, %p230
      %p232 = scmp.ne.s32.totalorder %s223, %s224
      %p233 = scmp.eq.s32.totalorder %s25, 0
      %p234 = por %p232, %p233
      %p235 = scmp.ne.s32.totalorder %s223, %s224
      %p236 = scmp.eq.s32.totalorder %s26, 1
      %p237 = por %p235, %p236
      %p239 = scmp.ne.s32.totalorder %s224, %s238
      %p240 = scmp.eq.s32.totalorder %s26, 0
      %p241 = por %p239, %p240
      %s243 = sadd.s32 %s242, 1
      %p246 = scmp.eq.s32.totalorder %s20, 1
      %p247 = scmp.ne.s32.totalorder %s242, %s244
      %p248 = scmp.eq.s32.totalorder %s20, 0
      %p249 = por %p247, %p248
      %p250 = scmp.ne.s32.totalorder %s242, %s244
      %p251 = scmp.eq.s32.totalorder %s25, 1
      %p252 = por %p250, %p251
      %p253 = scmp.ne.s32.totalorder %s244, %s245
      %p254 = scmp.eq.s32.totalorder %s25, 0
      %p255 = por %p253, %p254
      %p256 = scmp.ne.s32.totalorder %s244, %s245
      %p257 = scmp.eq.s32.totalorder %s26, 1
      %p258 = por %p256, %p257
      %p260 = scmp.ne.s32.totalorder %s245, %s259
      %p261 = scmp.eq.s32.totalorder %s26, 0
      %p262 = por %p260, %p261
      %s264 = sadd.s32 %s263, 1
      %p267 = scmp.eq.s32.totalorder %s20, 1
      %p268 = scmp.ne.s32.totalorder %s263, %s265
      %p269 = scmp.eq.s32.totalorder %s20, 0
      %p270 = por %p268, %p269
      %p271 = scmp.ne.s32.totalorder %s263, %s265
      %p272 = scmp.eq.s32.totalorder %s25, 1
      %p273 = por %p271, %p272
      %p274 = scmp.ne.s32.totalorder %s265, %s266
      %p275 = scmp.eq.s32.totalorder %s25, 0
      %p276 = por %p274, %p275
      %p277 = scmp.ne.s32.totalorder %s265, %s266
      %p278 = scmp.eq.s32.totalorder %s26, 1
      %p279 = por %p277, %p278
      %p281 = scmp.ne.s32.totalorder %s266, %s280
      %p282 = scmp.eq.s32.totalorder %s26, 0
      %p283 = por %p281, %p282
      %s284 = ssub.s32 %s20, %s27
      %p285 = scmp.eq.s32.totalorder %s284, 0
      %s287 = sadd.s32 %s286, 1
      %s288 = scalar_select %p285, %s286, %s287
      %p291 = pneg %p285
      %p292 = scmp.eq.s32.totalorder %s20, 1
      %p293 = por %p291, %p292
      %p294 = scmp.ne.s32.totalorder %s286, %s289
      %p295 = scmp.eq.s32.totalorder %s20, 0
      %p296 = por %p294, %p295
      %p297 = scmp.ne.s32.totalorder %s286, %s289
      %p298 = scmp.eq.s32.totalorder %s25, 1
      %p299 = por %p297, %p298
      %p300 = scmp.ne.s32.totalorder %s289, %s290
      %p301 = scmp.eq.s32.totalorder %s25, 0
      %p302 = por %p300, %p301
      %p303 = scmp.ne.s32.totalorder %s289, %s290
      %p304 = scmp.eq.s32.totalorder %s26, 1
      %p305 = por %p303, %p304
      %p307 = scmp.ne.s32.totalorder %s290, %s306
      %p308 = scmp.eq.s32.totalorder %s26, 0
      %p309 = por %p307, %p308
      %p310 = scmp.le.s32.totalorder 1, %s20
      %p311 = scmp.lt.s32.totalorder %s20, 3
      %p312 = pnand %p310, %p311
      %p313 = pneg %p312
      // Predicated region
      $region9: #{tpu_custom_call.1} parent=5 // pred_check
        _
      $region10: #{tpu_custom_call.1} parent=5 // pred_check_branch
        %315 = sbr.rel (%p312) target = $region12
      $region11: #{tpu_custom_call.1} parent=5 // pred_region
        %s316 = ssub.s32 %s20, 1
        // Predicated region
        $region13: #{tpu_custom_call.1} parent=11 // pred_check
          %p317 = pneg %p171
        $region14: #{tpu_custom_call.1} parent=11 // pred_check_branch
          %319 = sbr.rel (%p317) target = $region16
        $region15: #{tpu_custom_call.1} parent=11 // pred_region
          _
        $region16: #{tpu_custom_call.1} parent=11 // pred_fallthru
          _
        // Predicated region
        $region17: #{tpu_custom_call.1} parent=11 // pred_check
          %p320 = pneg %p192
        $region18: #{tpu_custom_call.1} parent=11 // pred_check_branch
          %322 = sbr.rel (%p320) target = $region20
        $region19: #{tpu_custom_call.1} parent=11 // pred_region
          _
        $region20: #{tpu_custom_call.1} parent=11 // pred_fallthru
          _
        // Predicated region
        $region21: #{tpu_custom_call.1} parent=11 // pred_check
          %p323 = pneg %p213
        $region22: #{tpu_custom_call.1} parent=11 // pred_check_branch
          %325 = sbr.rel (%p323) target = $region24
        $region23: #{tpu_custom_call.1} parent=11 // pred_region
          _
        $region24: #{tpu_custom_call.1} parent=11 // pred_fallthru
          _
        // Predicated region
        $region25: #{tpu_custom_call.1} parent=11 // pred_check
          %p326 = pneg %p234
        $region26: #{tpu_custom_call.1} parent=11 // pred_check_branch
          %328 = sbr.rel (%p326) target = $region28
        $region27: #{tpu_custom_call.1} parent=11 // pred_region
          _
        $region28: #{tpu_custom_call.1} parent=11 // pred_fallthru
          _
        // Predicated region
        $region29: #{tpu_custom_call.1} parent=11 // pred_check
          %p329 = pneg %p255
        $region30: #{tpu_custom_call.1} parent=11 // pred_check_branch
          %331 = sbr.rel (%p329) target = $region32
        $region31: #{tpu_custom_call.1} parent=11 // pred_region
          _
        $region32: #{tpu_custom_call.1} parent=11 // pred_fallthru
          _
        // Predicated region
        $region33: #{tpu_custom_call.1} parent=11 // pred_check
          %p332 = pneg %p276
        $region34: #{tpu_custom_call.1} parent=11 // pred_check_branch
          %334 = sbr.rel (%p332) target = $region36
        $region35: #{tpu_custom_call.1} parent=11 // pred_region
          _
        $region36: #{tpu_custom_call.1} parent=11 // pred_fallthru
          _
      $region12: #{tpu_custom_call.1} parent=5 // pred_fallthru
        _
      %p335 = scmp.lt.s32.totalorder %s20, 2
      // Predicated region
      $region37: #{tpu_custom_call.1} parent=5 // pred_check
        %p336 = pneg %p335
      $region38: #{tpu_custom_call.1} parent=5 // pred_check_branch
        %338 = sbr.rel (%p336) target = $region40
      $region39: #{tpu_custom_call.1} parent=5 // pred_region
        // Predicated region
        $region41: #{tpu_custom_call.1} parent=39 // pred_check
          %p339 = pneg %p40
        $region42: #{tpu_custom_call.1} parent=39 // pred_check_branch
          %341 = sbr.rel (%p339) target = $region44
        $region43: #{tpu_custom_call.1} parent=39 // pred_region
          %p342 = scmp.lt.s32.totalorder %s20, 1
          %s343 = scalar_select %p342, %s20, 1
          %s344 = smul.addr %s343, 8
          %s345 = smul.addr %s344, 4
          %s346 = scalar_lea.vmem %s0, %s345
        $region44: #{tpu_custom_call.1} parent=39 // pred_fallthru
          _
        // Predicated region
        $region45: #{tpu_custom_call.1} parent=39 // pred_check
          %p347 = pneg %p66
        $region46: #{tpu_custom_call.1} parent=39 // pred_check_branch
          %349 = sbr.rel (%p347) target = $region48
        $region47: #{tpu_custom_call.1} parent=39 // pred_region
          %p350 = scmp.lt.s32.totalorder %s20, 1
          %s351 = scalar_select %p350, %s20, 1
          %s352 = smul.addr %s351, 8
          %s353 = smul.addr %s352, 4
          %s354 = scalar_lea.vmem %s1, %s353
        $region48: #{tpu_custom_call.1} parent=39 // pred_fallthru
          _
        // Predicated region
        $region49: #{tpu_custom_call.1} parent=39 // pred_check
          %p355 = pneg %p92
        $region50: #{tpu_custom_call.1} parent=39 // pred_check_branch
          %357 = sbr.rel (%p355) target = $region52
        $region51: #{tpu_custom_call.1} parent=39 // pred_region
          %p358 = scmp.lt.s32.totalorder %s20, 1
          %s359 = scalar_select %p358, %s20, 1
          %s360 = smul.addr %s359, 8
          %s361 = smul.addr %s360, 8
          %s362 = scalar_lea.vmem %s2, %s361
        $region52: #{tpu_custom_call.1} parent=39 // pred_fallthru
          _
        // Predicated region
        $region53: #{tpu_custom_call.1} parent=39 // pred_check
          %p363 = pneg %p118
        $region54: #{tpu_custom_call.1} parent=39 // pred_check_branch
          %365 = sbr.rel (%p363) target = $region56
        $region55: #{tpu_custom_call.1} parent=39 // pred_region
          %p366 = scmp.lt.s32.totalorder %s20, 1
          %s367 = scalar_select %p366, %s20, 1
          %s368 = smul.addr %s367, 8
          %s369 = smul.addr %s368, 8
          %s370 = scalar_lea.vmem %s3, %s369
        $region56: #{tpu_custom_call.1} parent=39 // pred_fallthru
          _
        // Predicated region
        $region57: #{tpu_custom_call.1} parent=39 // pred_check
          %p371 = pneg %p144
        $region58: #{tpu_custom_call.1} parent=39 // pred_check_branch
          %373 = sbr.rel (%p371) target = $region60
        $region59: #{tpu_custom_call.1} parent=39 // pred_region
          %p374 = scmp.lt.s32.totalorder %s20, 1
          %s375 = scalar_select %p374, %s20, 1
          %s376 = scalar_lea.vmem %s4, %s375
        $region60: #{tpu_custom_call.1} parent=39 // pred_fallthru
          _
      $region40: #{tpu_custom_call.1} parent=5 // pred_fallthru
        _
      %p377 = scmp.le.s32.totalorder 1, %s20
      %p378 = scmp.lt.s32.totalorder %s20, 3
      %p379 = pnand %p377, %p378
      %p380 = pneg %p379
      // Predicated region
      $region61: #{tpu_custom_call.1} parent=5 // pred_check
        _
      $region62: #{tpu_custom_call.1} parent=5 // pred_check_branch
        %382 = sbr.rel (%p379) target = $region64
      $region63: #{tpu_custom_call.1} parent=5 // pred_region
        %s383 = ssub.s32 %s20, 1
        %p384 = scmp.lt.s32.totalorder %s25, 1
        %s385 = scalar_select %p384, %s25, 1
        %s386 = smul.addr %s385, 8
        %s387 = smul.addr %s386, 4
        %s388 = scalar_lea.vmem %s0, %s387
        %p389 = pneg %p46
        %p390 = pneg %p43
        %p391 = scmp.lt.s32.totalorder %s25, 1
        %s392 = scalar_select %p391, %s25, 1
        %s393 = smul.addr %s392, 8
        %s394 = smul.addr %s393, 4
        %s395 = scalar_lea.vmem %s1, %s394
        %p396 = pneg %p72
        %p397 = pneg %p69
        %p398 = scmp.lt.s32.totalorder %s25, 1
        %s399 = scalar_select %p398, %s25, 1
        %s400 = smul.addr %s399, 8
        %s401 = smul.addr %s400, 8
        %s402 = scalar_lea.vmem %s2, %s401
        %p403 = pneg %p98
        %p404 = pneg %p95
        %p405 = scmp.lt.s32.totalorder %s25, 1
        %s406 = scalar_select %p405, %s25, 1
        %s407 = smul.addr %s406, 8
        %s408 = smul.addr %s407, 8
        %s409 = scalar_lea.vmem %s3, %s408
        %p410 = pneg %p124
        %p411 = pneg %p121
        %p412 = scmp.lt.s32.totalorder %s25, 1
        %s413 = scalar_select %p412, %s25, 1
        %s414 = scalar_lea.vmem %s4, %s413
        %p415 = pneg %p150
        %p416 = pneg %p147
        %p417 = pneg %p171
        %p418 = pneg %p168
        %p419 = pneg %p192
        %p420 = pneg %p189
        %p421 = pneg %p213
        %p422 = pneg %p210
        %p423 = pneg %p234
        %p424 = pneg %p231
        %p425 = pneg %p255
        %p426 = pneg %p252
        %p427 = pneg %p276
        %p428 = pneg %p273
        %p429 = pneg %p302
        %p430 = pneg %p299
        %s431 = sand.u32 %s289, 1
        %s432 = scalar_lea.sflag [#allocation3], %s431
        %s433 = sand.u32 %s289, 1
        %s434 = smul.addr %s433, 64
        %s435 = scalar_lea.vmem [#allocation2], %s434
        %p436 = scmp.lt.s32.totalorder %s25, 1
        %s437 = scalar_select %p436, %s25, 1
        %s438 = smul.addr %s437, 8
        %s439 = smul.addr %s438, 4
        %s440 = scalar_lea.vmem %s0, %s439
        %p441 = scmp.lt.s32.totalorder %s25, 1
        %s442 = scalar_select %p441, %s25, 1
        %s443 = smul.addr %s442, 8
        %s444 = smul.addr %s443, 4
        %s445 = scalar_lea.vmem %s1, %s444
        %p446 = scmp.lt.s32.totalorder %s25, 1
        %s447 = scalar_select %p446, %s25, 1
        %s448 = smul.addr %s447, 8
        %s449 = smul.addr %s448, 8
        %s450 = scalar_lea.vmem %s2, %s449
        %p451 = scmp.lt.s32.totalorder %s25, 1
        %s452 = scalar_select %p451, %s25, 1
        %s453 = smul.addr %s452, 8
        %s454 = smul.addr %s453, 8
        %s455 = scalar_lea.vmem %s3, %s454
        %p456 = scmp.lt.s32.totalorder %s25, 1
        %s457 = scalar_select %p456, %s25, 1
        %s458 = scalar_lea.vmem %s4, %s457
        %v460 = vld [vmem:[%s440] sm:$0xf]
        %v461 = vld [vmem:[%s440 + $0x4] sm:$0xf]
        %v462 = vld [vmem:[%s440 + $0x8] sm:$0xf]
        %v463 = vld [vmem:[%s440 + $0xc] sm:$0xf]
        %v464 = vld [vmem:[%s440 + $0x10] sm:$0xf]
        %v465 = vld [vmem:[%s440 + $0x14] sm:$0xf]
        %v466 = vld [vmem:[%s440 + $0x18] sm:$0xf]
        %v467 = vld [vmem:[%s440 + $0x1c] sm:$0xf]
        %v468 = vld [vmem:[%s445] sm:$0xf]
        %v469 = vld [vmem:[%s445 + $0x4] sm:$0xf]
        %v470 = vld [vmem:[%s445 + $0x8] sm:$0xf]
        %v471 = vld [vmem:[%s445 + $0xc] sm:$0xf]
        %v472 = vld [vmem:[%s445 + $0x10] sm:$0xf]
        %v473 = vld [vmem:[%s445 + $0x14] sm:$0xf]
        %v474 = vld [vmem:[%s445 + $0x18] sm:$0xf]
        %v475 = vld [vmem:[%s445 + $0x1c] sm:$0xf]
        %v476 = vld [vmem:[%s450] sm:$0xff]
        %v477 = vld [vmem:[%s450 + $0x8] sm:$0xff]
        %v478 = vld [vmem:[%s450 + $0x10] sm:$0xff]
        %v479 = vld [vmem:[%s450 + $0x18] sm:$0xff]
        %v480 = vld [vmem:[%s450 + $0x20] sm:$0xff]
        %v481 = vld [vmem:[%s450 + $0x28] sm:$0xff]
        %v482 = vld [vmem:[%s450 + $0x30] sm:$0xff]
        %v483 = vld [vmem:[%s450 + $0x38] sm:$0xff]
        %v484 = vld [vmem:[%s455] sm:$0xff]
        %v485 = vld [vmem:[%s455 + $0x8] sm:$0xff]
        %v486 = vld [vmem:[%s455 + $0x10] sm:$0xff]
        %v487 = vld [vmem:[%s455 + $0x18] sm:$0xff]
        %v488 = vld [vmem:[%s455 + $0x20] sm:$0xff]
        %v489 = vld [vmem:[%s455 + $0x28] sm:$0xff]
        %v490 = vld [vmem:[%s455 + $0x30] sm:$0xff]
        %v491 = vld [vmem:[%s455 + $0x38] sm:$0xff]
        %v492 = vld [vmem:[%s458] sm:$0x1]
        %v493 = vld [vmem:[%s7] sm:$0xf]
        %v494 = vld [vmem:[%s7 + $0x4] sm:$0xf]
        %v495 = vld [vmem:[%s7 + $0x8] sm:$0xf]
        %v496 = vld [vmem:[%s7 + $0xc] sm:$0xf]
        %v505 = vunpack.c.l.b16 %v460
        %v506 = vunpack.c.l.b16 %v461
        %v507 = vunpack.c.l.b16 %v462
        %v508 = vunpack.c.l.b16 %v463
        %v509 = vunpack.c.l.b16 %v464
        %v510 = vunpack.c.l.b16 %v465
        %v511 = vunpack.c.l.b16 %v466
        %v512 = vunpack.c.l.b16 %v467
        %v513 = vpack.c.b16 %v506, %v505
        %v514 = vpack.c.b16 %v508, %v507
        %v515 = vpack.c.b16 %v510, %v509
        %v516 = vpack.c.b16 %v512, %v511
        %v521 = vunpack.c.l.b16 %v493
        %v522 = vunpack.c.l.b16 %v494
        %v523 = vunpack.c.l.b16 %v495
        %v524 = vunpack.c.l.b16 %v496
        %v525 = vpack.c.b16 %v522, %v521
        %v526 = vpack.c.b16 %v524, %v523
        %vm529 = vcmask 261120
        %v531 = vsel %vm529, %v513, 0
        %v534 = vsel %vm529, %v514, 0
        %v537 = vsel %vm529, %v515, 0
        %v540 = vsel %vm529, %v516, 0
        %542 = vmatpush.bf16.msra.mxu0 0
        %543 = vmatpush.bf16.msra.mxu0 0
        %544 = vmatpush.bf16.msra.mxu0 0
        %545 = vmatpush.bf16.msra.mxu0 0
        %546 = vmatpush.bf16.msra.mxu0 0
        %547 = vmatpush.bf16.msra.mxu0 0
        %548 = vmatpush.bf16.msra.mxu0 %v526
        %549 = vmatpush.bf16.msra.mxu0 %v525
        %550 = vmatmul.bf16.gmra.mxu0 %v531
        %v551 = vpop.f32.mrf.mxu0
        %v552 = vadd.f32 0.0, %v551
        %v553 = vpop.f32.mrf.mxu0
        %v554 = vadd.f32 0.0, %v553
        %555 = vmatmul.bf16.gmra.mxu0 %v534
        %v556 = vpop.f32.mrf.mxu0
        %v557 = vadd.f32 0.0, %v556
        %v558 = vpop.f32.mrf.mxu0
        %v559 = vadd.f32 0.0, %v558
        %560 = vmatmul.bf16.gmra.mxu0 %v537
        %v561 = vpop.f32.mrf.mxu0
        %v562 = vadd.f32 0.0, %v561
        %v563 = vpop.f32.mrf.mxu0
        %v564 = vadd.f32 0.0, %v563
        %565 = vmatmul.bf16.gmra.mxu0 %v540
        %v566 = vpop.f32.mrf.mxu0
        %v567 = vadd.f32 0.0, %v566
        %v568 = vpop.f32.mrf.mxu0
        %v569 = vadd.f32 0.0, %v568
        %570 = vdwg.mxu0
        %572 = vset.pattern.permute.xlu0 0
        %573 = vperm.xlu0 %572, %v476
        %v574 = vpop.permute.xlu0 %573
        %577 = vset.pattern.permute.xlu0 0
        %578 = vperm.xlu0 %577, %v477
        %v579 = vpop.permute.xlu0 %578
        %582 = vset.pattern.permute.xlu0 0
        %583 = vperm.xlu0 %582, %v478
        %v584 = vpop.permute.xlu0 %583
        %587 = vset.pattern.permute.xlu0 0
        %588 = vperm.xlu0 %587, %v479
        %v589 = vpop.permute.xlu0 %588
        %592 = vset.pattern.permute.xlu0 0
        %593 = vperm.xlu0 %592, %v480
        %v594 = vpop.permute.xlu0 %593
        %597 = vset.pattern.permute.xlu0 0
        %598 = vperm.xlu0 %597, %v481
        %v599 = vpop.permute.xlu0 %598
        %602 = vset.pattern.permute.xlu0 0
        %603 = vperm.xlu0 %602, %v482
        %v604 = vpop.permute.xlu0 %603
        %607 = vset.pattern.permute.xlu0 0
        %608 = vperm.xlu0 %607, %v483
        %v609 = vpop.permute.xlu0 %608
        %v611 = vmul.f32 %v552, %v574
        %v612 = vmul.f32 %v554, %v579
        %v613 = vmul.f32 %v557, %v584
        %v614 = vmul.f32 %v559, %v589
        %v615 = vmul.f32 %v562, %v594
        %v616 = vmul.f32 %v564, %v599
        %v617 = vmul.f32 %v567, %v604
        %v618 = vmul.f32 %v569, %v609
        %v619 = vld [vmem:[%s8] sm:$0xf]
        %v620 = vld [vmem:[%s8 + $0x4] sm:$0xf]
        %v621 = vld [vmem:[%s8 + $0x8] sm:$0xf]
        %v622 = vld [vmem:[%s8 + $0xc] sm:$0xf]
        %v631 = vunpack.c.l.b16 %v468
        %v632 = vunpack.c.l.b16 %v469
        %v633 = vunpack.c.l.b16 %v470
        %v634 = vunpack.c.l.b16 %v471
        %v635 = vunpack.c.l.b16 %v472
        %v636 = vunpack.c.l.b16 %v473
        %v637 = vunpack.c.l.b16 %v474
        %v638 = vunpack.c.l.b16 %v475
        %v639 = vpack.c.b16 %v632, %v631
        %v640 = vpack.c.b16 %v634, %v633
        %v641 = vpack.c.b16 %v636, %v635
        %v642 = vpack.c.b16 %v638, %v637
        %v647 = vunpack.c.l.b16 %v619
        %v648 = vunpack.c.l.b16 %v620
        %v649 = vunpack.c.l.b16 %v621
        %v650 = vunpack.c.l.b16 %v622
        %v651 = vpack.c.b16 %v648, %v647
        %v652 = vpack.c.b16 %v650, %v649
        %v656 = vsel %vm529, %v639, 0
        %v659 = vsel %vm529, %v640, 0
        %v662 = vsel %vm529, %v641, 0
        %v665 = vsel %vm529, %v642, 0
        %667 = vmatpush.bf16.msra.mxu0 0
        %668 = vmatpush.bf16.msra.mxu0 0
        %669 = vmatpush.bf16.msra.mxu0 0
        %670 = vmatpush.bf16.msra.mxu0 0
        %671 = vmatpush.bf16.msra.mxu0 0
        %672 = vmatpush.bf16.msra.mxu0 0
        %673 = vmatpush.bf16.msra.mxu0 %v652
        %674 = vmatpush.bf16.msra.mxu0 %v651
        %675 = vmatmul.bf16.gmra.mxu0 %v656
        %v676 = vpop.f32.mrf.mxu0
        %v677 = vadd.f32 0.0, %v676
        %v678 = vpop.f32.mrf.mxu0
        %v679 = vadd.f32 0.0, %v678
        %680 = vmatmul.bf16.gmra.mxu0 %v659
        %v681 = vpop.f32.mrf.mxu0
        %v682 = vadd.f32 0.0, %v681
        %v683 = vpop.f32.mrf.mxu0
        %v684 = vadd.f32 0.0, %v683
        %685 = vmatmul.bf16.gmra.mxu0 %v662
        %v686 = vpop.f32.mrf.mxu0
        %v687 = vadd.f32 0.0, %v686
        %v688 = vpop.f32.mrf.mxu0
        %v689 = vadd.f32 0.0, %v688
        %690 = vmatmul.bf16.gmra.mxu0 %v665
        %v691 = vpop.f32.mrf.mxu0
        %v692 = vadd.f32 0.0, %v691
        %v693 = vpop.f32.mrf.mxu0
        %v694 = vadd.f32 0.0, %v693
        %695 = vdwg.mxu0
        %697 = vset.pattern.permute.xlu0 0
        %698 = vperm.xlu0 %697, %v484
        %v699 = vpop.permute.xlu0 %698
        %702 = vset.pattern.permute.xlu0 0
        %703 = vperm.xlu0 %702, %v485
        %v704 = vpop.permute.xlu0 %703
        %707 = vset.pattern.permute.xlu0 0
        %708 = vperm.xlu0 %707, %v486
        %v709 = vpop.permute.xlu0 %708
        %712 = vset.pattern.permute.xlu0 0
        %713 = vperm.xlu0 %712, %v487
        %v714 = vpop.permute.xlu0 %713
        %717 = vset.pattern.permute.xlu0 0
        %718 = vperm.xlu0 %717, %v488
        %v719 = vpop.permute.xlu0 %718
        %722 = vset.pattern.permute.xlu0 0
        %723 = vperm.xlu0 %722, %v489
        %v724 = vpop.permute.xlu0 %723
        %727 = vset.pattern.permute.xlu0 0
        %728 = vperm.xlu0 %727, %v490
        %v729 = vpop.permute.xlu0 %728
        %732 = vset.pattern.permute.xlu0 0
        %733 = vperm.xlu0 %732, %v491
        %v734 = vpop.permute.xlu0 %733
        %v736 = vmul.f32 %v677, %v699
        %v737 = vmul.f32 %v679, %v704
        %v738 = vmul.f32 %v682, %v709
        %v739 = vmul.f32 %v684, %v714
        %v740 = vmul.f32 %v687, %v719
        %v741 = vmul.f32 %v689, %v724
        %v742 = vmul.f32 %v692, %v729
        %v743 = vmul.f32 %v694, %v734
        %v744 = vpack.c.bf16 %v611, %v611
        %v745 = vpack.c.bf16 %v612, %v612
        %v746 = vpack.c.bf16 %v613, %v613
        %v747 = vpack.c.bf16 %v614, %v614
        %v748 = vpack.c.bf16 %v615, %v615
        %v749 = vpack.c.bf16 %v616, %v616
        %v750 = vpack.c.bf16 %v617, %v617
        %v751 = vpack.c.bf16 %v618, %v618
        %v752 = vpack.c.bf16 %v736, %v736
        %v753 = vpack.c.bf16 %v737, %v737
        %v754 = vpack.c.bf16 %v738, %v738
        %v755 = vpack.c.bf16 %v739, %v739
        %v756 = vpack.c.bf16 %v740, %v740
        %v757 = vpack.c.bf16 %v741, %v741
        %v758 = vpack.c.bf16 %v742, %v742
        %v759 = vpack.c.bf16 %v743, %v743
        %v760 = vld [vmem:[%s5] sm:$0xf]
        %v769 = vunpack.c.l.b16 %v744
        %v770 = vunpack.c.l.b16 %v745
        %v771 = vunpack.c.l.b16 %v746
        %v772 = vunpack.c.l.b16 %v747
        %v773 = vunpack.c.l.b16 %v748
        %v774 = vunpack.c.l.b16 %v749
        %v775 = vunpack.c.l.b16 %v750
        %v776 = vunpack.c.l.b16 %v751
        %v777 = vpack.c.b16 %v770, %v769
        %v778 = vpack.c.b16 %v772, %v771
        %v779 = vpack.c.b16 %v774, %v773
        %v780 = vpack.c.b16 %v776, %v775
        %vm785 = vcmask 523264
        %v787 = vsel %vm785, %v760, 0
        %789 = vmatpush.bf16.msra.mxu0 0
        %790 = vmatpush.bf16.msra.mxu0 0
        %791 = vmatpush.bf16.msra.mxu0 0
        %792 = vmatpush.bf16.msra.mxu0 0
        %793 = vmatpush.bf16.msra.mxu0 %v780
        %794 = vmatpush.bf16.msra.mxu0 %v779
        %795 = vmatpush.bf16.msra.mxu0 %v778
        %796 = vmatpush.bf16.msra.mxu0 %v777
        %797 = vmatmul.bf16.gmra.mxu0 %v787
        %v798 = vpop.f32.mrf.mxu0
        %v799 = vadd.f32 0.0, %v798
        %v800 = vpop.f32.mrf.mxu0
        %801 = vdwg.mxu0
        %v802 = vpack.c.bf16 %v799, %v799
        %v803 = vld [vmem:[%s6] sm:$0xf]
        %v812 = vunpack.c.l.b16 %v752
        %v813 = vunpack.c.l.b16 %v753
        %v814 = vunpack.c.l.b16 %v754
        %v815 = vunpack.c.l.b16 %v755
        %v816 = vunpack.c.l.b16 %v756
        %v817 = vunpack.c.l.b16 %v757
        %v818 = vunpack.c.l.b16 %v758
        %v819 = vunpack.c.l.b16 %v759
        %v820 = vpack.c.b16 %v813, %v812
        %v821 = vpack.c.b16 %v815, %v814
        %v822 = vpack.c.b16 %v817, %v816
        %v823 = vpack.c.b16 %v819, %v818
        %v829 = vsel %vm785, %v803, 0
        %831 = vmatpush.bf16.msra.mxu0 0
        %832 = vmatpush.bf16.msra.mxu0 0
        %833 = vmatpush.bf16.msra.mxu0 0
        %834 = vmatpush.bf16.msra.mxu0 0
        %835 = vmatpush.bf16.msra.mxu0 %v823
        %836 = vmatpush.bf16.msra.mxu0 %v822
        %837 = vmatpush.bf16.msra.mxu0 %v821
        %838 = vmatpush.bf16.msra.mxu0 %v820
        %839 = vmatmul.bf16.gmra.mxu0 %v829
        %v840 = vpop.f32.mrf.mxu0
        %v841 = vadd.f32 0.0, %v840
        %v842 = vpop.f32.mrf.mxu0
        %843 = vdwg.mxu0
        %v844 = vpack.c.bf16 %v841, %v841
        %vm845 = vcmask 130048
        %v847 = vsel %vm845, %v777, 0
        %v850 = vsel %vm845, %v778, 0
        %v853 = vsel %vm845, %v779, 0
        %v856 = vsel %vm845, %v780, 0
        %v859 = vsel %vm845, %v844, 0
        %861 = vmatpush.bf16.xpose.msra.mxu0 0
        %862 = vmatpush.bf16.xpose.msra.mxu0 0
        %863 = vmatpush.bf16.xpose.msra.mxu0 0
        %864 = vmatpush.bf16.xpose.msra.mxu0 0
        %865 = vmatpush.bf16.xpose.msra.mxu0 0
        %866 = vmatpush.bf16.xpose.msra.mxu0 0
        %867 = vmatpush.bf16.xpose.msra.mxu0 0
        %868 = vmatpush.bf16.xpose.msra.mxu0 %v859
        %869 = vmatmul.bf16.gmra.mxu0 %v847
        %v870 = vpop.f32.mrf.mxu0
        %v871 = vadd.f32 0.0, %v870
        %v872 = vpop.f32.mrf.mxu0
        %v873 = vadd.f32 0.0, %v872
        %874 = vmatmul.bf16.gmra.mxu0 %v850
        %v875 = vpop.f32.mrf.mxu0
        %v876 = vadd.f32 0.0, %v875
        %v877 = vpop.f32.mrf.mxu0
        %v878 = vadd.f32 0.0, %v877
        %879 = vmatmul.bf16.gmra.mxu0 %v853
        %v880 = vpop.f32.mrf.mxu0
        %v881 = vadd.f32 0.0, %v880
        %v882 = vpop.f32.mrf.mxu0
        %v883 = vadd.f32 0.0, %v882
        %884 = vmatmul.bf16.gmra.mxu0 %v856
        %v885 = vpop.f32.mrf.mxu0
        %v886 = vadd.f32 0.0, %v885
        %v887 = vpop.f32.mrf.mxu0
        %v888 = vadd.f32 0.0, %v887
        %889 = vdwg.mxu0
        %vm890 = vcmask 64512
        %v891 = vsel %vm890, %v871, -inf
        %892 = vmax.xlane.f32.xlu0 %v891
        %v893 = vpop.xlane.xlu0 %892
        %v894 = vsel %vm890, %v873, -inf
        %895 = vmax.xlane.f32.xlu0 %v894
        %v896 = vpop.xlane.xlu0 %895
        %v897 = vsel %vm890, %v876, -inf
        %898 = vmax.xlane.f32.xlu0 %v897
        %v899 = vpop.xlane.xlu0 %898
        %v900 = vsel %vm890, %v878, -inf
        %901 = vmax.xlane.f32.xlu0 %v900
        %v902 = vpop.xlane.xlu0 %901
        %v903 = vsel %vm890, %v881, -inf
        %904 = vmax.xlane.f32.xlu0 %v903
        %v905 = vpop.xlane.xlu0 %904
        %v906 = vsel %vm890, %v883, -inf
        %907 = vmax.xlane.f32.xlu0 %v906
        %v908 = vpop.xlane.xlu0 %907
        %v909 = vsel %vm890, %v886, -inf
        %910 = vmax.xlane.f32.xlu0 %v909
        %v911 = vpop.xlane.xlu0 %910
        %v912 = vsel %vm890, %v888, -inf
        %913 = vmax.xlane.f32.xlu0 %v912
        %v914 = vpop.xlane.xlu0 %913
        %v915 = vsub.f32 %v871, %v893
        %v916 = vsub.f32 %v873, %v896
        %v917 = vsub.f32 %v876, %v899
        %v918 = vsub.f32 %v878, %v902
        %v919 = vsub.f32 %v881, %v905
        %v920 = vsub.f32 %v883, %v908
        %v921 = vsub.f32 %v886, %v911
        %v922 = vsub.f32 %v888, %v914
        %v923 = vmul.f32 %v915, 1.442695
        %v924 = vpow.pop %v923
        %v925 = vmul.f32 %v916, 1.442695
        %v926 = vpow.pop %v925
        %v927 = vmul.f32 %v917, 1.442695
        %v928 = vpow.pop %v927
        %v929 = vmul.f32 %v918, 1.442695
        %v930 = vpow.pop %v929
        %v931 = vmul.f32 %v919, 1.442695
        %v932 = vpow.pop %v931
        %v933 = vmul.f32 %v920, 1.442695
        %v934 = vpow.pop %v933
        %v935 = vmul.f32 %v921, 1.442695
        %v936 = vpow.pop %v935
        %v937 = vmul.f32 %v922, 1.442695
        %v938 = vpow.pop %v937
        %v939 = vsel %vm890, %v924, 0.0
        %940 = vadd.xlane.f32.xlu0 %v939
        %v941 = vpop.xlane.xlu0 %940
        %v942 = vsel %vm890, %v926, 0.0
        %943 = vadd.xlane.f32.xlu0 %v942
        %v944 = vpop.xlane.xlu0 %943
        %v945 = vsel %vm890, %v928, 0.0
        %946 = vadd.xlane.f32.xlu0 %v945
        %v947 = vpop.xlane.xlu0 %946
        %v948 = vsel %vm890, %v930, 0.0
        %949 = vadd.xlane.f32.xlu0 %v948
        %v950 = vpop.xlane.xlu0 %949
        %v951 = vsel %vm890, %v932, 0.0
        %952 = vadd.xlane.f32.xlu0 %v951
        %v953 = vpop.xlane.xlu0 %952
        %v954 = vsel %vm890, %v934, 0.0
        %955 = vadd.xlane.f32.xlu0 %v954
        %v956 = vpop.xlane.xlu0 %955
        %v957 = vsel %vm890, %v936, 0.0
        %958 = vadd.xlane.f32.xlu0 %v957
        %v959 = vpop.xlane.xlu0 %958
        %v960 = vsel %vm890, %v938, 0.0
        %961 = vadd.xlane.f32.xlu0 %v960
        %v962 = vpop.xlane.xlu0 %961
        %v963 = vrcp.pop %v941
        %v964 = vmul.f32 %v941, %v963
        %v965 = vsub.f32 1.0, %v964
        %v966 = vmul.f32 %v963, %v965
        %v967 = vadd.f32 %v963, %v966
        %vm968 = vweird.f32 %v941
        %vm969 = vweird.f32 %v963
        %vm970 = vmor %vm968, %vm969
        %v971 = vsel %vm970, %v963, %v967
        %v972 = vand.u32 2147483647, %v941
        %vm973 = vcmp.eq.f32.partialorder %v972, 8.507059e+37
        %v974 = vand.u32 %v941, 2147483648
        %v975 = vor.u32 1.1754944e-38, %v974
        %v976 = vsel %vm973, %v975, %v971
        %v977 = vmul.f32 %v924, %v976
        %v978 = vrcp.pop %v944
        %v979 = vmul.f32 %v944, %v978
        %v980 = vsub.f32 1.0, %v979
        %v981 = vmul.f32 %v978, %v980
        %v982 = vadd.f32 %v978, %v981
        %vm983 = vweird.f32 %v944
        %vm984 = vweird.f32 %v978
        %vm985 = vmor %vm983, %vm984
        %v986 = vsel %vm985, %v978, %v982
        %v987 = vand.u32 2147483647, %v944
        %vm988 = vcmp.eq.f32.partialorder %v987, 8.507059e+37
        %v989 = vand.u32 %v944, 2147483648
        %v990 = vor.u32 1.1754944e-38, %v989
        %v991 = vsel %vm988, %v990, %v986
        %v992 = vmul.f32 %v926, %v991
        %v993 = vrcp.pop %v947
        %v994 = vmul.f32 %v947, %v993
        %v995 = vsub.f32 1.0, %v994
        %v996 = vmul.f32 %v993, %v995
        %v997 = vadd.f32 %v993, %v996
        %vm998 = vweird.f32 %v947
        %vm999 = vweird.f32 %v993
        %vm1000 = vmor %vm998, %vm999
        %v1001 = vsel %vm1000, %v993, %v997
        %v1002 = vand.u32 2147483647, %v947
        %vm1003 = vcmp.eq.f32.partialorder %v1002, 8.507059e+37
        %v1004 = vand.u32 %v947, 2147483648
        %v1005 = vor.u32 1.1754944e-38, %v1004
        %v1006 = vsel %vm1003, %v1005, %v1001
        %v1007 = vmul.f32 %v928, %v1006
        %v1008 = vrcp.pop %v950
        %v1009 = vmul.f32 %v950, %v1008
        %v1010 = vsub.f32 1.0, %v1009
        %v1011 = vmul.f32 %v1008, %v1010
        %v1012 = vadd.f32 %v1008, %v1011
        %vm1013 = vweird.f32 %v950
        %vm1014 = vweird.f32 %v1008
        %vm1015 = vmor %vm1013, %vm1014
        %v1016 = vsel %vm1015, %v1008, %v1012
        %v1017 = vand.u32 2147483647, %v950
        %vm1018 = vcmp.eq.f32.partialorder %v1017, 8.507059e+37
        %v1019 = vand.u32 %v950, 2147483648
        %v1020 = vor.u32 1.1754944e-38, %v1019
        %v1021 = vsel %vm1018, %v1020, %v1016
        %v1022 = vmul.f32 %v930, %v1021
        %v1023 = vrcp.pop %v953
        %v1024 = vmul.f32 %v953, %v1023
        %v1025 = vsub.f32 1.0, %v1024
        %v1026 = vmul.f32 %v1023, %v1025
        %v1027 = vadd.f32 %v1023, %v1026
        %vm1028 = vweird.f32 %v953
        %vm1029 = vweird.f32 %v1023
        %vm1030 = vmor %vm1028, %vm1029
        %v1031 = vsel %vm1030, %v1023, %v1027
        %v1032 = vand.u32 2147483647, %v953
        %vm1033 = vcmp.eq.f32.partialorder %v1032, 8.507059e+37
        %v1034 = vand.u32 %v953, 2147483648
        %v1035 = vor.u32 1.1754944e-38, %v1034
        %v1036 = vsel %vm1033, %v1035, %v1031
        %v1037 = vmul.f32 %v932, %v1036
        %v1038 = vrcp.pop %v956
        %v1039 = vmul.f32 %v956, %v1038
        %v1040 = vsub.f32 1.0, %v1039
        %v1041 = vmul.f32 %v1038, %v1040
        %v1042 = vadd.f32 %v1038, %v1041
        %vm1043 = vweird.f32 %v956
        %vm1044 = vweird.f32 %v1038
        %vm1045 = vmor %vm1043, %vm1044
        %v1046 = vsel %vm1045, %v1038, %v1042
        %v1047 = vand.u32 2147483647, %v956
        %vm1048 = vcmp.eq.f32.partialorder %v1047, 8.507059e+37
        %v1049 = vand.u32 %v956, 2147483648
        %v1050 = vor.u32 1.1754944e-38, %v1049
        %v1051 = vsel %vm1048, %v1050, %v1046
        %v1052 = vmul.f32 %v934, %v1051
        %v1053 = vrcp.pop %v959
        %v1054 = vmul.f32 %v959, %v1053
        %v1055 = vsub.f32 1.0, %v1054
        %v1056 = vmul.f32 %v1053, %v1055
        %v1057 = vadd.f32 %v1053, %v1056
        %vm1058 = vweird.f32 %v959
        %vm1059 = vweird.f32 %v1053
        %vm1060 = vmor %vm1058, %vm1059
        %v1061 = vsel %vm1060, %v1053, %v1057
        %v1062 = vand.u32 2147483647, %v959
        %vm1063 = vcmp.eq.f32.partialorder %v1062, 8.507059e+37
        %v1064 = vand.u32 %v959, 2147483648
        %v1065 = vor.u32 1.1754944e-38, %v1064
        %v1066 = vsel %vm1063, %v1065, %v1061
        %v1067 = vmul.f32 %v936, %v1066
        %v1068 = vrcp.pop %v962
        %v1069 = vmul.f32 %v962, %v1068
        %v1070 = vsub.f32 1.0, %v1069
        %v1071 = vmul.f32 %v1068, %v1070
        %v1072 = vadd.f32 %v1068, %v1071
        %vm1073 = vweird.f32 %v962
        %vm1074 = vweird.f32 %v1068
        %vm1075 = vmor %vm1073, %vm1074
        %v1076 = vsel %vm1075, %v1068, %v1072
        %v1077 = vand.u32 2147483647, %v962
        %vm1078 = vcmp.eq.f32.partialorder %v1077, 8.507059e+37
        %v1079 = vand.u32 %v962, 2147483648
        %v1080 = vor.u32 1.1754944e-38, %v1079
        %v1081 = vsel %vm1078, %v1080, %v1076
        %v1082 = vmul.f32 %v938, %v1081
        %v1084 = vsel %vm845, %v802, 0
        %1086 = vmatpush.bf16.xpose.msra.mxu0 0
        %1087 = vmatpush.bf16.xpose.msra.mxu0 0
        %1088 = vmatpush.bf16.xpose.msra.mxu0 0
        %1089 = vmatpush.bf16.xpose.msra.mxu0 0
        %1090 = vmatpush.bf16.xpose.msra.mxu0 0
        %1091 = vmatpush.bf16.xpose.msra.mxu0 0
        %1092 = vmatpush.bf16.xpose.msra.mxu0 0
        %1093 = vmatpush.bf16.xpose.msra.mxu0 %v859
        %1094 = vmatmul.bf16.gmra.mxu0 %v1084
        %v1095 = vpop.f32.mrf.mxu0
        %v1096 = vadd.f32 0.0, %v1095
        %v1097 = vpop.f32.mrf.mxu0
        %1098 = vdwg.mxu0
        %v1099 = vsel %vm890, %v1096, -inf
        %1100 = vmax.xlane.f32.xlu0 %v1099
        %v1101 = vpop.xlane.xlu0 %1100
        %v1102 = vsub.f32 %v1096, %v1101
        %v1103 = vmul.f32 %v1102, 1.442695
        %v1104 = vpow.pop %v1103
        %v1105 = vsel %vm890, %v1104, 0.0
        %1106 = vadd.xlane.f32.xlu0 %v1105
        %v1107 = vpop.xlane.xlu0 %1106
        %v1108 = vrcp.pop %v1107
        %v1109 = vmul.f32 %v1107, %v1108
        %v1110 = vsub.f32 1.0, %v1109
        %v1111 = vmul.f32 %v1108, %v1110
        %v1112 = vadd.f32 %v1108, %v1111
        %vm1113 = vweird.f32 %v1107
        %vm1114 = vweird.f32 %v1108
        %vm1115 = vmor %vm1113, %vm1114
        %v1116 = vsel %vm1115, %v1108, %v1112
        %v1117 = vand.u32 2147483647, %v1107
        %vm1118 = vcmp.eq.f32.partialorder %v1117, 8.507059e+37
        %v1119 = vand.u32 %v1107, 2147483648
        %v1120 = vor.u32 1.1754944e-38, %v1119
        %v1121 = vsel %vm1118, %v1120, %v1116
        %v1122 = vmul.f32 %v1104, %v1121
        %1123 = vmatpush.bf16.xpose.msra.mxu0 0
        %1124 = vmatpush.bf16.xpose.msra.mxu0 0
        %1125 = vmatpush.bf16.xpose.msra.mxu0 0
        %1126 = vmatpush.bf16.xpose.msra.mxu0 0
        %1127 = vmatpush.bf16.xpose.msra.mxu0 0
        %1128 = vmatpush.bf16.xpose.msra.mxu0 0
        %1129 = vmatpush.bf16.xpose.msra.mxu0 0
        %1130 = vmatpush.bf16.xpose.msra.mxu0 %v1084
        %1131 = vmatmul.bf16.gmra.mxu0 %v859
        %v1132 = vpop.f32.mrf.mxu0
        %v1133 = vadd.f32 0.0, %v1132
        %v1134 = vpop.f32.mrf.mxu0
        %1135 = vdwg.mxu0
        %v1136 = vsel %vm890, %v1133, -inf
        %v1137 = vrot.slane %v1136, 4
        %v1138 = vmax.f32 %v1136, %v1137
        %v1139 = vrot.slane %v1138, 2
        %v1140 = vmax.f32 %v1138, %v1139
        %v1141 = vrot.slane %v1140, 1
        %v1142 = vmax.f32 %v1140, %v1141
        %v1143 = vsub.f32 %v1133, %v1142
        %v1144 = vmul.f32 %v1143, 1.442695
        %v1145 = vpow.pop %v1144
        %v1146 = vsel %vm890, %v1145, 0.0
        %v1147 = vrot.slane %v1146, 4
        %v1148 = vadd.f32 %v1146, %v1147
        %v1149 = vrot.slane %v1148, 2
        %v1150 = vadd.f32 %v1148, %v1149
        %v1151 = vrot.slane %v1150, 1
        %v1152 = vadd.f32 %v1150, %v1151
        %v1153 = vrcp.pop %v1152
        %v1154 = vmul.f32 %v1152, %v1153
        %v1155 = vsub.f32 1.0, %v1154
        %v1156 = vmul.f32 %v1153, %v1155
        %v1157 = vadd.f32 %v1153, %v1156
        %vm1158 = vweird.f32 %v1152
        %vm1159 = vweird.f32 %v1153
        %vm1160 = vmor %vm1158, %vm1159
        %v1161 = vsel %vm1160, %v1153, %v1157
        %v1162 = vand.u32 2147483647, %v1152
        %vm1163 = vcmp.eq.f32.partialorder %v1162, 8.507059e+37
        %v1164 = vand.u32 %v1152, 2147483648
        %v1165 = vor.u32 1.1754944e-38, %v1164
        %v1166 = vsel %vm1163, %v1165, %v1161
        %v1167 = vmul.f32 %v1145, %v1166
        %v1169 = vsel %vm845, %v820, 0
        %v1172 = vsel %vm845, %v821, 0
        %v1175 = vsel %vm845, %v822, 0
        %v1178 = vsel %vm845, %v823, 0
        %1180 = vmatpush.bf16.xpose.msra.mxu0 0
        %1181 = vmatpush.bf16.xpose.msra.mxu0 0
        %1182 = vmatpush.bf16.xpose.msra.mxu0 0
        %1183 = vmatpush.bf16.xpose.msra.mxu0 0
        %1184 = vmatpush.bf16.xpose.msra.mxu0 %v1178
        %1185 = vmatpush.bf16.xpose.msra.mxu0 %v1175
        %1186 = vmatpush.bf16.xpose.msra.mxu0 %v1172
        %1187 = vmatpush.bf16.xpose.msra.mxu0 %v1169
        %1188 = vmatmul.bf16.gmra.mxu0 %v1084
        %v1189 = vpop.f32.mrf.mxu0
        %v1190 = vadd.f32 0.0, %v1189
        %v1191 = vpop.f32.mrf.mxu0
        %1192 = vdwg.mxu0
        %v1193 = vmul.f32 %v492, 3.4028235e+38
        %v1195 = vperm.slane %v1193, 0
        %v1197 = vsub.f32 %v1190, %v1195
        %v1198 = vsel %vm785, %v1197, -inf
        %1199 = vmax.xlane.f32.xlu0 %v1198
        %v1200 = vpop.xlane.xlu0 %1199
        %v1201 = vsub.f32 %v1197, %v1200
        %v1202 = vmul.f32 %v1201, 1.442695
        %v1203 = vpow.pop %v1202
        %v1204 = vsel %vm785, %v1203, 0.0
        %1205 = vadd.xlane.f32.xlu0 %v1204
        %v1206 = vpop.xlane.xlu0 %1205
        %v1207 = vrcp.pop %v1206
        %v1208 = vmul.f32 %v1206, %v1207
        %v1209 = vsub.f32 1.0, %v1208
        %v1210 = vmul.f32 %v1207, %v1209
        %v1211 = vadd.f32 %v1207, %v1210
        %vm1212 = vweird.f32 %v1206
        %vm1213 = vweird.f32 %v1207
        %vm1214 = vmor %vm1212, %vm1213
        %v1215 = vsel %vm1214, %v1207, %v1211
        %v1216 = vand.u32 2147483647, %v1206
        %vm1217 = vcmp.eq.f32.partialorder %v1216, 8.507059e+37
        %v1218 = vand.u32 %v1206, 2147483648
        %v1219 = vor.u32 1.1754944e-38, %v1218
        %v1220 = vsel %vm1217, %v1219, %v1215
        %v1221 = vmul.f32 %v1203, %v1220
        %v1222 = vpack.c.bf16 %v1221, %v1221
        %1223 = vrot.lane.b32.xlu0 %v820, 96
        %v1224 = vpop.permute.xlu0 %1223
        %1225 = vrot.lane.b32.xlu0 %v821, 96
        %v1226 = vpop.permute.xlu0 %1225
        %1227 = vrot.lane.b32.xlu0 %v822, 96
        %v1228 = vpop.permute.xlu0 %1227
        %1229 = vrot.lane.b32.xlu0 %v823, 96
        %v1230 = vpop.permute.xlu0 %1229
        %v1236 = vsel %vm785, %v1222, 0
        %1238 = vmatpush.bf16.msra.mxu0 0
        %1239 = vmatpush.bf16.msra.mxu0 0
        %1240 = vmatpush.bf16.msra.mxu0 0
        %1241 = vmatpush.bf16.msra.mxu0 0
        %1242 = vmatpush.bf16.msra.mxu0 %v1230
        %1243 = vmatpush.bf16.msra.mxu0 %v1228
        %1244 = vmatpush.bf16.msra.mxu0 %v1226
        %1245 = vmatpush.bf16.msra.mxu0 %v1224
        %1246 = vmatmul.bf16.gmra.mxu0 %v1236
        %v1247 = vpop.f32.mrf.mxu0
        %v1248 = vadd.f32 0.0, %v1247
        %v1249 = vpop.f32.mrf.mxu0
        %1250 = vdwg.mxu0
        %v1251 = vand.u32 2147483647, %v1122
        %v1252 = vsel %vm890, %v1251, 0.0
        %v1253 = vrot.slane %v1252, 4
        %v1254 = vadd.f32 %v1252, %v1253
        %v1255 = vrot.slane %v1254, 2
        %v1256 = vadd.f32 %v1254, %v1255
        %v1257 = vrot.slane %v1256, 1
        %v1258 = vadd.f32 %v1256, %v1257
        %v1259 = vsel %vm890, %v1258, -inf
        %1260 = vmax.xlane.f32.xlu0 %v1259
        %v1261 = vpop.xlane.xlu0 %1260
        %s1262 = vtos %v1261
        %v1263 = vstv %s1262
        %v1264 = vrcp.pop %v1263
        %v1265 = vmul.f32 %v1263, %v1264
        %v1266 = vsub.f32 1.0, %v1265
        %v1267 = vmul.f32 %v1264, %v1266
        %v1268 = vadd.f32 %v1264, %v1267
        %vm1269 = vweird.f32 %v1263
        %vm1270 = vweird.f32 %v1264
        %vm1271 = vmor %vm1269, %vm1270
        %v1272 = vsel %vm1271, %v1264, %v1268
        %v1273 = vand.u32 2147483647, %v1263
        %vm1274 = vcmp.eq.f32.partialorder %v1273, 8.507059e+37
        %v1275 = vand.u32 %v1263, 2147483648
        %v1276 = vor.u32 1.1754944e-38, %v1275
        %v1277 = vsel %vm1274, %v1276, %v1272
        %s1278 = vtos %v1277
        %1279 = vadd.xlane.f32.xlu0 %v1252
        %v1280 = vpop.xlane.xlu0 %1279
        %v1281 = vrot.slane %v1280, 4
        %v1282 = vmax.f32 %v1280, %v1281
        %v1283 = vrot.slane %v1282, 2
        %v1284 = vmax.f32 %v1282, %v1283
        %v1285 = vrot.slane %v1284, 1
        %v1286 = vmax.f32 %v1284, %v1285
        %s1287 = vtos %v1286
        %v1288 = vstv %s1287
        %v1289 = vrcp.pop %v1288
        %v1290 = vmul.f32 %v1288, %v1289
        %v1291 = vsub.f32 1.0, %v1290
        %v1292 = vmul.f32 %v1289, %v1291
        %v1293 = vadd.f32 %v1289, %v1292
        %vm1294 = vweird.f32 %v1288
        %vm1295 = vweird.f32 %v1289
        %vm1296 = vmor %vm1294, %vm1295
        %v1297 = vsel %vm1296, %v1289, %v1293
        %v1298 = vand.u32 2147483647, %v1288
        %vm1299 = vcmp.eq.f32.partialorder %v1298, 8.507059e+37
        %v1300 = vand.u32 %v1288, 2147483648
        %v1301 = vor.u32 1.1754944e-38, %v1300
        %v1302 = vsel %vm1299, %v1301, %v1297
        %s1303 = vtos %v1302
        %s1304 = smul.f32 %s1278, %s1303
        %v1305 = vstv %s1304
        %v1306 = vmul.f32 %v1167, %v1305
        %1307 = vrot.lane.b32.xlu0 %v777, 112
        %v1308 = vpop.permute.xlu0 %1307
        %1309 = vrot.lane.b32.xlu0 %v778, 112
        %v1310 = vpop.permute.xlu0 %1309
        %1311 = vrot.lane.b32.xlu0 %v779, 112
        %v1312 = vpop.permute.xlu0 %1311
        %1313 = vrot.lane.b32.xlu0 %v780, 112
        %v1314 = vpop.permute.xlu0 %1313
        %v1316 = vunpack.c.l.b16 %v844
        %v1317 = vpack.c.b16 %v1316, %v1316
        %1318 = vrot.lane.b32.xlu0 %v1317, 112
        %v1319 = vpop.permute.xlu0 %1318
        %v1321 = vsel %vm845, %v1308, 0
        %v1324 = vsel %vm845, %v1310, 0
        %v1327 = vsel %vm845, %v1312, 0
        %v1330 = vsel %vm845, %v1314, 0
        %v1333 = vsel %vm845, %v1319, 0
        %1335 = vmatpush.bf16.xpose.msra.mxu0 0
        %1336 = vmatpush.bf16.xpose.msra.mxu0 0
        %1337 = vmatpush.bf16.xpose.msra.mxu0 0
        %1338 = vmatpush.bf16.xpose.msra.mxu0 0
        %1339 = vmatpush.bf16.xpose.msra.mxu0 0
        %1340 = vmatpush.bf16.xpose.msra.mxu0 0
        %1341 = vmatpush.bf16.xpose.msra.mxu0 0
        %1342 = vmatpush.bf16.xpose.msra.mxu0 %v1333
        %1343 = vmatmul.bf16.gmra.mxu0 %v1321
        %v1344 = vpop.f32.mrf.mxu0
        %v1345 = vadd.f32 0.0, %v1344
        %v1346 = vpop.f32.mrf.mxu0
        %v1347 = vadd.f32 0.0, %v1346
        %1348 = vmatmul.bf16.gmra.mxu0 %v1324
        %v1349 = vpop.f32.mrf.mxu0
        %v1350 = vadd.f32 0.0, %v1349
        %v1351 = vpop.f32.mrf.mxu0
        %v1352 = vadd.f32 0.0, %v1351
        %1353 = vmatmul.bf16.gmra.mxu0 %v1327
        %v1354 = vpop.f32.mrf.mxu0
        %v1355 = vadd.f32 0.0, %v1354
        %v1356 = vpop.f32.mrf.mxu0
        %v1357 = vadd.f32 0.0, %v1356
        %1358 = vmatmul.bf16.gmra.mxu0 %v1330
        %v1359 = vpop.f32.mrf.mxu0
        %v1360 = vadd.f32 0.0, %v1359
        %v1361 = vpop.f32.mrf.mxu0
        %v1362 = vadd.f32 0.0, %v1361
        %1363 = vdwg.mxu0
        %v1364 = vsel %vm890, %v1345, -inf
        %1365 = vmax.xlane.f32.xlu0 %v1364
        %v1366 = vpop.xlane.xlu0 %1365
        %v1367 = vsel %vm890, %v1347, -inf
        %1368 = vmax.xlane.f32.xlu0 %v1367
        %v1369 = vpop.xlane.xlu0 %1368
        %v1370 = vsel %vm890, %v1350, -inf
        %1371 = vmax.xlane.f32.xlu0 %v1370
        %v1372 = vpop.xlane.xlu0 %1371
        %v1373 = vsel %vm890, %v1352, -inf
        %1374 = vmax.xlane.f32.xlu0 %v1373
        %v1375 = vpop.xlane.xlu0 %1374
        %v1376 = vsel %vm890, %v1355, -inf
        %1377 = vmax.xlane.f32.xlu0 %v1376
        %v1378 = vpop.xlane.xlu0 %1377
        %v1379 = vsel %vm890, %v1357, -inf
        %1380 = vmax.xlane.f32.xlu0 %v1379
        %v1381 = vpop.xlane.xlu0 %1380
        %v1382 = vsel %vm890, %v1360, -inf
        %1383 = vmax.xlane.f32.xlu0 %v1382
        %v1384 = vpop.xlane.xlu0 %1383
        %v1385 = vsel %vm890, %v1362, -inf
        %1386 = vmax.xlane.f32.xlu0 %v1385
        %v1387 = vpop.xlane.xlu0 %1386
        %v1388 = vsub.f32 %v1345, %v1366
        %v1389 = vsub.f32 %v1347, %v1369
        %v1390 = vsub.f32 %v1350, %v1372
        %v1391 = vsub.f32 %v1352, %v1375
        %v1392 = vsub.f32 %v1355, %v1378
        %v1393 = vsub.f32 %v1357, %v1381
        %v1394 = vsub.f32 %v1360, %v1384
        %v1395 = vsub.f32 %v1362, %v1387
        %v1396 = vmul.f32 %v1388, 1.442695
        %v1397 = vpow.pop %v1396
        %v1398 = vmul.f32 %v1389, 1.442695
        %v1399 = vpow.pop %v1398
        %v1400 = vmul.f32 %v1390, 1.442695
        %v1401 = vpow.pop %v1400
        %v1402 = vmul.f32 %v1391, 1.442695
        %v1403 = vpow.pop %v1402
        %v1404 = vmul.f32 %v1392, 1.442695
        %v1405 = vpow.pop %v1404
        %v1406 = vmul.f32 %v1393, 1.442695
        %v1407 = vpow.pop %v1406
        %v1408 = vmul.f32 %v1394, 1.442695
        %v1409 = vpow.pop %v1408
        %v1410 = vmul.f32 %v1395, 1.442695
        %v1411 = vpow.pop %v1410
        %v1412 = vsel %vm890, %v1397, 0.0
        %1413 = vadd.xlane.f32.xlu0 %v1412
        %v1414 = vpop.xlane.xlu0 %1413
        %v1415 = vsel %vm890, %v1399, 0.0
        %1416 = vadd.xlane.f32.xlu0 %v1415
        %v1417 = vpop.xlane.xlu0 %1416
        %v1418 = vsel %vm890, %v1401, 0.0
        %1419 = vadd.xlane.f32.xlu0 %v1418
        %v1420 = vpop.xlane.xlu0 %1419
        %v1421 = vsel %vm890, %v1403, 0.0
        %1422 = vadd.xlane.f32.xlu0 %v1421
        %v1423 = vpop.xlane.xlu0 %1422
        %v1424 = vsel %vm890, %v1405, 0.0
        %1425 = vadd.xlane.f32.xlu0 %v1424
        %v1426 = vpop.xlane.xlu0 %1425
        %v1427 = vsel %vm890, %v1407, 0.0
        %1428 = vadd.xlane.f32.xlu0 %v1427
        %v1429 = vpop.xlane.xlu0 %1428
        %v1430 = vsel %vm890, %v1409, 0.0
        %1431 = vadd.xlane.f32.xlu0 %v1430
        %v1432 = vpop.xlane.xlu0 %1431
        %v1433 = vsel %vm890, %v1411, 0.0
        %1434 = vadd.xlane.f32.xlu0 %v1433
        %v1435 = vpop.xlane.xlu0 %1434
        %v1436 = vrcp.pop %v1414
        %v1437 = vmul.f32 %v1414, %v1436
        %v1438 = vsub.f32 1.0, %v1437
        %v1439 = vmul.f32 %v1436, %v1438
        %v1440 = vadd.f32 %v1436, %v1439
        %vm1441 = vweird.f32 %v1414
        %vm1442 = vweird.f32 %v1436
        %vm1443 = vmor %vm1441, %vm1442
        %v1444 = vsel %vm1443, %v1436, %v1440
        %v1445 = vand.u32 2147483647, %v1414
        %vm1446 = vcmp.eq.f32.partialorder %v1445, 8.507059e+37
        %v1447 = vand.u32 %v1414, 2147483648
        %v1448 = vor.u32 1.1754944e-38, %v1447
        %v1449 = vsel %vm1446, %v1448, %v1444
        %v1450 = vmul.f32 %v1397, %v1449
        %v1451 = vrcp.pop %v1417
        %v1452 = vmul.f32 %v1417, %v1451
        %v1453 = vsub.f32 1.0, %v1452
        %v1454 = vmul.f32 %v1451, %v1453
        %v1455 = vadd.f32 %v1451, %v1454
        %vm1456 = vweird.f32 %v1417
        %vm1457 = vweird.f32 %v1451
        %vm1458 = vmor %vm1456, %vm1457
        %v1459 = vsel %vm1458, %v1451, %v1455
        %v1460 = vand.u32 2147483647, %v1417
        %vm1461 = vcmp.eq.f32.partialorder %v1460, 8.507059e+37
        %v1462 = vand.u32 %v1417, 2147483648
        %v1463 = vor.u32 1.1754944e-38, %v1462
        %v1464 = vsel %vm1461, %v1463, %v1459
        %v1465 = vmul.f32 %v1399, %v1464
        %v1466 = vrcp.pop %v1420
        %v1467 = vmul.f32 %v1420, %v1466
        %v1468 = vsub.f32 1.0, %v1467
        %v1469 = vmul.f32 %v1466, %v1468
        %v1470 = vadd.f32 %v1466, %v1469
        %vm1471 = vweird.f32 %v1420
        %vm1472 = vweird.f32 %v1466
        %vm1473 = vmor %vm1471, %vm1472
        %v1474 = vsel %vm1473, %v1466, %v1470
        %v1475 = vand.u32 2147483647, %v1420
        %vm1476 = vcmp.eq.f32.partialorder %v1475, 8.507059e+37
        %v1477 = vand.u32 %v1420, 2147483648
        %v1478 = vor.u32 1.1754944e-38, %v1477
        %v1479 = vsel %vm1476, %v1478, %v1474
        %v1480 = vmul.f32 %v1401, %v1479
        %v1481 = vrcp.pop %v1423
        %v1482 = vmul.f32 %v1423, %v1481
        %v1483 = vsub.f32 1.0, %v1482
        %v1484 = vmul.f32 %v1481, %v1483
        %v1485 = vadd.f32 %v1481, %v1484
        %vm1486 = vweird.f32 %v1423
        %vm1487 = vweird.f32 %v1481
        %vm1488 = vmor %vm1486, %vm1487
        %v1489 = vsel %vm1488, %v1481, %v1485
        %v1490 = vand.u32 2147483647, %v1423
        %vm1491 = vcmp.eq.f32.partialorder %v1490, 8.507059e+37
        %v1492 = vand.u32 %v1423, 2147483648
        %v1493 = vor.u32 1.1754944e-38, %v1492
        %v1494 = vsel %vm1491, %v1493, %v1489
        %v1495 = vmul.f32 %v1403, %v1494
        %v1496 = vrcp.pop %v1426
        %v1497 = vmul.f32 %v1426, %v1496
        %v1498 = vsub.f32 1.0, %v1497
        %v1499 = vmul.f32 %v1496, %v1498
        %v1500 = vadd.f32 %v1496, %v1499
        %vm1501 = vweird.f32 %v1426
        %vm1502 = vweird.f32 %v1496
        %vm1503 = vmor %vm1501, %vm1502
        %v1504 = vsel %vm1503, %v1496, %v1500
        %v1505 = vand.u32 2147483647, %v1426
        %vm1506 = vcmp.eq.f32.partialorder %v1505, 8.507059e+37
        %v1507 = vand.u32 %v1426, 2147483648
        %v1508 = vor.u32 1.1754944e-38, %v1507
        %v1509 = vsel %vm1506, %v1508, %v1504
        %v1510 = vmul.f32 %v1405, %v1509
        %v1511 = vrcp.pop %v1429
        %v1512 = vmul.f32 %v1429, %v1511
        %v1513 = vsub.f32 1.0, %v1512
        %v1514 = vmul.f32 %v1511, %v1513
        %v1515 = vadd.f32 %v1511, %v1514
        %vm1516 = vweird.f32 %v1429
        %vm1517 = vweird.f32 %v1511
        %vm1518 = vmor %vm1516, %vm1517
        %v1519 = vsel %vm1518, %v1511, %v1515
        %v1520 = vand.u32 2147483647, %v1429
        %vm1521 = vcmp.eq.f32.partialorder %v1520, 8.507059e+37
        %v1522 = vand.u32 %v1429, 2147483648
        %v1523 = vor.u32 1.1754944e-38, %v1522
        %v1524 = vsel %vm1521, %v1523, %v1519
        %v1525 = vmul.f32 %v1407, %v1524
        %v1526 = vrcp.pop %v1432
        %v1527 = vmul.f32 %v1432, %v1526
        %v1528 = vsub.f32 1.0, %v1527
        %v1529 = vmul.f32 %v1526, %v1528
        %v1530 = vadd.f32 %v1526, %v1529
        %vm1531 = vweird.f32 %v1432
        %vm1532 = vweird.f32 %v1526
        %vm1533 = vmor %vm1531, %vm1532
        %v1534 = vsel %vm1533, %v1526, %v1530
        %v1535 = vand.u32 2147483647, %v1432
        %vm1536 = vcmp.eq.f32.partialorder %v1535, 8.507059e+37
        %v1537 = vand.u32 %v1432, 2147483648
        %v1538 = vor.u32 1.1754944e-38, %v1537
        %v1539 = vsel %vm1536, %v1538, %v1534
        %v1540 = vmul.f32 %v1409, %v1539
        %v1541 = vrcp.pop %v1435
        %v1542 = vmul.f32 %v1435, %v1541
        %v1543 = vsub.f32 1.0, %v1542
        %v1544 = vmul.f32 %v1541, %v1543
        %v1545 = vadd.f32 %v1541, %v1544
        %vm1546 = vweird.f32 %v1435
        %vm1547 = vweird.f32 %v1541
        %vm1548 = vmor %vm1546, %vm1547
        %v1549 = vsel %vm1548, %v1541, %v1545
        %v1550 = vand.u32 2147483647, %v1435
        %vm1551 = vcmp.eq.f32.partialorder %v1550, 8.507059e+37
        %v1552 = vand.u32 %v1435, 2147483648
        %v1553 = vor.u32 1.1754944e-38, %v1552
        %v1554 = vsel %vm1551, %v1553, %v1549
        %v1555 = vmul.f32 %v1411, %v1554
        %v1557 = vunpack.c.l.b16 %v802
        %v1558 = vpack.c.b16 %v1557, %v1557
        %1559 = vrot.lane.b32.xlu0 %v1558, 112
        %v1560 = vpop.permute.xlu0 %1559
        %v1562 = vsel %vm845, %v1560, 0
        %1564 = vmatpush.bf16.xpose.msra.mxu0 0
        %1565 = vmatpush.bf16.xpose.msra.mxu0 0
        %1566 = vmatpush.bf16.xpose.msra.mxu0 0
        %1567 = vmatpush.bf16.xpose.msra.mxu0 0
        %1568 = vmatpush.bf16.xpose.msra.mxu0 0
        %1569 = vmatpush.bf16.xpose.msra.mxu0 0
        %1570 = vmatpush.bf16.xpose.msra.mxu0 0
        %1571 = vmatpush.bf16.xpose.msra.mxu0 %v1333
        %1572 = vmatmul.bf16.gmra.mxu0 %v1562
        %v1573 = vpop.f32.mrf.mxu0
        %v1574 = vadd.f32 0.0, %v1573
        %v1575 = vpop.f32.mrf.mxu0
        %1576 = vdwg.mxu0
        %v1577 = vsel %vm890, %v1574, -inf
        %1578 = vmax.xlane.f32.xlu0 %v1577
        %v1579 = vpop.xlane.xlu0 %1578
        %v1580 = vsub.f32 %v1574, %v1579
        %v1581 = vmul.f32 %v1580, 1.442695
        %v1582 = vpow.pop %v1581
        %v1583 = vsel %vm890, %v1582, 0.0
        %1584 = vadd.xlane.f32.xlu0 %v1583
        %v1585 = vpop.xlane.xlu0 %1584
        %v1586 = vrcp.pop %v1585
        %v1587 = vmul.f32 %v1585, %v1586
        %v1588 = vsub.f32 1.0, %v1587
        %v1589 = vmul.f32 %v1586, %v1588
        %v1590 = vadd.f32 %v1586, %v1589
        %vm1591 = vweird.f32 %v1585
        %vm1592 = vweird.f32 %v1586
        %vm1593 = vmor %vm1591, %vm1592
        %v1594 = vsel %vm1593, %v1586, %v1590
        %v1595 = vand.u32 2147483647, %v1585
        %vm1596 = vcmp.eq.f32.partialorder %v1595, 8.507059e+37
        %v1597 = vand.u32 %v1585, 2147483648
        %v1598 = vor.u32 1.1754944e-38, %v1597
        %v1599 = vsel %vm1596, %v1598, %v1594
        %v1600 = vmul.f32 %v1582, %v1599
        %1601 = vmatpush.bf16.xpose.msra.mxu0 0
        %1602 = vmatpush.bf16.xpose.msra.mxu0 0
        %1603 = vmatpush.bf16.xpose.msra.mxu0 0
        %1604 = vmatpush.bf16.xpose.msra.mxu0 0
        %1605 = vmatpush.bf16.xpose.msra.mxu0 0
        %1606 = vmatpush.bf16.xpose.msra.mxu0 0
        %1607 = vmatpush.bf16.xpose.msra.mxu0 0
        %1608 = vmatpush.bf16.xpose.msra.mxu0 %v1562
        %1609 = vmatmul.bf16.gmra.mxu0 %v1333
        %v1610 = vpop.f32.mrf.mxu0
        %v1611 = vadd.f32 0.0, %v1610
        %v1612 = vpop.f32.mrf.mxu0
        %1613 = vdwg.mxu0
        %v1614 = vsel %vm890, %v1611, -inf
        %v1615 = vrot.slane %v1614, 4
        %v1616 = vmax.f32 %v1614, %v1615
        %v1617 = vrot.slane %v1616, 2
        %v1618 = vmax.f32 %v1616, %v1617
        %v1619 = vrot.slane %v1618, 1
        %v1620 = vmax.f32 %v1618, %v1619
        %v1621 = vsub.f32 %v1611, %v1620
        %v1622 = vmul.f32 %v1621, 1.442695
        %v1623 = vpow.pop %v1622
        %v1624 = vsel %vm890, %v1623, 0.0
        %v1625 = vrot.slane %v1624, 4
        %v1626 = vadd.f32 %v1624, %v1625
        %v1627 = vrot.slane %v1626, 2
        %v1628 = vadd.f32 %v1626, %v1627
        %v1629 = vrot.slane %v1628, 1
        %v1630 = vadd.f32 %v1628, %v1629
        %v1631 = vrcp.pop %v1630
        %v1632 = vmul.f32 %v1630, %v1631
        %v1633 = vsub.f32 1.0, %v1632
        %v1634 = vmul.f32 %v1631, %v1633
        %v1635 = vadd.f32 %v1631, %v1634
        %vm1636 = vweird.f32 %v1630
        %vm1637 = vweird.f32 %v1631
        %vm1638 = vmor %vm1636, %vm1637
        %v1639 = vsel %vm1638, %v1631, %v1635
        %v1640 = vand.u32 2147483647, %v1630
        %vm1641 = vcmp.eq.f32.partialorder %v1640, 8.507059e+37
        %v1642 = vand.u32 %v1630, 2147483648
        %v1643 = vor.u32 1.1754944e-38, %v1642
        %v1644 = vsel %vm1641, %v1643, %v1639
        %v1645 = vmul.f32 %v1623, %v1644
        %1646 = vrot.lane.b32.xlu0 %v820, 112
        %v1647 = vpop.permute.xlu0 %1646
        %1648 = vrot.lane.b32.xlu0 %v821, 112
        %v1649 = vpop.permute.xlu0 %1648
        %1650 = vrot.lane.b32.xlu0 %v822, 112
        %v1651 = vpop.permute.xlu0 %1650
        %1652 = vrot.lane.b32.xlu0 %v823, 112
        %v1653 = vpop.permute.xlu0 %1652
        %v1655 = vsel %vm845, %v1647, 0
        %v1658 = vsel %vm845, %v1649, 0
        %v1661 = vsel %vm845, %v1651, 0
        %v1664 = vsel %vm845, %v1653, 0
        %1666 = vmatpush.bf16.xpose.msra.mxu0 0
        %1667 = vmatpush.bf16.xpose.msra.mxu0 0
        %1668 = vmatpush.bf16.xpose.msra.mxu0 0
        %1669 = vmatpush.bf16.xpose.msra.mxu0 0
        %1670 = vmatpush.bf16.xpose.msra.mxu0 %v1664
        %1671 = vmatpush.bf16.xpose.msra.mxu0 %v1661
        %1672 = vmatpush.bf16.xpose.msra.mxu0 %v1658
        %1673 = vmatpush.bf16.xpose.msra.mxu0 %v1655
        %1674 = vmatmul.bf16.gmra.mxu0 %v1562
        %v1675 = vpop.f32.mrf.mxu0
        %v1676 = vadd.f32 0.0, %v1675
        %v1677 = vpop.f32.mrf.mxu0
        %1678 = vdwg.mxu0
        %v1679 = vsub.f32 %v1676, %v1195
        %v1680 = vsel %vm785, %v1679, -inf
        %1681 = vmax.xlane.f32.xlu0 %v1680
        %v1682 = vpop.xlane.xlu0 %1681
        %v1683 = vsub.f32 %v1679, %v1682
        %v1684 = vmul.f32 %v1683, 1.442695
        %v1685 = vpow.pop %v1684
        %v1686 = vsel %vm785, %v1685, 0.0
        %1687 = vadd.xlane.f32.xlu0 %v1686
        %v1688 = vpop.xlane.xlu0 %1687
        %v1689 = vrcp.pop %v1688
        %v1690 = vmul.f32 %v1688, %v1689
        %v1691 = vsub.f32 1.0, %v1690
        %v1692 = vmul.f32 %v1689, %v1691
        %v1693 = vadd.f32 %v1689, %v1692
        %vm1694 = vweird.f32 %v1688
        %vm1695 = vweird.f32 %v1689
        %vm1696 = vmor %vm1694, %vm1695
        %v1697 = vsel %vm1696, %v1689, %v1693
        %v1698 = vand.u32 2147483647, %v1688
        %vm1699 = vcmp.eq.f32.partialorder %v1698, 8.507059e+37
        %v1700 = vand.u32 %v1688, 2147483648
        %v1701 = vor.u32 1.1754944e-38, %v1700
        %v1702 = vsel %vm1699, %v1701, %v1697
        %v1703 = vmul.f32 %v1685, %v1702
        %v1704 = vpack.c.bf16 %v1703, %v1703
        %1705 = vrot.lane.b32.xlu0 %v820, 80
        %v1706 = vpop.permute.xlu0 %1705
        %1707 = vrot.lane.b32.xlu0 %v821, 80
        %v1708 = vpop.permute.xlu0 %1707
        %1709 = vrot.lane.b32.xlu0 %v822, 80
        %v1710 = vpop.permute.xlu0 %1709
        %1711 = vrot.lane.b32.xlu0 %v823, 80
        %v1712 = vpop.permute.xlu0 %1711
        %v1718 = vsel %vm785, %v1704, 0
        %1720 = vmatpush.bf16.msra.mxu0 0
        %1721 = vmatpush.bf16.msra.mxu0 0
        %1722 = vmatpush.bf16.msra.mxu0 0
        %1723 = vmatpush.bf16.msra.mxu0 0
        %1724 = vmatpush.bf16.msra.mxu0 %v1712
        %1725 = vmatpush.bf16.msra.mxu0 %v1710
        %1726 = vmatpush.bf16.msra.mxu0 %v1708
        %1727 = vmatpush.bf16.msra.mxu0 %v1706
        %1728 = vmatmul.bf16.gmra.mxu0 %v1718
        %v1729 = vpop.f32.mrf.mxu0
        %v1730 = vadd.f32 0.0, %v1729
        %v1731 = vpop.f32.mrf.mxu0
        %1732 = vdwg.mxu0
        %v1733 = vand.u32 2147483647, %v1600
        %v1734 = vsel %vm890, %v1733, 0.0
        %v1735 = vrot.slane %v1734, 4
        %v1736 = vadd.f32 %v1734, %v1735
        %v1737 = vrot.slane %v1736, 2
        %v1738 = vadd.f32 %v1736, %v1737
        %v1739 = vrot.slane %v1738, 1
        %v1740 = vadd.f32 %v1738, %v1739
        %v1741 = vsel %vm890, %v1740, -inf
        %1742 = vmax.xlane.f32.xlu0 %v1741
        %v1743 = vpop.xlane.xlu0 %1742
        %s1744 = vtos %v1743
        %v1745 = vstv %s1744
        %v1746 = vrcp.pop %v1745
        %v1747 = vmul.f32 %v1745, %v1746
        %v1748 = vsub.f32 1.0, %v1747
        %v1749 = vmul.f32 %v1746, %v1748
        %v1750 = vadd.f32 %v1746, %v1749
        %vm1751 = vweird.f32 %v1745
        %vm1752 = vweird.f32 %v1746
        %vm1753 = vmor %vm1751, %vm1752
        %v1754 = vsel %vm1753, %v1746, %v1750
        %v1755 = vand.u32 2147483647, %v1745
        %vm1756 = vcmp.eq.f32.partialorder %v1755, 8.507059e+37
        %v1757 = vand.u32 %v1745, 2147483648
        %v1758 = vor.u32 1.1754944e-38, %v1757
        %v1759 = vsel %vm1756, %v1758, %v1754
        %s1760 = vtos %v1759
        %1761 = vadd.xlane.f32.xlu0 %v1734
        %v1762 = vpop.xlane.xlu0 %1761
        %v1763 = vrot.slane %v1762, 4
        %v1764 = vmax.f32 %v1762, %v1763
        %v1765 = vrot.slane %v1764, 2
        %v1766 = vmax.f32 %v1764, %v1765
        %v1767 = vrot.slane %v1766, 1
        %v1768 = vmax.f32 %v1766, %v1767
        %s1769 = vtos %v1768
        %v1770 = vstv %s1769
        %v1771 = vrcp.pop %v1770
        %v1772 = vmul.f32 %v1770, %v1771
        %v1773 = vsub.f32 1.0, %v1772
        %v1774 = vmul.f32 %v1771, %v1773
        %v1775 = vadd.f32 %v1771, %v1774
        %vm1776 = vweird.f32 %v1770
        %vm1777 = vweird.f32 %v1771
        %vm1778 = vmor %vm1776, %vm1777
        %v1779 = vsel %vm1778, %v1771, %v1775
        %v1780 = vand.u32 2147483647, %v1770
        %vm1781 = vcmp.eq.f32.partialorder %v1780, 8.507059e+37
        %v1782 = vand.u32 %v1770, 2147483648
        %v1783 = vor.u32 1.1754944e-38, %v1782
        %v1784 = vsel %vm1781, %v1783, %v1779
        %s1785 = vtos %v1784
        %s1786 = smul.f32 %s1760, %s1785
        %v1787 = vstv %s1786
        %v1788 = vmul.f32 %v1645, %v1787
        %v1789 = vlaneseq
        %v1790 = vshrl.u32 %v1789, 7
        %v1791 = vlaneseq
        %v1792 = vand.u32 %v1791, 127
        %vm1793 = vcmp.eq.s32.totalorder %v1790, %v1792
        %v1794 = vsel %vm1793, 1, 0
        %v1795 = vcvt.s32.f32 %v1794
        %v1796 = vmul.f32 %v1795, 7.0
        %v1797 = vmul.f32 %v1795, 13.0
        %v1798 = vmul.f32 %v1795, 15.0
        %v1800 = vsel %vm890, %v1122, 0
        %1802 = vmatpush.msra.mxu0 0.0
        %1803 = vmatpush.msra.mxu0 0.0
        %1804 = vmatpush.msra.mxu0 0.0
        %1805 = vmatpush.msra.mxu0 0.0
        %1806 = vmatpush.msra.mxu0 0.0
        %1807 = vmatpush.msra.mxu0 0.0
        %1808 = vmatpush.msra.mxu0 0.0
        %1809 = vmatpush.msra.mxu0 0.0
        %1810 = vmatpush.msra.mxu0 0.0
        %1811 = vmatpush.msra.mxu0 0.0
        %1812 = vmatpush.msra.mxu0 0.0
        %1813 = vmatpush.msra.mxu0 0.0
        %1814 = vmatpush.msra.mxu0 0.0
        %1815 = vmatpush.msra.mxu0 0.0
        %1816 = vmatpush.msra.mxu0 0.0
        %1817 = vmatpush.msra.mxu0 %v1306
        %1818 = vmatmul.f32.gmra.mxu0 %v1800
        %v1819 = vpop.f32.mrf.mxu0
        %v1820 = vadd.f32 0.0, %v1819
        %1821 = vdwg.mxu0
        %v1823 = vsel %vm890, %v1600, 0
        %1825 = vmatpush.msra.mxu0 0.0
        %1826 = vmatpush.msra.mxu0 0.0
        %1827 = vmatpush.msra.mxu0 0.0
        %1828 = vmatpush.msra.mxu0 0.0
        %1829 = vmatpush.msra.mxu0 0.0
        %1830 = vmatpush.msra.mxu0 0.0
        %1831 = vmatpush.msra.mxu0 0.0
        %1832 = vmatpush.msra.mxu0 0.0
        %1833 = vmatpush.msra.mxu0 0.0
        %1834 = vmatpush.msra.mxu0 0.0
        %1835 = vmatpush.msra.mxu0 0.0
        %1836 = vmatpush.msra.mxu0 0.0
        %1837 = vmatpush.msra.mxu0 0.0
        %1838 = vmatpush.msra.mxu0 0.0
        %1839 = vmatpush.msra.mxu0 0.0
        %1840 = vmatpush.msra.mxu0 %v1788
        %1841 = vmatmul.f32.gmra.mxu0 %v1823
        %v1842 = vpop.f32.mrf.mxu0
        %v1843 = vadd.f32 0.0, %v1842
        %1844 = vdwg.mxu0
        %v1845 = vsub.f32 %v1796, %v1820
        %v1846 = vsub.f32 %v1796, %v1843
        %v1848 = vsel %vm890, %v1820, 0
        %1850 = vmatpush.msra.mxu0 0.0
        %1851 = vmatpush.msra.mxu0 0.0
        %1852 = vmatpush.msra.mxu0 0.0
        %1853 = vmatpush.msra.mxu0 0.0
        %1854 = vmatpush.msra.mxu0 0.0
        %1855 = vmatpush.msra.mxu0 0.0
        %1856 = vmatpush.msra.mxu0 0.0
        %1857 = vmatpush.msra.mxu0 0.0
        %1858 = vmatpush.msra.mxu0 0.0
        %1859 = vmatpush.msra.mxu0 0.0
        %1860 = vmatpush.msra.mxu0 0.0
        %1861 = vmatpush.msra.mxu0 0.0
        %1862 = vmatpush.msra.mxu0 0.0
        %1863 = vmatpush.msra.mxu0 0.0
        %1864 = vmatpush.msra.mxu0 0.0
        %1865 = vmatpush.msra.mxu0 %v1845
        %1866 = vmatmul.f32.gmra.mxu0 %v1848
        %v1867 = vpop.f32.mrf.mxu0
        %v1868 = vadd.f32 0.0, %v1867
        %1869 = vdwg.mxu0
        %v1871 = vsel %vm890, %v1843, 0
        %1873 = vmatpush.msra.mxu0 0.0
        %1874 = vmatpush.msra.mxu0 0.0
        %1875 = vmatpush.msra.mxu0 0.0
        %1876 = vmatpush.msra.mxu0 0.0
        %1877 = vmatpush.msra.mxu0 0.0
        %1878 = vmatpush.msra.mxu0 0.0
        %1879 = vmatpush.msra.mxu0 0.0
        %1880 = vmatpush.msra.mxu0 0.0
        %1881 = vmatpush.msra.mxu0 0.0
        %1882 = vmatpush.msra.mxu0 0.0
        %1883 = vmatpush.msra.mxu0 0.0
        %1884 = vmatpush.msra.mxu0 0.0
        %1885 = vmatpush.msra.mxu0 0.0
        %1886 = vmatpush.msra.mxu0 0.0
        %1887 = vmatpush.msra.mxu0 0.0
        %1888 = vmatpush.msra.mxu0 %v1846
        %1889 = vmatmul.f32.gmra.mxu0 %v1871
        %v1890 = vpop.f32.mrf.mxu0
        %v1891 = vadd.f32 0.0, %v1890
        %1892 = vdwg.mxu0
        %v1893 = vsub.f32 %v1798, %v1868
        %v1894 = vsub.f32 %v1798, %v1891
        %1895 = vmatpush.msra.mxu0 0.0
        %1896 = vmatpush.msra.mxu0 0.0
        %1897 = vmatpush.msra.mxu0 0.0
        %1898 = vmatpush.msra.mxu0 0.0
        %1899 = vmatpush.msra.mxu0 0.0
        %1900 = vmatpush.msra.mxu0 0.0
        %1901 = vmatpush.msra.mxu0 0.0
        %1902 = vmatpush.msra.mxu0 0.0
        %1903 = vmatpush.msra.mxu0 0.0
        %1904 = vmatpush.msra.mxu0 0.0
        %1905 = vmatpush.msra.mxu0 0.0
        %1906 = vmatpush.msra.mxu0 0.0
        %1907 = vmatpush.msra.mxu0 0.0
        %1908 = vmatpush.msra.mxu0 0.0
        %1909 = vmatpush.msra.mxu0 0.0
        %1910 = vmatpush.msra.mxu0 %v1893
        %1911 = vmatmul.f32.gmra.mxu0 %v1848
        %v1912 = vpop.f32.mrf.mxu0
        %v1913 = vadd.f32 0.0, %v1912
        %1914 = vdwg.mxu0
        %1915 = vmatpush.msra.mxu0 0.0
        %1916 = vmatpush.msra.mxu0 0.0
        %1917 = vmatpush.msra.mxu0 0.0
        %1918 = vmatpush.msra.mxu0 0.0
        %1919 = vmatpush.msra.mxu0 0.0
        %1920 = vmatpush.msra.mxu0 0.0
        %1921 = vmatpush.msra.mxu0 0.0
        %1922 = vmatpush.msra.mxu0 0.0
        %1923 = vmatpush.msra.mxu0 0.0
        %1924 = vmatpush.msra.mxu0 0.0
        %1925 = vmatpush.msra.mxu0 0.0
        %1926 = vmatpush.msra.mxu0 0.0
        %1927 = vmatpush.msra.mxu0 0.0
        %1928 = vmatpush.msra.mxu0 0.0
        %1929 = vmatpush.msra.mxu0 0.0
        %1930 = vmatpush.msra.mxu0 %v1894
        %1931 = vmatmul.f32.gmra.mxu0 %v1871
        %v1932 = vpop.f32.mrf.mxu0
        %v1933 = vadd.f32 0.0, %v1932
        %1934 = vdwg.mxu0
        %v1935 = vsub.f32 %v1797, %v1913
        %v1936 = vsub.f32 %v1797, %v1933
        %v1938 = vsel %vm890, %v1306, 0
        %1940 = vmatpush.msra.mxu0 0.0
        %1941 = vmatpush.msra.mxu0 0.0
        %1942 = vmatpush.msra.mxu0 0.0
        %1943 = vmatpush.msra.mxu0 0.0
        %1944 = vmatpush.msra.mxu0 0.0
        %1945 = vmatpush.msra.mxu0 0.0
        %1946 = vmatpush.msra.mxu0 0.0
        %1947 = vmatpush.msra.mxu0 0.0
        %1948 = vmatpush.msra.mxu0 0.0
        %1949 = vmatpush.msra.mxu0 0.0
        %1950 = vmatpush.msra.mxu0 0.0
        %1951 = vmatpush.msra.mxu0 0.0
        %1952 = vmatpush.msra.mxu0 0.0
        %1953 = vmatpush.msra.mxu0 0.0
        %1954 = vmatpush.msra.mxu0 0.0
        %1955 = vmatpush.msra.mxu0 %v1935
        %1956 = vmatmul.f32.gmra.mxu0 %v1938
        %v1957 = vpop.f32.mrf.mxu0
        %v1958 = vadd.f32 0.0, %v1957
        %1959 = vdwg.mxu0
        %v1961 = vsel %vm890, %v1788, 0
        %1963 = vmatpush.msra.mxu0 0.0
        %1964 = vmatpush.msra.mxu0 0.0
        %1965 = vmatpush.msra.mxu0 0.0
        %1966 = vmatpush.msra.mxu0 0.0
        %1967 = vmatpush.msra.mxu0 0.0
        %1968 = vmatpush.msra.mxu0 0.0
        %1969 = vmatpush.msra.mxu0 0.0
        %1970 = vmatpush.msra.mxu0 0.0
        %1971 = vmatpush.msra.mxu0 0.0
        %1972 = vmatpush.msra.mxu0 0.0
        %1973 = vmatpush.msra.mxu0 0.0
        %1974 = vmatpush.msra.mxu0 0.0
        %1975 = vmatpush.msra.mxu0 0.0
        %1976 = vmatpush.msra.mxu0 0.0
        %1977 = vmatpush.msra.mxu0 0.0
        %1978 = vmatpush.msra.mxu0 %v1936
        %1979 = vmatmul.f32.gmra.mxu0 %v1961
        %v1980 = vpop.f32.mrf.mxu0
        %v1981 = vadd.f32 0.0, %v1980
        %1982 = vdwg.mxu0
        %v1983 = vmul.f32 %v1958, 0.25
        %v1984 = vmul.f32 %v1981, 0.25
        %1985 = vmatpush.msra.mxu0 0.0
        %1986 = vmatpush.msra.mxu0 0.0
        %1987 = vmatpush.msra.mxu0 0.0
        %1988 = vmatpush.msra.mxu0 0.0
        %1989 = vmatpush.msra.mxu0 0.0
        %1990 = vmatpush.msra.mxu0 0.0
        %1991 = vmatpush.msra.mxu0 0.0
        %1992 = vmatpush.msra.mxu0 0.0
        %1993 = vmatpush.msra.mxu0 0.0
        %1994 = vmatpush.msra.mxu0 0.0
        %1995 = vmatpush.msra.mxu0 0.0
        %1996 = vmatpush.msra.mxu0 0.0
        %1997 = vmatpush.msra.mxu0 0.0
        %1998 = vmatpush.msra.mxu0 0.0
        %1999 = vmatpush.msra.mxu0 0.0
        %2000 = vmatpush.msra.mxu0 %v1983
        %2001 = vmatmul.f32.gmra.mxu0 %v1800
        %v2002 = vpop.f32.mrf.mxu0
        %v2003 = vadd.f32 0.0, %v2002
        %2004 = vdwg.mxu0
        %2005 = vmatpush.msra.mxu0 0.0
        %2006 = vmatpush.msra.mxu0 0.0
        %2007 = vmatpush.msra.mxu0 0.0
        %2008 = vmatpush.msra.mxu0 0.0
        %2009 = vmatpush.msra.mxu0 0.0
        %2010 = vmatpush.msra.mxu0 0.0
        %2011 = vmatpush.msra.mxu0 0.0
        %2012 = vmatpush.msra.mxu0 0.0
        %2013 = vmatpush.msra.mxu0 0.0
        %2014 = vmatpush.msra.mxu0 0.0
        %2015 = vmatpush.msra.mxu0 0.0
        %2016 = vmatpush.msra.mxu0 0.0
        %2017 = vmatpush.msra.mxu0 0.0
        %2018 = vmatpush.msra.mxu0 0.0
        %2019 = vmatpush.msra.mxu0 0.0
        %2020 = vmatpush.msra.mxu0 %v1984
        %2021 = vmatmul.f32.gmra.mxu0 %v1823
        %v2022 = vpop.f32.mrf.mxu0
        %v2023 = vadd.f32 0.0, %v2022
        %2024 = vdwg.mxu0
        %v2025 = vsub.f32 %v1796, %v2003
        %v2026 = vsub.f32 %v1796, %v2023
        %v2028 = vsel %vm890, %v2003, 0
        %2030 = vmatpush.msra.mxu0 0.0
        %2031 = vmatpush.msra.mxu0 0.0
        %2032 = vmatpush.msra.mxu0 0.0
        %2033 = vmatpush.msra.mxu0 0.0
        %2034 = vmatpush.msra.mxu0 0.0
        %2035 = vmatpush.msra.mxu0 0.0
        %2036 = vmatpush.msra.mxu0 0.0
        %2037 = vmatpush.msra.mxu0 0.0
        %2038 = vmatpush.msra.mxu0 0.0
        %2039 = vmatpush.msra.mxu0 0.0
        %2040 = vmatpush.msra.mxu0 0.0
        %2041 = vmatpush.msra.mxu0 0.0
        %2042 = vmatpush.msra.mxu0 0.0
        %2043 = vmatpush.msra.mxu0 0.0
        %2044 = vmatpush.msra.mxu0 0.0
        %2045 = vmatpush.msra.mxu0 %v2025
        %2046 = vmatmul.f32.gmra.mxu0 %v2028
        %v2047 = vpop.f32.mrf.mxu0
        %v2048 = vadd.f32 0.0, %v2047
        %2049 = vdwg.mxu0
        %v2051 = vsel %vm890, %v2023, 0
        %2053 = vmatpush.msra.mxu0 0.0
        %2054 = vmatpush.msra.mxu0 0.0
        %2055 = vmatpush.msra.mxu0 0.0
        %2056 = vmatpush.msra.mxu0 0.0
        %2057 = vmatpush.msra.mxu0 0.0
        %2058 = vmatpush.msra.mxu0 0.0
        %2059 = vmatpush.msra.mxu0 0.0
        %2060 = vmatpush.msra.mxu0 0.0
        %2061 = vmatpush.msra.mxu0 0.0
        %2062 = vmatpush.msra.mxu0 0.0
        %2063 = vmatpush.msra.mxu0 0.0
        %2064 = vmatpush.msra.mxu0 0.0
        %2065 = vmatpush.msra.mxu0 0.0
        %2066 = vmatpush.msra.mxu0 0.0
        %2067 = vmatpush.msra.mxu0 0.0
        %2068 = vmatpush.msra.mxu0 %v2026
        %2069 = vmatmul.f32.gmra.mxu0 %v2051
        %v2070 = vpop.f32.mrf.mxu0
        %v2071 = vadd.f32 0.0, %v2070
        %2072 = vdwg.mxu0
        %v2073 = vsub.f32 %v1798, %v2048
        %v2074 = vsub.f32 %v1798, %v2071
        %2075 = vmatpush.msra.mxu0 0.0
        %2076 = vmatpush.msra.mxu0 0.0
        %2077 = vmatpush.msra.mxu0 0.0
        %2078 = vmatpush.msra.mxu0 0.0
        %2079 = vmatpush.msra.mxu0 0.0
        %2080 = vmatpush.msra.mxu0 0.0
        %2081 = vmatpush.msra.mxu0 0.0
        %2082 = vmatpush.msra.mxu0 0.0
        %2083 = vmatpush.msra.mxu0 0.0
        %2084 = vmatpush.msra.mxu0 0.0
        %2085 = vmatpush.msra.mxu0 0.0
        %2086 = vmatpush.msra.mxu0 0.0
        %2087 = vmatpush.msra.mxu0 0.0
        %2088 = vmatpush.msra.mxu0 0.0
        %2089 = vmatpush.msra.mxu0 0.0
        %2090 = vmatpush.msra.mxu0 %v2073
        %2091 = vmatmul.f32.gmra.mxu0 %v2028
        %v2092 = vpop.f32.mrf.mxu0
        %v2093 = vadd.f32 0.0, %v2092
        %2094 = vdwg.mxu0
        %2095 = vmatpush.msra.mxu0 0.0
        %2096 = vmatpush.msra.mxu0 0.0
        %2097 = vmatpush.msra.mxu0 0.0
        %2098 = vmatpush.msra.mxu0 0.0
        %2099 = vmatpush.msra.mxu0 0.0
        %2100 = vmatpush.msra.mxu0 0.0
        %2101 = vmatpush.msra.mxu0 0.0
        %2102 = vmatpush.msra.mxu0 0.0
        %2103 = vmatpush.msra.mxu0 0.0
        %2104 = vmatpush.msra.mxu0 0.0
        %2105 = vmatpush.msra.mxu0 0.0
        %2106 = vmatpush.msra.mxu0 0.0
        %2107 = vmatpush.msra.mxu0 0.0
        %2108 = vmatpush.msra.mxu0 0.0
        %2109 = vmatpush.msra.mxu0 0.0
        %2110 = vmatpush.msra.mxu0 %v2074
        %2111 = vmatmul.f32.gmra.mxu0 %v2051
        %v2112 = vpop.f32.mrf.mxu0
        %v2113 = vadd.f32 0.0, %v2112
        %2114 = vdwg.mxu0
        %v2115 = vsub.f32 %v1797, %v2093
        %v2116 = vsub.f32 %v1797, %v2113
        %v2118 = vsel %vm890, %v1983, 0
        %2120 = vmatpush.msra.mxu0 0.0
        %2121 = vmatpush.msra.mxu0 0.0
        %2122 = vmatpush.msra.mxu0 0.0
        %2123 = vmatpush.msra.mxu0 0.0
        %2124 = vmatpush.msra.mxu0 0.0
        %2125 = vmatpush.msra.mxu0 0.0
        %2126 = vmatpush.msra.mxu0 0.0
        %2127 = vmatpush.msra.mxu0 0.0
        %2128 = vmatpush.msra.mxu0 0.0
        %2129 = vmatpush.msra.mxu0 0.0
        %2130 = vmatpush.msra.mxu0 0.0
        %2131 = vmatpush.msra.mxu0 0.0
        %2132 = vmatpush.msra.mxu0 0.0
        %2133 = vmatpush.msra.mxu0 0.0
        %2134 = vmatpush.msra.mxu0 0.0
        %2135 = vmatpush.msra.mxu0 %v2115
        %2136 = vmatmul.f32.gmra.mxu0 %v2118
        %v2137 = vpop.f32.mrf.mxu0
        %v2138 = vadd.f32 0.0, %v2137
        %2139 = vdwg.mxu0
        %v2141 = vsel %vm890, %v1984, 0
        %2143 = vmatpush.msra.mxu0 0.0
        %2144 = vmatpush.msra.mxu0 0.0
        %2145 = vmatpush.msra.mxu0 0.0
        %2146 = vmatpush.msra.mxu0 0.0
        %2147 = vmatpush.msra.mxu0 0.0
        %2148 = vmatpush.msra.mxu0 0.0
        %2149 = vmatpush.msra.mxu0 0.0
        %2150 = vmatpush.msra.mxu0 0.0
        %2151 = vmatpush.msra.mxu0 0.0
        %2152 = vmatpush.msra.mxu0 0.0
        %2153 = vmatpush.msra.mxu0 0.0
        %2154 = vmatpush.msra.mxu0 0.0
        %2155 = vmatpush.msra.mxu0 0.0
        %2156 = vmatpush.msra.mxu0 0.0
        %2157 = vmatpush.msra.mxu0 0.0
        %2158 = vmatpush.msra.mxu0 %v2116
        %2159 = vmatmul.f32.gmra.mxu0 %v2141
        %v2160 = vpop.f32.mrf.mxu0
        %v2161 = vadd.f32 0.0, %v2160
        %2162 = vdwg.mxu0
        %v2163 = vmul.f32 %v2138, 0.25
        %v2164 = vmul.f32 %v2161, 0.25
        %2165 = vmatpush.msra.mxu0 0.0
        %2166 = vmatpush.msra.mxu0 0.0
        %2167 = vmatpush.msra.mxu0 0.0
        %2168 = vmatpush.msra.mxu0 0.0
        %2169 = vmatpush.msra.mxu0 0.0
        %2170 = vmatpush.msra.mxu0 0.0
        %2171 = vmatpush.msra.mxu0 0.0
        %2172 = vmatpush.msra.mxu0 0.0
        %2173 = vmatpush.msra.mxu0 0.0
        %2174 = vmatpush.msra.mxu0 0.0
        %2175 = vmatpush.msra.mxu0 0.0
        %2176 = vmatpush.msra.mxu0 0.0
        %2177 = vmatpush.msra.mxu0 0.0
        %2178 = vmatpush.msra.mxu0 0.0
        %2179 = vmatpush.msra.mxu0 0.0
        %2180 = vmatpush.msra.mxu0 %v2163
        %2181 = vmatmul.f32.gmra.mxu0 %v1800
        %v2182 = vpop.f32.mrf.mxu0
        %v2183 = vadd.f32 0.0, %v2182
        %2184 = vdwg.mxu0
        %2185 = vmatpush.msra.mxu0 0.0
        %2186 = vmatpush.msra.mxu0 0.0
        %2187 = vmatpush.msra.mxu0 0.0
        %2188 = vmatpush.msra.mxu0 0.0
        %2189 = vmatpush.msra.mxu0 0.0
        %2190 = vmatpush.msra.mxu0 0.0
        %2191 = vmatpush.msra.mxu0 0.0
        %2192 = vmatpush.msra.mxu0 0.0
        %2193 = vmatpush.msra.mxu0 0.0
        %2194 = vmatpush.msra.mxu0 0.0
        %2195 = vmatpush.msra.mxu0 0.0
        %2196 = vmatpush.msra.mxu0 0.0
        %2197 = vmatpush.msra.mxu0 0.0
        %2198 = vmatpush.msra.mxu0 0.0
        %2199 = vmatpush.msra.mxu0 0.0
        %2200 = vmatpush.msra.mxu0 %v2164
        %2201 = vmatmul.f32.gmra.mxu0 %v1823
        %v2202 = vpop.f32.mrf.mxu0
        %v2203 = vadd.f32 0.0, %v2202
        %2204 = vdwg.mxu0
        %v2205 = vsub.f32 %v1796, %v2183
        %v2206 = vsub.f32 %v1796, %v2203
        %v2208 = vsel %vm890, %v2183, 0
        %2210 = vmatpush.msra.mxu0 0.0
        %2211 = vmatpush.msra.mxu0 0.0
        %2212 = vmatpush.msra.mxu0 0.0
        %2213 = vmatpush.msra.mxu0 0.0
        %2214 = vmatpush.msra.mxu0 0.0
        %2215 = vmatpush.msra.mxu0 0.0
        %2216 = vmatpush.msra.mxu0 0.0
        %2217 = vmatpush.msra.mxu0 0.0
        %2218 = vmatpush.msra.mxu0 0.0
        %2219 = vmatpush.msra.mxu0 0.0
        %2220 = vmatpush.msra.mxu0 0.0
        %2221 = vmatpush.msra.mxu0 0.0
        %2222 = vmatpush.msra.mxu0 0.0
        %2223 = vmatpush.msra.mxu0 0.0
        %2224 = vmatpush.msra.mxu0 0.0
        %2225 = vmatpush.msra.mxu0 %v2205
        %2226 = vmatmul.f32.gmra.mxu0 %v2208
        %v2227 = vpop.f32.mrf.mxu0
        %v2228 = vadd.f32 0.0, %v2227
        %2229 = vdwg.mxu0
        %v2231 = vsel %vm890, %v2203, 0
        %2233 = vmatpush.msra.mxu0 0.0
        %2234 = vmatpush.msra.mxu0 0.0
        %2235 = vmatpush.msra.mxu0 0.0
        %2236 = vmatpush.msra.mxu0 0.0
        %2237 = vmatpush.msra.mxu0 0.0
        %2238 = vmatpush.msra.mxu0 0.0
        %2239 = vmatpush.msra.mxu0 0.0
        %2240 = vmatpush.msra.mxu0 0.0
        %2241 = vmatpush.msra.mxu0 0.0
        %2242 = vmatpush.msra.mxu0 0.0
        %2243 = vmatpush.msra.mxu0 0.0
        %2244 = vmatpush.msra.mxu0 0.0
        %2245 = vmatpush.msra.mxu0 0.0
        %2246 = vmatpush.msra.mxu0 0.0
        %2247 = vmatpush.msra.mxu0 0.0
        %2248 = vmatpush.msra.mxu0 %v2206
        %2249 = vmatmul.f32.gmra.mxu0 %v2231
        %v2250 = vpop.f32.mrf.mxu0
        %v2251 = vadd.f32 0.0, %v2250
        %2252 = vdwg.mxu0
        %v2253 = vsub.f32 %v1798, %v2228
        %v2254 = vsub.f32 %v1798, %v2251
        %2255 = vmatpush.msra.mxu0 0.0
        %2256 = vmatpush.msra.mxu0 0.0
        %2257 = vmatpush.msra.mxu0 0.0
        %2258 = vmatpush.msra.mxu0 0.0
        %2259 = vmatpush.msra.mxu0 0.0
        %2260 = vmatpush.msra.mxu0 0.0
        %2261 = vmatpush.msra.mxu0 0.0
        %2262 = vmatpush.msra.mxu0 0.0
        %2263 = vmatpush.msra.mxu0 0.0
        %2264 = vmatpush.msra.mxu0 0.0
        %2265 = vmatpush.msra.mxu0 0.0
        %2266 = vmatpush.msra.mxu0 0.0
        %2267 = vmatpush.msra.mxu0 0.0
        %2268 = vmatpush.msra.mxu0 0.0
        %2269 = vmatpush.msra.mxu0 0.0
        %2270 = vmatpush.msra.mxu0 %v2253
        %2271 = vmatmul.f32.gmra.mxu0 %v2208
        %v2272 = vpop.f32.mrf.mxu0
        %v2273 = vadd.f32 0.0, %v2272
        %2274 = vdwg.mxu0
        %2275 = vmatpush.msra.mxu0 0.0
        %2276 = vmatpush.msra.mxu0 0.0
        %2277 = vmatpush.msra.mxu0 0.0
        %2278 = vmatpush.msra.mxu0 0.0
        %2279 = vmatpush.msra.mxu0 0.0
        %2280 = vmatpush.msra.mxu0 0.0
        %2281 = vmatpush.msra.mxu0 0.0
        %2282 = vmatpush.msra.mxu0 0.0
        %2283 = vmatpush.msra.mxu0 0.0
        %2284 = vmatpush.msra.mxu0 0.0
        %2285 = vmatpush.msra.mxu0 0.0
        %2286 = vmatpush.msra.mxu0 0.0
        %2287 = vmatpush.msra.mxu0 0.0
        %2288 = vmatpush.msra.mxu0 0.0
        %2289 = vmatpush.msra.mxu0 0.0
        %2290 = vmatpush.msra.mxu0 %v2254
        %2291 = vmatmul.f32.gmra.mxu0 %v2231
        %v2292 = vpop.f32.mrf.mxu0
        %v2293 = vadd.f32 0.0, %v2292
        %2294 = vdwg.mxu0
        %v2295 = vsub.f32 %v1797, %v2273
        %v2296 = vsub.f32 %v1797, %v2293
        %v2298 = vsel %vm890, %v2163, 0
        %2300 = vmatpush.msra.mxu0 0.0
        %2301 = vmatpush.msra.mxu0 0.0
        %2302 = vmatpush.msra.mxu0 0.0
        %2303 = vmatpush.msra.mxu0 0.0
        %2304 = vmatpush.msra.mxu0 0.0
        %2305 = vmatpush.msra.mxu0 0.0
        %2306 = vmatpush.msra.mxu0 0.0
        %2307 = vmatpush.msra.mxu0 0.0
        %2308 = vmatpush.msra.mxu0 0.0
        %2309 = vmatpush.msra.mxu0 0.0
        %2310 = vmatpush.msra.mxu0 0.0
        %2311 = vmatpush.msra.mxu0 0.0
        %2312 = vmatpush.msra.mxu0 0.0
        %2313 = vmatpush.msra.mxu0 0.0
        %2314 = vmatpush.msra.mxu0 0.0
        %2315 = vmatpush.msra.mxu0 %v2295
        %2316 = vmatmul.f32.gmra.mxu0 %v2298
        %v2317 = vpop.f32.mrf.mxu0
        %v2318 = vadd.f32 0.0, %v2317
        %2319 = vdwg.mxu0
        %v2321 = vsel %vm890, %v2164, 0
        %2323 = vmatpush.msra.mxu0 0.0
        %2324 = vmatpush.msra.mxu0 0.0
        %2325 = vmatpush.msra.mxu0 0.0
        %2326 = vmatpush.msra.mxu0 0.0
        %2327 = vmatpush.msra.mxu0 0.0
        %2328 = vmatpush.msra.mxu0 0.0
        %2329 = vmatpush.msra.mxu0 0.0
        %2330 = vmatpush.msra.mxu0 0.0
        %2331 = vmatpush.msra.mxu0 0.0
        %2332 = vmatpush.msra.mxu0 0.0
        %2333 = vmatpush.msra.mxu0 0.0
        %2334 = vmatpush.msra.mxu0 0.0
        %2335 = vmatpush.msra.mxu0 0.0
        %2336 = vmatpush.msra.mxu0 0.0
        %2337 = vmatpush.msra.mxu0 0.0
        %2338 = vmatpush.msra.mxu0 %v2296
        %2339 = vmatmul.f32.gmra.mxu0 %v2321
        %v2340 = vpop.f32.mrf.mxu0
        %v2341 = vadd.f32 0.0, %v2340
        %2342 = vdwg.mxu0
        %v2343 = vmul.f32 %v2318, 0.25
        %v2344 = vmul.f32 %v2341, 0.25
        %2345 = vmatpush.msra.mxu0 0.0
        %2346 = vmatpush.msra.mxu0 0.0
        %2347 = vmatpush.msra.mxu0 0.0
        %2348 = vmatpush.msra.mxu0 0.0
        %2349 = vmatpush.msra.mxu0 0.0
        %2350 = vmatpush.msra.mxu0 0.0
        %2351 = vmatpush.msra.mxu0 0.0
        %2352 = vmatpush.msra.mxu0 0.0
        %2353 = vmatpush.msra.mxu0 0.0
        %2354 = vmatpush.msra.mxu0 0.0
        %2355 = vmatpush.msra.mxu0 0.0
        %2356 = vmatpush.msra.mxu0 0.0
        %2357 = vmatpush.msra.mxu0 0.0
        %2358 = vmatpush.msra.mxu0 0.0
        %2359 = vmatpush.msra.mxu0 0.0
        %2360 = vmatpush.msra.mxu0 %v2343
        %2361 = vmatmul.f32.gmra.mxu0 %v1800
        %v2362 = vpop.f32.mrf.mxu0
        %v2363 = vadd.f32 0.0, %v2362
        %2364 = vdwg.mxu0
        %2365 = vmatpush.msra.mxu0 0.0
        %2366 = vmatpush.msra.mxu0 0.0
        %2367 = vmatpush.msra.mxu0 0.0
        %2368 = vmatpush.msra.mxu0 0.0
        %2369 = vmatpush.msra.mxu0 0.0
        %2370 = vmatpush.msra.mxu0 0.0
        %2371 = vmatpush.msra.mxu0 0.0
        %2372 = vmatpush.msra.mxu0 0.0
        %2373 = vmatpush.msra.mxu0 0.0
        %2374 = vmatpush.msra.mxu0 0.0
        %2375 = vmatpush.msra.mxu0 0.0
        %2376 = vmatpush.msra.mxu0 0.0
        %2377 = vmatpush.msra.mxu0 0.0
        %2378 = vmatpush.msra.mxu0 0.0
        %2379 = vmatpush.msra.mxu0 0.0
        %2380 = vmatpush.msra.mxu0 %v2344
        %2381 = vmatmul.f32.gmra.mxu0 %v1823
        %v2382 = vpop.f32.mrf.mxu0
        %v2383 = vadd.f32 0.0, %v2382
        %2384 = vdwg.mxu0
        %v2385 = vsub.f32 %v1796, %v2363
        %v2386 = vsub.f32 %v1796, %v2383
        %v2388 = vsel %vm890, %v2363, 0
        %2390 = vmatpush.msra.mxu0 0.0
        %2391 = vmatpush.msra.mxu0 0.0
        %2392 = vmatpush.msra.mxu0 0.0
        %2393 = vmatpush.msra.mxu0 0.0
        %2394 = vmatpush.msra.mxu0 0.0
        %2395 = vmatpush.msra.mxu0 0.0
        %2396 = vmatpush.msra.mxu0 0.0
        %2397 = vmatpush.msra.mxu0 0.0
        %2398 = vmatpush.msra.mxu0 0.0
        %2399 = vmatpush.msra.mxu0 0.0
        %2400 = vmatpush.msra.mxu0 0.0
        %2401 = vmatpush.msra.mxu0 0.0
        %2402 = vmatpush.msra.mxu0 0.0
        %2403 = vmatpush.msra.mxu0 0.0
        %2404 = vmatpush.msra.mxu0 0.0
        %2405 = vmatpush.msra.mxu0 %v2385
        %2406 = vmatmul.f32.gmra.mxu0 %v2388
        %v2407 = vpop.f32.mrf.mxu0
        %v2408 = vadd.f32 0.0, %v2407
        %2409 = vdwg.mxu0
        %v2411 = vsel %vm890, %v2383, 0
        %2413 = vmatpush.msra.mxu0 0.0
        %2414 = vmatpush.msra.mxu0 0.0
        %2415 = vmatpush.msra.mxu0 0.0
        %2416 = vmatpush.msra.mxu0 0.0
        %2417 = vmatpush.msra.mxu0 0.0
        %2418 = vmatpush.msra.mxu0 0.0
        %2419 = vmatpush.msra.mxu0 0.0
        %2420 = vmatpush.msra.mxu0 0.0
        %2421 = vmatpush.msra.mxu0 0.0
        %2422 = vmatpush.msra.mxu0 0.0
        %2423 = vmatpush.msra.mxu0 0.0
        %2424 = vmatpush.msra.mxu0 0.0
        %2425 = vmatpush.msra.mxu0 0.0
        %2426 = vmatpush.msra.mxu0 0.0
        %2427 = vmatpush.msra.mxu0 0.0
        %2428 = vmatpush.msra.mxu0 %v2386
        %2429 = vmatmul.f32.gmra.mxu0 %v2411
        %v2430 = vpop.f32.mrf.mxu0
        %v2431 = vadd.f32 0.0, %v2430
        %2432 = vdwg.mxu0
        %v2433 = vsub.f32 %v1798, %v2408
        %v2434 = vsub.f32 %v1798, %v2431
        %2435 = vmatpush.msra.mxu0 0.0
        %2436 = vmatpush.msra.mxu0 0.0
        %2437 = vmatpush.msra.mxu0 0.0
        %2438 = vmatpush.msra.mxu0 0.0
        %2439 = vmatpush.msra.mxu0 0.0
        %2440 = vmatpush.msra.mxu0 0.0
        %2441 = vmatpush.msra.mxu0 0.0
        %2442 = vmatpush.msra.mxu0 0.0
        %2443 = vmatpush.msra.mxu0 0.0
        %2444 = vmatpush.msra.mxu0 0.0
        %2445 = vmatpush.msra.mxu0 0.0
        %2446 = vmatpush.msra.mxu0 0.0
        %2447 = vmatpush.msra.mxu0 0.0
        %2448 = vmatpush.msra.mxu0 0.0
        %2449 = vmatpush.msra.mxu0 0.0
        %2450 = vmatpush.msra.mxu0 %v2433
        %2451 = vmatmul.f32.gmra.mxu0 %v2388
        %v2452 = vpop.f32.mrf.mxu0
        %v2453 = vadd.f32 0.0, %v2452
        %2454 = vdwg.mxu0
        %2455 = vmatpush.msra.mxu0 0.0
        %2456 = vmatpush.msra.mxu0 0.0
        %2457 = vmatpush.msra.mxu0 0.0
        %2458 = vmatpush.msra.mxu0 0.0
        %2459 = vmatpush.msra.mxu0 0.0
        %2460 = vmatpush.msra.mxu0 0.0
        %2461 = vmatpush.msra.mxu0 0.0
        %2462 = vmatpush.msra.mxu0 0.0
        %2463 = vmatpush.msra.mxu0 0.0
        %2464 = vmatpush.msra.mxu0 0.0
        %2465 = vmatpush.msra.mxu0 0.0
        %2466 = vmatpush.msra.mxu0 0.0
        %2467 = vmatpush.msra.mxu0 0.0
        %2468 = vmatpush.msra.mxu0 0.0
        %2469 = vmatpush.msra.mxu0 0.0
        %2470 = vmatpush.msra.mxu0 %v2434
        %2471 = vmatmul.f32.gmra.mxu0 %v2411
        %v2472 = vpop.f32.mrf.mxu0
        %v2473 = vadd.f32 0.0, %v2472
        %2474 = vdwg.mxu0
        %v2475 = vsub.f32 %v1797, %v2453
        %v2476 = vsub.f32 %v1797, %v2473
        %v2478 = vsel %vm890, %v2343, 0
        %2480 = vmatpush.msra.mxu0 0.0
        %2481 = vmatpush.msra.mxu0 0.0
        %2482 = vmatpush.msra.mxu0 0.0
        %2483 = vmatpush.msra.mxu0 0.0
        %2484 = vmatpush.msra.mxu0 0.0
        %2485 = vmatpush.msra.mxu0 0.0
        %2486 = vmatpush.msra.mxu0 0.0
        %2487 = vmatpush.msra.mxu0 0.0
        %2488 = vmatpush.msra.mxu0 0.0
        %2489 = vmatpush.msra.mxu0 0.0
        %2490 = vmatpush.msra.mxu0 0.0
        %2491 = vmatpush.msra.mxu0 0.0
        %2492 = vmatpush.msra.mxu0 0.0
        %2493 = vmatpush.msra.mxu0 0.0
        %2494 = vmatpush.msra.mxu0 0.0
        %2495 = vmatpush.msra.mxu0 %v2475
        %2496 = vmatmul.f32.gmra.mxu0 %v2478
        %v2497 = vpop.f32.mrf.mxu0
        %v2498 = vadd.f32 0.0, %v2497
        %2499 = vdwg.mxu0
        %v2501 = vsel %vm890, %v2344, 0
        %2503 = vmatpush.msra.mxu0 0.0
        %2504 = vmatpush.msra.mxu0 0.0
        %2505 = vmatpush.msra.mxu0 0.0
        %2506 = vmatpush.msra.mxu0 0.0
        %2507 = vmatpush.msra.mxu0 0.0
        %2508 = vmatpush.msra.mxu0 0.0
        %2509 = vmatpush.msra.mxu0 0.0
        %2510 = vmatpush.msra.mxu0 0.0
        %2511 = vmatpush.msra.mxu0 0.0
        %2512 = vmatpush.msra.mxu0 0.0
        %2513 = vmatpush.msra.mxu0 0.0
        %2514 = vmatpush.msra.mxu0 0.0
        %2515 = vmatpush.msra.mxu0 0.0
        %2516 = vmatpush.msra.mxu0 0.0
        %2517 = vmatpush.msra.mxu0 0.0
        %2518 = vmatpush.msra.mxu0 %v2476
        %2519 = vmatmul.f32.gmra.mxu0 %v2501
        %v2520 = vpop.f32.mrf.mxu0
        %v2521 = vadd.f32 0.0, %v2520
        %2522 = vdwg.mxu0
        %v2523 = vmul.f32 %v2498, 0.25
        %v2524 = vmul.f32 %v2521, 0.25
        %2525 = vmatpush.msra.mxu0 0.0
        %2526 = vmatpush.msra.mxu0 0.0
        %2527 = vmatpush.msra.mxu0 0.0
        %2528 = vmatpush.msra.mxu0 0.0
        %2529 = vmatpush.msra.mxu0 0.0
        %2530 = vmatpush.msra.mxu0 0.0
        %2531 = vmatpush.msra.mxu0 0.0
        %2532 = vmatpush.msra.mxu0 0.0
        %2533 = vmatpush.msra.mxu0 0.0
        %2534 = vmatpush.msra.mxu0 0.0
        %2535 = vmatpush.msra.mxu0 0.0
        %2536 = vmatpush.msra.mxu0 0.0
        %2537 = vmatpush.msra.mxu0 0.0
        %2538 = vmatpush.msra.mxu0 0.0
        %2539 = vmatpush.msra.mxu0 0.0
        %2540 = vmatpush.msra.mxu0 %v2523
        %2541 = vmatmul.f32.gmra.mxu0 %v1800
        %v2542 = vpop.f32.mrf.mxu0
        %v2543 = vadd.f32 0.0, %v2542
        %2544 = vdwg.mxu0
        %2545 = vmatpush.msra.mxu0 0.0
        %2546 = vmatpush.msra.mxu0 0.0
        %2547 = vmatpush.msra.mxu0 0.0
        %2548 = vmatpush.msra.mxu0 0.0
        %2549 = vmatpush.msra.mxu0 0.0
        %2550 = vmatpush.msra.mxu0 0.0
        %2551 = vmatpush.msra.mxu0 0.0
        %2552 = vmatpush.msra.mxu0 0.0
        %2553 = vmatpush.msra.mxu0 0.0
        %2554 = vmatpush.msra.mxu0 0.0
        %2555 = vmatpush.msra.mxu0 0.0
        %2556 = vmatpush.msra.mxu0 0.0
        %2557 = vmatpush.msra.mxu0 0.0
        %2558 = vmatpush.msra.mxu0 0.0
        %2559 = vmatpush.msra.mxu0 0.0
        %2560 = vmatpush.msra.mxu0 %v2524
        %2561 = vmatmul.f32.gmra.mxu0 %v1823
        %v2562 = vpop.f32.mrf.mxu0
        %v2563 = vadd.f32 0.0, %v2562
        %2564 = vdwg.mxu0
        %v2565 = vsub.f32 %v1796, %v2543
        %v2566 = vsub.f32 %v1796, %v2563
        %v2568 = vsel %vm890, %v2543, 0
        %2570 = vmatpush.msra.mxu0 0.0
        %2571 = vmatpush.msra.mxu0 0.0
        %2572 = vmatpush.msra.mxu0 0.0
        %2573 = vmatpush.msra.mxu0 0.0
        %2574 = vmatpush.msra.mxu0 0.0
        %2575 = vmatpush.msra.mxu0 0.0
        %2576 = vmatpush.msra.mxu0 0.0
        %2577 = vmatpush.msra.mxu0 0.0
        %2578 = vmatpush.msra.mxu0 0.0
        %2579 = vmatpush.msra.mxu0 0.0
        %2580 = vmatpush.msra.mxu0 0.0
        %2581 = vmatpush.msra.mxu0 0.0
        %2582 = vmatpush.msra.mxu0 0.0
        %2583 = vmatpush.msra.mxu0 0.0
        %2584 = vmatpush.msra.mxu0 0.0
        %2585 = vmatpush.msra.mxu0 %v2565
        %2586 = vmatmul.f32.gmra.mxu0 %v2568
        %v2587 = vpop.f32.mrf.mxu0
        %v2588 = vadd.f32 0.0, %v2587
        %2589 = vdwg.mxu0
        %v2591 = vsel %vm890, %v2563, 0
        %2593 = vmatpush.msra.mxu0 0.0
        %2594 = vmatpush.msra.mxu0 0.0
        %2595 = vmatpush.msra.mxu0 0.0
        %2596 = vmatpush.msra.mxu0 0.0
        %2597 = vmatpush.msra.mxu0 0.0
        %2598 = vmatpush.msra.mxu0 0.0
        %2599 = vmatpush.msra.mxu0 0.0
        %2600 = vmatpush.msra.mxu0 0.0
        %2601 = vmatpush.msra.mxu0 0.0
        %2602 = vmatpush.msra.mxu0 0.0
        %2603 = vmatpush.msra.mxu0 0.0
        %2604 = vmatpush.msra.mxu0 0.0
        %2605 = vmatpush.msra.mxu0 0.0
        %2606 = vmatpush.msra.mxu0 0.0
        %2607 = vmatpush.msra.mxu0 0.0
        %2608 = vmatpush.msra.mxu0 %v2566
        %2609 = vmatmul.f32.gmra.mxu0 %v2591
        %v2610 = vpop.f32.mrf.mxu0
        %v2611 = vadd.f32 0.0, %v2610
        %2612 = vdwg.mxu0
        %v2613 = vsub.f32 %v1798, %v2588
        %v2614 = vsub.f32 %v1798, %v2611
        %2615 = vmatpush.msra.mxu0 0.0
        %2616 = vmatpush.msra.mxu0 0.0
        %2617 = vmatpush.msra.mxu0 0.0
        %2618 = vmatpush.msra.mxu0 0.0
        %2619 = vmatpush.msra.mxu0 0.0
        %2620 = vmatpush.msra.mxu0 0.0
        %2621 = vmatpush.msra.mxu0 0.0
        %2622 = vmatpush.msra.mxu0 0.0
        %2623 = vmatpush.msra.mxu0 0.0
        %2624 = vmatpush.msra.mxu0 0.0
        %2625 = vmatpush.msra.mxu0 0.0
        %2626 = vmatpush.msra.mxu0 0.0
        %2627 = vmatpush.msra.mxu0 0.0
        %2628 = vmatpush.msra.mxu0 0.0
        %2629 = vmatpush.msra.mxu0 0.0
        %2630 = vmatpush.msra.mxu0 %v2613
        %2631 = vmatmul.f32.gmra.mxu0 %v2568
        %v2632 = vpop.f32.mrf.mxu0
        %v2633 = vadd.f32 0.0, %v2632
        %2634 = vdwg.mxu0
        %2635 = vmatpush.msra.mxu0 0.0
        %2636 = vmatpush.msra.mxu0 0.0
        %2637 = vmatpush.msra.mxu0 0.0
        %2638 = vmatpush.msra.mxu0 0.0
        %2639 = vmatpush.msra.mxu0 0.0
        %2640 = vmatpush.msra.mxu0 0.0
        %2641 = vmatpush.msra.mxu0 0.0
        %2642 = vmatpush.msra.mxu0 0.0
        %2643 = vmatpush.msra.mxu0 0.0
        %2644 = vmatpush.msra.mxu0 0.0
        %2645 = vmatpush.msra.mxu0 0.0
        %2646 = vmatpush.msra.mxu0 0.0
        %2647 = vmatpush.msra.mxu0 0.0
        %2648 = vmatpush.msra.mxu0 0.0
        %2649 = vmatpush.msra.mxu0 0.0
        %2650 = vmatpush.msra.mxu0 %v2614
        %2651 = vmatmul.f32.gmra.mxu0 %v2591
        %v2652 = vpop.f32.mrf.mxu0
        %v2653 = vadd.f32 0.0, %v2652
        %2654 = vdwg.mxu0
        %v2655 = vsub.f32 %v1797, %v2633
        %v2656 = vsub.f32 %v1797, %v2653
        %v2658 = vsel %vm890, %v2523, 0
        %2660 = vmatpush.msra.mxu0 0.0
        %2661 = vmatpush.msra.mxu0 0.0
        %2662 = vmatpush.msra.mxu0 0.0
        %2663 = vmatpush.msra.mxu0 0.0
        %2664 = vmatpush.msra.mxu0 0.0
        %2665 = vmatpush.msra.mxu0 0.0
        %2666 = vmatpush.msra.mxu0 0.0
        %2667 = vmatpush.msra.mxu0 0.0
        %2668 = vmatpush.msra.mxu0 0.0
        %2669 = vmatpush.msra.mxu0 0.0
        %2670 = vmatpush.msra.mxu0 0.0
        %2671 = vmatpush.msra.mxu0 0.0
        %2672 = vmatpush.msra.mxu0 0.0
        %2673 = vmatpush.msra.mxu0 0.0
        %2674 = vmatpush.msra.mxu0 0.0
        %2675 = vmatpush.msra.mxu0 %v2655
        %2676 = vmatmul.f32.gmra.mxu0 %v2658
        %v2677 = vpop.f32.mrf.mxu0
        %v2678 = vadd.f32 0.0, %v2677
        %2679 = vdwg.mxu0
        %v2681 = vsel %vm890, %v2524, 0
        %2683 = vmatpush.msra.mxu0 0.0
        %2684 = vmatpush.msra.mxu0 0.0
        %2685 = vmatpush.msra.mxu0 0.0
        %2686 = vmatpush.msra.mxu0 0.0
        %2687 = vmatpush.msra.mxu0 0.0
        %2688 = vmatpush.msra.mxu0 0.0
        %2689 = vmatpush.msra.mxu0 0.0
        %2690 = vmatpush.msra.mxu0 0.0
        %2691 = vmatpush.msra.mxu0 0.0
        %2692 = vmatpush.msra.mxu0 0.0
        %2693 = vmatpush.msra.mxu0 0.0
        %2694 = vmatpush.msra.mxu0 0.0
        %2695 = vmatpush.msra.mxu0 0.0
        %2696 = vmatpush.msra.mxu0 0.0
        %2697 = vmatpush.msra.mxu0 0.0
        %2698 = vmatpush.msra.mxu0 %v2656
        %2699 = vmatmul.f32.gmra.mxu0 %v2681
        %v2700 = vpop.f32.mrf.mxu0
        %v2701 = vadd.f32 0.0, %v2700
        %2702 = vdwg.mxu0
        %v2703 = vmul.f32 %v2678, 0.25
        %v2704 = vmul.f32 %v2701, 0.25
        %2705 = vmatpush.msra.mxu0 0.0
        %2706 = vmatpush.msra.mxu0 0.0
        %2707 = vmatpush.msra.mxu0 0.0
        %2708 = vmatpush.msra.mxu0 0.0
        %2709 = vmatpush.msra.mxu0 0.0
        %2710 = vmatpush.msra.mxu0 0.0
        %2711 = vmatpush.msra.mxu0 0.0
        %2712 = vmatpush.msra.mxu0 0.0
        %2713 = vmatpush.msra.mxu0 0.0
        %2714 = vmatpush.msra.mxu0 0.0
        %2715 = vmatpush.msra.mxu0 0.0
        %2716 = vmatpush.msra.mxu0 0.0
        %2717 = vmatpush.msra.mxu0 0.0
        %2718 = vmatpush.msra.mxu0 0.0
        %2719 = vmatpush.msra.mxu0 0.0
        %2720 = vmatpush.msra.mxu0 %v2703
        %2721 = vmatmul.f32.gmra.mxu0 %v1800
        %v2722 = vpop.f32.mrf.mxu0
        %v2723 = vadd.f32 0.0, %v2722
        %2724 = vdwg.mxu0
        %2725 = vmatpush.msra.mxu0 0.0
        %2726 = vmatpush.msra.mxu0 0.0
        %2727 = vmatpush.msra.mxu0 0.0
        %2728 = vmatpush.msra.mxu0 0.0
        %2729 = vmatpush.msra.mxu0 0.0
        %2730 = vmatpush.msra.mxu0 0.0
        %2731 = vmatpush.msra.mxu0 0.0
        %2732 = vmatpush.msra.mxu0 0.0
        %2733 = vmatpush.msra.mxu0 0.0
        %2734 = vmatpush.msra.mxu0 0.0
        %2735 = vmatpush.msra.mxu0 0.0
        %2736 = vmatpush.msra.mxu0 0.0
        %2737 = vmatpush.msra.mxu0 0.0
        %2738 = vmatpush.msra.mxu0 0.0
        %2739 = vmatpush.msra.mxu0 0.0
        %2740 = vmatpush.msra.mxu0 %v2704
        %2741 = vmatmul.f32.gmra.mxu0 %v1823
        %v2742 = vpop.f32.mrf.mxu0
        %v2743 = vadd.f32 0.0, %v2742
        %2744 = vdwg.mxu0
        %v2745 = vsub.f32 %v1796, %v2723
        %v2746 = vsub.f32 %v1796, %v2743
        %v2748 = vsel %vm890, %v2723, 0
        %2750 = vmatpush.msra.mxu0 0.0
        %2751 = vmatpush.msra.mxu0 0.0
        %2752 = vmatpush.msra.mxu0 0.0
        %2753 = vmatpush.msra.mxu0 0.0
        %2754 = vmatpush.msra.mxu0 0.0
        %2755 = vmatpush.msra.mxu0 0.0
        %2756 = vmatpush.msra.mxu0 0.0
        %2757 = vmatpush.msra.mxu0 0.0
        %2758 = vmatpush.msra.mxu0 0.0
        %2759 = vmatpush.msra.mxu0 0.0
        %2760 = vmatpush.msra.mxu0 0.0
        %2761 = vmatpush.msra.mxu0 0.0
        %2762 = vmatpush.msra.mxu0 0.0
        %2763 = vmatpush.msra.mxu0 0.0
        %2764 = vmatpush.msra.mxu0 0.0
        %2765 = vmatpush.msra.mxu0 %v2745
        %2766 = vmatmul.f32.gmra.mxu0 %v2748
        %v2767 = vpop.f32.mrf.mxu0
        %v2768 = vadd.f32 0.0, %v2767
        %2769 = vdwg.mxu0
        %v2771 = vsel %vm890, %v2743, 0
        %2773 = vmatpush.msra.mxu0 0.0
        %2774 = vmatpush.msra.mxu0 0.0
        %2775 = vmatpush.msra.mxu0 0.0
        %2776 = vmatpush.msra.mxu0 0.0
        %2777 = vmatpush.msra.mxu0 0.0
        %2778 = vmatpush.msra.mxu0 0.0
        %2779 = vmatpush.msra.mxu0 0.0
        %2780 = vmatpush.msra.mxu0 0.0
        %2781 = vmatpush.msra.mxu0 0.0
        %2782 = vmatpush.msra.mxu0 0.0
        %2783 = vmatpush.msra.mxu0 0.0
        %2784 = vmatpush.msra.mxu0 0.0
        %2785 = vmatpush.msra.mxu0 0.0
        %2786 = vmatpush.msra.mxu0 0.0
        %2787 = vmatpush.msra.mxu0 0.0
        %2788 = vmatpush.msra.mxu0 %v2746
        %2789 = vmatmul.f32.gmra.mxu0 %v2771
        %v2790 = vpop.f32.mrf.mxu0
        %v2791 = vadd.f32 0.0, %v2790
        %2792 = vdwg.mxu0
        %v2793 = vsub.f32 %v1798, %v2768
        %v2794 = vsub.f32 %v1798, %v2791
        %2795 = vmatpush.msra.mxu0 0.0
        %2796 = vmatpush.msra.mxu0 0.0
        %2797 = vmatpush.msra.mxu0 0.0
        %2798 = vmatpush.msra.mxu0 0.0
        %2799 = vmatpush.msra.mxu0 0.0
        %2800 = vmatpush.msra.mxu0 0.0
        %2801 = vmatpush.msra.mxu0 0.0
        %2802 = vmatpush.msra.mxu0 0.0
        %2803 = vmatpush.msra.mxu0 0.0
        %2804 = vmatpush.msra.mxu0 0.0
        %2805 = vmatpush.msra.mxu0 0.0
        %2806 = vmatpush.msra.mxu0 0.0
        %2807 = vmatpush.msra.mxu0 0.0
        %2808 = vmatpush.msra.mxu0 0.0
        %2809 = vmatpush.msra.mxu0 0.0
        %2810 = vmatpush.msra.mxu0 %v2793
        %2811 = vmatmul.f32.gmra.mxu0 %v2748
        %v2812 = vpop.f32.mrf.mxu0
        %v2813 = vadd.f32 0.0, %v2812
        %2814 = vdwg.mxu0
        %2815 = vmatpush.msra.mxu0 0.0
        %2816 = vmatpush.msra.mxu0 0.0
        %2817 = vmatpush.msra.mxu0 0.0
        %2818 = vmatpush.msra.mxu0 0.0
        %2819 = vmatpush.msra.mxu0 0.0
        %2820 = vmatpush.msra.mxu0 0.0
        %2821 = vmatpush.msra.mxu0 0.0
        %2822 = vmatpush.msra.mxu0 0.0
        %2823 = vmatpush.msra.mxu0 0.0
        %2824 = vmatpush.msra.mxu0 0.0
        %2825 = vmatpush.msra.mxu0 0.0
        %2826 = vmatpush.msra.mxu0 0.0
        %2827 = vmatpush.msra.mxu0 0.0
        %2828 = vmatpush.msra.mxu0 0.0
        %2829 = vmatpush.msra.mxu0 0.0
        %2830 = vmatpush.msra.mxu0 %v2794
        %2831 = vmatmul.f32.gmra.mxu0 %v2771
        %v2832 = vpop.f32.mrf.mxu0
        %v2833 = vadd.f32 0.0, %v2832
        %2834 = vdwg.mxu0
        %v2835 = vsub.f32 %v1797, %v2813
        %v2836 = vsub.f32 %v1797, %v2833
        %v2838 = vsel %vm890, %v2703, 0
        %2840 = vmatpush.msra.mxu0 0.0
        %2841 = vmatpush.msra.mxu0 0.0
        %2842 = vmatpush.msra.mxu0 0.0
        %2843 = vmatpush.msra.mxu0 0.0
        %2844 = vmatpush.msra.mxu0 0.0
        %2845 = vmatpush.msra.mxu0 0.0
        %2846 = vmatpush.msra.mxu0 0.0
        %2847 = vmatpush.msra.mxu0 0.0
        %2848 = vmatpush.msra.mxu0 0.0
        %2849 = vmatpush.msra.mxu0 0.0
        %2850 = vmatpush.msra.mxu0 0.0
        %2851 = vmatpush.msra.mxu0 0.0
        %2852 = vmatpush.msra.mxu0 0.0
        %2853 = vmatpush.msra.mxu0 0.0
        %2854 = vmatpush.msra.mxu0 0.0
        %2855 = vmatpush.msra.mxu0 %v2835
        %2856 = vmatmul.f32.gmra.mxu0 %v2838
        %v2857 = vpop.f32.mrf.mxu0
        %v2858 = vadd.f32 0.0, %v2857
        %2859 = vdwg.mxu0
        %v2861 = vsel %vm890, %v2704, 0
        %2863 = vmatpush.msra.mxu0 0.0
        %2864 = vmatpush.msra.mxu0 0.0
        %2865 = vmatpush.msra.mxu0 0.0
        %2866 = vmatpush.msra.mxu0 0.0
        %2867 = vmatpush.msra.mxu0 0.0
        %2868 = vmatpush.msra.mxu0 0.0
        %2869 = vmatpush.msra.mxu0 0.0
        %2870 = vmatpush.msra.mxu0 0.0
        %2871 = vmatpush.msra.mxu0 0.0
        %2872 = vmatpush.msra.mxu0 0.0
        %2873 = vmatpush.msra.mxu0 0.0
        %2874 = vmatpush.msra.mxu0 0.0
        %2875 = vmatpush.msra.mxu0 0.0
        %2876 = vmatpush.msra.mxu0 0.0
        %2877 = vmatpush.msra.mxu0 0.0
        %2878 = vmatpush.msra.mxu0 %v2836
        %2879 = vmatmul.f32.gmra.mxu0 %v2861
        %v2880 = vpop.f32.mrf.mxu0
        %v2881 = vadd.f32 0.0, %v2880
        %2882 = vdwg.mxu0
        %v2883 = vmul.f32 %v2858, 0.25
        %v2884 = vmul.f32 %v2881, 0.25
        %2885 = vmatpush.msra.mxu0 0.0
        %2886 = vmatpush.msra.mxu0 0.0
        %2887 = vmatpush.msra.mxu0 0.0
        %2888 = vmatpush.msra.mxu0 0.0
        %2889 = vmatpush.msra.mxu0 0.0
        %2890 = vmatpush.msra.mxu0 0.0
        %2891 = vmatpush.msra.mxu0 0.0
        %2892 = vmatpush.msra.mxu0 0.0
        %2893 = vmatpush.msra.mxu0 0.0
        %2894 = vmatpush.msra.mxu0 0.0
        %2895 = vmatpush.msra.mxu0 0.0
        %2896 = vmatpush.msra.mxu0 0.0
        %2897 = vmatpush.msra.mxu0 0.0
        %2898 = vmatpush.msra.mxu0 0.0
        %2899 = vmatpush.msra.mxu0 0.0
        %2900 = vmatpush.msra.mxu0 %v2883
        %2901 = vmatmul.f32.gmra.mxu0 %v1800
        %v2902 = vpop.f32.mrf.mxu0
        %v2903 = vadd.f32 0.0, %v2902
        %2904 = vdwg.mxu0
        %2905 = vmatpush.msra.mxu0 0.0
        %2906 = vmatpush.msra.mxu0 0.0
        %2907 = vmatpush.msra.mxu0 0.0
        %2908 = vmatpush.msra.mxu0 0.0
        %2909 = vmatpush.msra.mxu0 0.0
        %2910 = vmatpush.msra.mxu0 0.0
        %2911 = vmatpush.msra.mxu0 0.0
        %2912 = vmatpush.msra.mxu0 0.0
        %2913 = vmatpush.msra.mxu0 0.0
        %2914 = vmatpush.msra.mxu0 0.0
        %2915 = vmatpush.msra.mxu0 0.0
        %2916 = vmatpush.msra.mxu0 0.0
        %2917 = vmatpush.msra.mxu0 0.0
        %2918 = vmatpush.msra.mxu0 0.0
        %2919 = vmatpush.msra.mxu0 0.0
        %2920 = vmatpush.msra.mxu0 %v2884
        %2921 = vmatmul.f32.gmra.mxu0 %v1823
        %v2922 = vpop.f32.mrf.mxu0
        %v2923 = vadd.f32 0.0, %v2922
        %2924 = vdwg.mxu0
        %v2925 = vsub.f32 %v1796, %v2903
        %v2926 = vsub.f32 %v1796, %v2923
        %v2928 = vsel %vm890, %v2903, 0
        %2930 = vmatpush.msra.mxu0 0.0
        %2931 = vmatpush.msra.mxu0 0.0
        %2932 = vmatpush.msra.mxu0 0.0
        %2933 = vmatpush.msra.mxu0 0.0
        %2934 = vmatpush.msra.mxu0 0.0
        %2935 = vmatpush.msra.mxu0 0.0
        %2936 = vmatpush.msra.mxu0 0.0
        %2937 = vmatpush.msra.mxu0 0.0
        %2938 = vmatpush.msra.mxu0 0.0
        %2939 = vmatpush.msra.mxu0 0.0
        %2940 = vmatpush.msra.mxu0 0.0
        %2941 = vmatpush.msra.mxu0 0.0
        %2942 = vmatpush.msra.mxu0 0.0
        %2943 = vmatpush.msra.mxu0 0.0
        %2944 = vmatpush.msra.mxu0 0.0
        %2945 = vmatpush.msra.mxu0 %v2925
        %2946 = vmatmul.f32.gmra.mxu0 %v2928
        %v2947 = vpop.f32.mrf.mxu0
        %v2948 = vadd.f32 0.0, %v2947
        %2949 = vdwg.mxu0
        %v2951 = vsel %vm890, %v2923, 0
        %2953 = vmatpush.msra.mxu0 0.0
        %2954 = vmatpush.msra.mxu0 0.0
        %2955 = vmatpush.msra.mxu0 0.0
        %2956 = vmatpush.msra.mxu0 0.0
        %2957 = vmatpush.msra.mxu0 0.0
        %2958 = vmatpush.msra.mxu0 0.0
        %2959 = vmatpush.msra.mxu0 0.0
        %2960 = vmatpush.msra.mxu0 0.0
        %2961 = vmatpush.msra.mxu0 0.0
        %2962 = vmatpush.msra.mxu0 0.0
        %2963 = vmatpush.msra.mxu0 0.0
        %2964 = vmatpush.msra.mxu0 0.0
        %2965 = vmatpush.msra.mxu0 0.0
        %2966 = vmatpush.msra.mxu0 0.0
        %2967 = vmatpush.msra.mxu0 0.0
        %2968 = vmatpush.msra.mxu0 %v2926
        %2969 = vmatmul.f32.gmra.mxu0 %v2951
        %v2970 = vpop.f32.mrf.mxu0
        %v2971 = vadd.f32 0.0, %v2970
        %2972 = vdwg.mxu0
        %v2973 = vsub.f32 %v1798, %v2948
        %v2974 = vsub.f32 %v1798, %v2971
        %2975 = vmatpush.msra.mxu0 0.0
        %2976 = vmatpush.msra.mxu0 0.0
        %2977 = vmatpush.msra.mxu0 0.0
        %2978 = vmatpush.msra.mxu0 0.0
        %2979 = vmatpush.msra.mxu0 0.0
        %2980 = vmatpush.msra.mxu0 0.0
        %2981 = vmatpush.msra.mxu0 0.0
        %2982 = vmatpush.msra.mxu0 0.0
        %2983 = vmatpush.msra.mxu0 0.0
        %2984 = vmatpush.msra.mxu0 0.0
        %2985 = vmatpush.msra.mxu0 0.0
        %2986 = vmatpush.msra.mxu0 0.0
        %2987 = vmatpush.msra.mxu0 0.0
        %2988 = vmatpush.msra.mxu0 0.0
        %2989 = vmatpush.msra.mxu0 0.0
        %2990 = vmatpush.msra.mxu0 %v2973
        %2991 = vmatmul.f32.gmra.mxu0 %v2928
        %v2992 = vpop.f32.mrf.mxu0
        %v2993 = vadd.f32 0.0, %v2992
        %2994 = vdwg.mxu0
        %2995 = vmatpush.msra.mxu0 0.0
        %2996 = vmatpush.msra.mxu0 0.0
        %2997 = vmatpush.msra.mxu0 0.0
        %2998 = vmatpush.msra.mxu0 0.0
        %2999 = vmatpush.msra.mxu0 0.0
        %3000 = vmatpush.msra.mxu0 0.0
        %3001 = vmatpush.msra.mxu0 0.0
        %3002 = vmatpush.msra.mxu0 0.0
        %3003 = vmatpush.msra.mxu0 0.0
        %3004 = vmatpush.msra.mxu0 0.0
        %3005 = vmatpush.msra.mxu0 0.0
        %3006 = vmatpush.msra.mxu0 0.0
        %3007 = vmatpush.msra.mxu0 0.0
        %3008 = vmatpush.msra.mxu0 0.0
        %3009 = vmatpush.msra.mxu0 0.0
        %3010 = vmatpush.msra.mxu0 %v2974
        %3011 = vmatmul.f32.gmra.mxu0 %v2951
        %v3012 = vpop.f32.mrf.mxu0
        %v3013 = vadd.f32 0.0, %v3012
        %3014 = vdwg.mxu0
        %v3015 = vsub.f32 %v1797, %v2993
        %v3016 = vsub.f32 %v1797, %v3013
        %v3018 = vsel %vm890, %v2883, 0
        %3020 = vmatpush.msra.mxu0 0.0
        %3021 = vmatpush.msra.mxu0 0.0
        %3022 = vmatpush.msra.mxu0 0.0
        %3023 = vmatpush.msra.mxu0 0.0
        %3024 = vmatpush.msra.mxu0 0.0
        %3025 = vmatpush.msra.mxu0 0.0
        %3026 = vmatpush.msra.mxu0 0.0
        %3027 = vmatpush.msra.mxu0 0.0
        %3028 = vmatpush.msra.mxu0 0.0
        %3029 = vmatpush.msra.mxu0 0.0
        %3030 = vmatpush.msra.mxu0 0.0
        %3031 = vmatpush.msra.mxu0 0.0
        %3032 = vmatpush.msra.mxu0 0.0
        %3033 = vmatpush.msra.mxu0 0.0
        %3034 = vmatpush.msra.mxu0 0.0
        %3035 = vmatpush.msra.mxu0 %v3015
        %3036 = vmatmul.f32.gmra.mxu0 %v3018
        %v3037 = vpop.f32.mrf.mxu0
        %v3038 = vadd.f32 0.0, %v3037
        %3039 = vdwg.mxu0
        %v3041 = vsel %vm890, %v2884, 0
        %3043 = vmatpush.msra.mxu0 0.0
        %3044 = vmatpush.msra.mxu0 0.0
        %3045 = vmatpush.msra.mxu0 0.0
        %3046 = vmatpush.msra.mxu0 0.0
        %3047 = vmatpush.msra.mxu0 0.0
        %3048 = vmatpush.msra.mxu0 0.0
        %3049 = vmatpush.msra.mxu0 0.0
        %3050 = vmatpush.msra.mxu0 0.0
        %3051 = vmatpush.msra.mxu0 0.0
        %3052 = vmatpush.msra.mxu0 0.0
        %3053 = vmatpush.msra.mxu0 0.0
        %3054 = vmatpush.msra.mxu0 0.0
        %3055 = vmatpush.msra.mxu0 0.0
        %3056 = vmatpush.msra.mxu0 0.0
        %3057 = vmatpush.msra.mxu0 0.0
        %3058 = vmatpush.msra.mxu0 %v3016
        %3059 = vmatmul.f32.gmra.mxu0 %v3041
        %v3060 = vpop.f32.mrf.mxu0
        %v3061 = vadd.f32 0.0, %v3060
        %3062 = vdwg.mxu0
        %v3063 = vmul.f32 %v3038, 0.25
        %v3064 = vmul.f32 %v3061, 0.25
        %3065 = vmatpush.msra.mxu0 0.0
        %3066 = vmatpush.msra.mxu0 0.0
        %3067 = vmatpush.msra.mxu0 0.0
        %3068 = vmatpush.msra.mxu0 0.0
        %3069 = vmatpush.msra.mxu0 0.0
        %3070 = vmatpush.msra.mxu0 0.0
        %3071 = vmatpush.msra.mxu0 0.0
        %3072 = vmatpush.msra.mxu0 0.0
        %3073 = vmatpush.msra.mxu0 0.0
        %3074 = vmatpush.msra.mxu0 0.0
        %3075 = vmatpush.msra.mxu0 0.0
        %3076 = vmatpush.msra.mxu0 0.0
        %3077 = vmatpush.msra.mxu0 0.0
        %3078 = vmatpush.msra.mxu0 0.0
        %3079 = vmatpush.msra.mxu0 0.0
        %3080 = vmatpush.msra.mxu0 %v3063
        %3081 = vmatmul.f32.gmra.mxu0 %v1800
        %v3082 = vpop.f32.mrf.mxu0
        %v3083 = vadd.f32 0.0, %v3082
        %3084 = vdwg.mxu0
        %3085 = vmatpush.msra.mxu0 0.0
        %3086 = vmatpush.msra.mxu0 0.0
        %3087 = vmatpush.msra.mxu0 0.0
        %3088 = vmatpush.msra.mxu0 0.0
        %3089 = vmatpush.msra.mxu0 0.0
        %3090 = vmatpush.msra.mxu0 0.0
        %3091 = vmatpush.msra.mxu0 0.0
        %3092 = vmatpush.msra.mxu0 0.0
        %3093 = vmatpush.msra.mxu0 0.0
        %3094 = vmatpush.msra.mxu0 0.0
        %3095 = vmatpush.msra.mxu0 0.0
        %3096 = vmatpush.msra.mxu0 0.0
        %3097 = vmatpush.msra.mxu0 0.0
        %3098 = vmatpush.msra.mxu0 0.0
        %3099 = vmatpush.msra.mxu0 0.0
        %3100 = vmatpush.msra.mxu0 %v3064
        %3101 = vmatmul.f32.gmra.mxu0 %v1823
        %v3102 = vpop.f32.mrf.mxu0
        %v3103 = vadd.f32 0.0, %v3102
        %3104 = vdwg.mxu0
        %v3105 = vsub.f32 %v1796, %v3083
        %v3106 = vsub.f32 %v1796, %v3103
        %v3108 = vsel %vm890, %v3083, 0
        %3110 = vmatpush.msra.mxu0 0.0
        %3111 = vmatpush.msra.mxu0 0.0
        %3112 = vmatpush.msra.mxu0 0.0
        %3113 = vmatpush.msra.mxu0 0.0
        %3114 = vmatpush.msra.mxu0 0.0
        %3115 = vmatpush.msra.mxu0 0.0
        %3116 = vmatpush.msra.mxu0 0.0
        %3117 = vmatpush.msra.mxu0 0.0
        %3118 = vmatpush.msra.mxu0 0.0
        %3119 = vmatpush.msra.mxu0 0.0
        %3120 = vmatpush.msra.mxu0 0.0
        %3121 = vmatpush.msra.mxu0 0.0
        %3122 = vmatpush.msra.mxu0 0.0
        %3123 = vmatpush.msra.mxu0 0.0
        %3124 = vmatpush.msra.mxu0 0.0
        %3125 = vmatpush.msra.mxu0 %v3105
        %3126 = vmatmul.f32.gmra.mxu0 %v3108
        %v3127 = vpop.f32.mrf.mxu0
        %v3128 = vadd.f32 0.0, %v3127
        %3129 = vdwg.mxu0
        %v3131 = vsel %vm890, %v3103, 0
        %3133 = vmatpush.msra.mxu0 0.0
        %3134 = vmatpush.msra.mxu0 0.0
        %3135 = vmatpush.msra.mxu0 0.0
        %3136 = vmatpush.msra.mxu0 0.0
        %3137 = vmatpush.msra.mxu0 0.0
        %3138 = vmatpush.msra.mxu0 0.0
        %3139 = vmatpush.msra.mxu0 0.0
        %3140 = vmatpush.msra.mxu0 0.0
        %3141 = vmatpush.msra.mxu0 0.0
        %3142 = vmatpush.msra.mxu0 0.0
        %3143 = vmatpush.msra.mxu0 0.0
        %3144 = vmatpush.msra.mxu0 0.0
        %3145 = vmatpush.msra.mxu0 0.0
        %3146 = vmatpush.msra.mxu0 0.0
        %3147 = vmatpush.msra.mxu0 0.0
        %3148 = vmatpush.msra.mxu0 %v3106
        %3149 = vmatmul.f32.gmra.mxu0 %v3131
        %v3150 = vpop.f32.mrf.mxu0
        %v3151 = vadd.f32 0.0, %v3150
        %3152 = vdwg.mxu0
        %v3153 = vsub.f32 %v1798, %v3128
        %v3154 = vsub.f32 %v1798, %v3151
        %3155 = vmatpush.msra.mxu0 0.0
        %3156 = vmatpush.msra.mxu0 0.0
        %3157 = vmatpush.msra.mxu0 0.0
        %3158 = vmatpush.msra.mxu0 0.0
        %3159 = vmatpush.msra.mxu0 0.0
        %3160 = vmatpush.msra.mxu0 0.0
        %3161 = vmatpush.msra.mxu0 0.0
        %3162 = vmatpush.msra.mxu0 0.0
        %3163 = vmatpush.msra.mxu0 0.0
        %3164 = vmatpush.msra.mxu0 0.0
        %3165 = vmatpush.msra.mxu0 0.0
        %3166 = vmatpush.msra.mxu0 0.0
        %3167 = vmatpush.msra.mxu0 0.0
        %3168 = vmatpush.msra.mxu0 0.0
        %3169 = vmatpush.msra.mxu0 0.0
        %3170 = vmatpush.msra.mxu0 %v3153
        %3171 = vmatmul.f32.gmra.mxu0 %v3108
        %v3172 = vpop.f32.mrf.mxu0
        %v3173 = vadd.f32 0.0, %v3172
        %3174 = vdwg.mxu0
        %3175 = vmatpush.msra.mxu0 0.0
        %3176 = vmatpush.msra.mxu0 0.0
        %3177 = vmatpush.msra.mxu0 0.0
        %3178 = vmatpush.msra.mxu0 0.0
        %3179 = vmatpush.msra.mxu0 0.0
        %3180 = vmatpush.msra.mxu0 0.0
        %3181 = vmatpush.msra.mxu0 0.0
        %3182 = vmatpush.msra.mxu0 0.0
        %3183 = vmatpush.msra.mxu0 0.0
        %3184 = vmatpush.msra.mxu0 0.0
        %3185 = vmatpush.msra.mxu0 0.0
        %3186 = vmatpush.msra.mxu0 0.0
        %3187 = vmatpush.msra.mxu0 0.0
        %3188 = vmatpush.msra.mxu0 0.0
        %3189 = vmatpush.msra.mxu0 0.0
        %3190 = vmatpush.msra.mxu0 %v3154
        %3191 = vmatmul.f32.gmra.mxu0 %v3131
        %v3192 = vpop.f32.mrf.mxu0
        %v3193 = vadd.f32 0.0, %v3192
        %3194 = vdwg.mxu0
        %v3195 = vsub.f32 %v1797, %v3173
        %v3196 = vsub.f32 %v1797, %v3193
        %v3198 = vsel %vm890, %v3063, 0
        %3200 = vmatpush.msra.mxu0 0.0
        %3201 = vmatpush.msra.mxu0 0.0
        %3202 = vmatpush.msra.mxu0 0.0
        %3203 = vmatpush.msra.mxu0 0.0
        %3204 = vmatpush.msra.mxu0 0.0
        %3205 = vmatpush.msra.mxu0 0.0
        %3206 = vmatpush.msra.mxu0 0.0
        %3207 = vmatpush.msra.mxu0 0.0
        %3208 = vmatpush.msra.mxu0 0.0
        %3209 = vmatpush.msra.mxu0 0.0
        %3210 = vmatpush.msra.mxu0 0.0
        %3211 = vmatpush.msra.mxu0 0.0
        %3212 = vmatpush.msra.mxu0 0.0
        %3213 = vmatpush.msra.mxu0 0.0
        %3214 = vmatpush.msra.mxu0 0.0
        %3215 = vmatpush.msra.mxu0 %v3195
        %3216 = vmatmul.f32.gmra.mxu0 %v3198
        %v3217 = vpop.f32.mrf.mxu0
        %v3218 = vadd.f32 0.0, %v3217
        %3219 = vdwg.mxu0
        %v3221 = vsel %vm890, %v3064, 0
        %3223 = vmatpush.msra.mxu0 0.0
        %3224 = vmatpush.msra.mxu0 0.0
        %3225 = vmatpush.msra.mxu0 0.0
        %3226 = vmatpush.msra.mxu0 0.0
        %3227 = vmatpush.msra.mxu0 0.0
        %3228 = vmatpush.msra.mxu0 0.0
        %3229 = vmatpush.msra.mxu0 0.0
        %3230 = vmatpush.msra.mxu0 0.0
        %3231 = vmatpush.msra.mxu0 0.0
        %3232 = vmatpush.msra.mxu0 0.0
        %3233 = vmatpush.msra.mxu0 0.0
        %3234 = vmatpush.msra.mxu0 0.0
        %3235 = vmatpush.msra.mxu0 0.0
        %3236 = vmatpush.msra.mxu0 0.0
        %3237 = vmatpush.msra.mxu0 0.0
        %3238 = vmatpush.msra.mxu0 %v3196
        %3239 = vmatmul.f32.gmra.mxu0 %v3221
        %v3240 = vpop.f32.mrf.mxu0
        %v3241 = vadd.f32 0.0, %v3240
        %3242 = vdwg.mxu0
        %v3243 = vmul.f32 %v3218, 0.25
        %v3244 = vmul.f32 %v3241, 0.25
        %v3245 = vpack.c.bf16 %v992, %v977
        %v3246 = vpack.c.bf16 %v1022, %v1007
        %v3247 = vpack.c.bf16 %v1052, %v1037
        %v3248 = vpack.c.bf16 %v1082, %v1067
        %v3249 = vpack.c.bf16 %v3243, %v3243
        %v3251 = vsel %vm890, %v3245, 0
        %v3254 = vsel %vm890, %v3246, 0
        %v3257 = vsel %vm890, %v3247, 0
        %v3260 = vsel %vm890, %v3248, 0
        %vm3262 = vcmask 1043456
        %v3264 = vsel %vm3262, %v3249, 0
        %3266 = vmatpush.bf16.msra.mxu0 0
        %3267 = vmatpush.bf16.msra.mxu0 0
        %3268 = vmatpush.bf16.msra.mxu0 0
        %3269 = vmatpush.bf16.msra.mxu0 0
        %3270 = vmatpush.bf16.msra.mxu0 0
        %3271 = vmatpush.bf16.msra.mxu0 0
        %3272 = vmatpush.bf16.msra.mxu0 0
        %3273 = vmatpush.bf16.msra.mxu0 %v3264
        %3274 = vmatmul.bf16.gmra.mxu0 %v3251
        %v3275 = vpop.f32.mrf.mxu0
        %v3276 = vadd.f32 0.0, %v3275
        %v3277 = vpop.f32.mrf.mxu0
        %v3278 = vadd.f32 0.0, %v3277
        %3279 = vmatmul.bf16.gmra.mxu0 %v3254
        %v3280 = vpop.f32.mrf.mxu0
        %v3281 = vadd.f32 0.0, %v3280
        %v3282 = vpop.f32.mrf.mxu0
        %v3283 = vadd.f32 0.0, %v3282
        %3284 = vmatmul.bf16.gmra.mxu0 %v3257
        %v3285 = vpop.f32.mrf.mxu0
        %v3286 = vadd.f32 0.0, %v3285
        %v3287 = vpop.f32.mrf.mxu0
        %v3288 = vadd.f32 0.0, %v3287
        %3289 = vmatmul.bf16.gmra.mxu0 %v3260
        %v3290 = vpop.f32.mrf.mxu0
        %v3291 = vadd.f32 0.0, %v3290
        %v3292 = vpop.f32.mrf.mxu0
        %v3293 = vadd.f32 0.0, %v3292
        %3294 = vdwg.mxu0
        %v3295 = vpack.c.bf16 %v3278, %v3276
        %v3296 = vpack.c.bf16 %v3283, %v3281
        %v3297 = vpack.c.bf16 %v3288, %v3286
        %v3298 = vpack.c.bf16 %v3293, %v3291
        %v3299 = vpack.c.bf16 %v1248, %v1248
        %v3301 = vsel %vm890, %v3295, 0
        %v3304 = vsel %vm890, %v3296, 0
        %v3307 = vsel %vm890, %v3297, 0
        %v3310 = vsel %vm890, %v3298, 0
        %v3313 = vsel %vm3262, %v3299, 0
        %3315 = vmatpush.bf16.msra.mxu0 0
        %3316 = vmatpush.bf16.msra.mxu0 0
        %3317 = vmatpush.bf16.msra.mxu0 0
        %3318 = vmatpush.bf16.msra.mxu0 0
        %3319 = vmatpush.bf16.msra.mxu0 0
        %3320 = vmatpush.bf16.msra.mxu0 0
        %3321 = vmatpush.bf16.msra.mxu0 0
        %3322 = vmatpush.bf16.msra.mxu0 %v3313
        %3323 = vmatmul.bf16.gmra.mxu0 %v3301
        %v3324 = vpop.f32.mrf.mxu0
        %v3325 = vadd.f32 0.0, %v3324
        %v3326 = vpop.f32.mrf.mxu0
        %v3327 = vadd.f32 0.0, %v3326
        %3328 = vmatmul.bf16.gmra.mxu0 %v3304
        %v3329 = vpop.f32.mrf.mxu0
        %v3330 = vadd.f32 0.0, %v3329
        %v3331 = vpop.f32.mrf.mxu0
        %v3332 = vadd.f32 0.0, %v3331
        %3333 = vmatmul.bf16.gmra.mxu0 %v3307
        %v3334 = vpop.f32.mrf.mxu0
        %v3335 = vadd.f32 0.0, %v3334
        %v3336 = vpop.f32.mrf.mxu0
        %v3337 = vadd.f32 0.0, %v3336
        %3338 = vmatmul.bf16.gmra.mxu0 %v3310
        %v3339 = vpop.f32.mrf.mxu0
        %v3340 = vadd.f32 0.0, %v3339
        %v3341 = vpop.f32.mrf.mxu0
        %v3342 = vadd.f32 0.0, %v3341
        %3343 = vdwg.mxu0
        %v3344 = vpack.c.bf16 %v3325, %v3325
        %v3345 = vpack.c.bf16 %v3327, %v3327
        %v3346 = vpack.c.bf16 %v3330, %v3330
        %v3347 = vpack.c.bf16 %v3332, %v3332
        %v3348 = vpack.c.bf16 %v3335, %v3335
        %v3349 = vpack.c.bf16 %v3337, %v3337
        %v3350 = vpack.c.bf16 %v3340, %v3340
        %v3351 = vpack.c.bf16 %v3342, %v3342
        %v3352 = vpack.c.bf16 %v1465, %v1450
        %v3353 = vpack.c.bf16 %v1495, %v1480
        %v3354 = vpack.c.bf16 %v1525, %v1510
        %v3355 = vpack.c.bf16 %v1555, %v1540
        %v3356 = vpack.c.bf16 %v3244, %v3244
        %v3358 = vsel %vm890, %v3352, 0
        %v3361 = vsel %vm890, %v3353, 0
        %v3364 = vsel %vm890, %v3354, 0
        %v3367 = vsel %vm890, %v3355, 0
        %v3370 = vsel %vm3262, %v3356, 0
        %3372 = vmatpush.bf16.msra.mxu0 0
        %3373 = vmatpush.bf16.msra.mxu0 0
        %3374 = vmatpush.bf16.msra.mxu0 0
        %3375 = vmatpush.bf16.msra.mxu0 0
        %3376 = vmatpush.bf16.msra.mxu0 0
        %3377 = vmatpush.bf16.msra.mxu0 0
        %3378 = vmatpush.bf16.msra.mxu0 0
        %3379 = vmatpush.bf16.msra.mxu0 %v3370
        %3380 = vmatmul.bf16.gmra.mxu0 %v3358
        %v3381 = vpop.f32.mrf.mxu0
        %v3382 = vadd.f32 0.0, %v3381
        %v3383 = vpop.f32.mrf.mxu0
        %v3384 = vadd.f32 0.0, %v3383
        %3385 = vmatmul.bf16.gmra.mxu0 %v3361
        %v3386 = vpop.f32.mrf.mxu0
        %v3387 = vadd.f32 0.0, %v3386
        %v3388 = vpop.f32.mrf.mxu0
        %v3389 = vadd.f32 0.0, %v3388
        %3390 = vmatmul.bf16.gmra.mxu0 %v3364
        %v3391 = vpop.f32.mrf.mxu0
        %v3392 = vadd.f32 0.0, %v3391
        %v3393 = vpop.f32.mrf.mxu0
        %v3394 = vadd.f32 0.0, %v3393
        %3395 = vmatmul.bf16.gmra.mxu0 %v3367
        %v3396 = vpop.f32.mrf.mxu0
        %v3397 = vadd.f32 0.0, %v3396
        %v3398 = vpop.f32.mrf.mxu0
        %v3399 = vadd.f32 0.0, %v3398
        %3400 = vdwg.mxu0
        %v3401 = vpack.c.bf16 %v3384, %v3382
        %v3402 = vpack.c.bf16 %v3389, %v3387
        %v3403 = vpack.c.bf16 %v3394, %v3392
        %v3404 = vpack.c.bf16 %v3399, %v3397
        %v3405 = vpack.c.bf16 %v1730, %v1730
        %v3407 = vsel %vm890, %v3401, 0
        %v3410 = vsel %vm890, %v3402, 0
        %v3413 = vsel %vm890, %v3403, 0
        %v3416 = vsel %vm890, %v3404, 0
        %v3419 = vsel %vm3262, %v3405, 0
        %3421 = vmatpush.bf16.msra.mxu0 0
        %3422 = vmatpush.bf16.msra.mxu0 0
        %3423 = vmatpush.bf16.msra.mxu0 0
        %3424 = vmatpush.bf16.msra.mxu0 0
        %3425 = vmatpush.bf16.msra.mxu0 0
        %3426 = vmatpush.bf16.msra.mxu0 0
        %3427 = vmatpush.bf16.msra.mxu0 0
        %3428 = vmatpush.bf16.msra.mxu0 %v3419
        %3429 = vmatmul.bf16.gmra.mxu0 %v3407
        %v3430 = vpop.f32.mrf.mxu0
        %v3431 = vadd.f32 0.0, %v3430
        %v3432 = vpop.f32.mrf.mxu0
        %v3433 = vadd.f32 0.0, %v3432
        %3434 = vmatmul.bf16.gmra.mxu0 %v3410
        %v3435 = vpop.f32.mrf.mxu0
        %v3436 = vadd.f32 0.0, %v3435
        %v3437 = vpop.f32.mrf.mxu0
        %v3438 = vadd.f32 0.0, %v3437
        %3439 = vmatmul.bf16.gmra.mxu0 %v3413
        %v3440 = vpop.f32.mrf.mxu0
        %v3441 = vadd.f32 0.0, %v3440
        %v3442 = vpop.f32.mrf.mxu0
        %v3443 = vadd.f32 0.0, %v3442
        %3444 = vmatmul.bf16.gmra.mxu0 %v3416
        %v3445 = vpop.f32.mrf.mxu0
        %v3446 = vadd.f32 0.0, %v3445
        %v3447 = vpop.f32.mrf.mxu0
        %v3448 = vadd.f32 0.0, %v3447
        %3449 = vdwg.mxu0
        %v3450 = vpack.c.bf16 %v3431, %v3431
        %v3451 = vpack.c.bf16 %v3433, %v3433
        %v3452 = vpack.c.bf16 %v3436, %v3436
        %v3453 = vpack.c.bf16 %v3438, %v3438
        %v3454 = vpack.c.bf16 %v3441, %v3441
        %v3455 = vpack.c.bf16 %v3443, %v3443
        %v3456 = vpack.c.bf16 %v3446, %v3446
        %v3457 = vpack.c.bf16 %v3448, %v3448
        %v3466 = vunpack.c.l.b16 %v3344
        %v3467 = vunpack.c.l.b16 %v3345
        %v3468 = vunpack.c.l.b16 %v3346
        %v3469 = vunpack.c.l.b16 %v3347
        %v3470 = vunpack.c.l.b16 %v3348
        %v3471 = vunpack.c.l.b16 %v3349
        %v3472 = vunpack.c.l.b16 %v3350
        %v3473 = vunpack.c.l.b16 %v3351
        %v3474 = vpack.c.b16 %v3467, %v3466
        %v3475 = vpack.c.b16 %v3469, %v3468
        %v3476 = vpack.c.b16 %v3471, %v3470
        %v3477 = vpack.c.b16 %v3473, %v3472
        %v3486 = vunpack.c.l.b16 %v3450
        %v3487 = vunpack.c.l.b16 %v3451
        %v3488 = vunpack.c.l.b16 %v3452
        %v3489 = vunpack.c.l.b16 %v3453
        %v3490 = vunpack.c.l.b16 %v3454
        %v3491 = vunpack.c.l.b16 %v3455
        %v3492 = vunpack.c.l.b16 %v3456
        %v3493 = vunpack.c.l.b16 %v3457
        %v3494 = vpack.c.b16 %v3487, %v3486
        %v3495 = vpack.c.b16 %v3489, %v3488
        %v3496 = vpack.c.b16 %v3491, %v3490
        %v3497 = vpack.c.b16 %v3493, %v3492
        %3498 = vrot.lane.b32.xlu0 %v3494, 16
        %v3499 = vpop.permute.xlu0 %3498
        %3500 = vrot.lane.b32.xlu0 %v3495, 16
        %v3501 = vpop.permute.xlu0 %3500
        %3502 = vrot.lane.b32.xlu0 %v3496, 16
        %v3503 = vpop.permute.xlu0 %3502
        %3504 = vrot.lane.b32.xlu0 %v3497, 16
        %v3505 = vpop.permute.xlu0 %3504
        %v3508 = vsel %vm845, %v3474, %v3499
        %v3511 = vsel %vm845, %v3475, %v3501
        %v3514 = vsel %vm845, %v3476, %v3503
        %v3517 = vsel %vm845, %v3477, %v3505
        %v3518 = vld [vmem:[%s9] sm:$0xf]
        %v3519 = vld [vmem:[%s9 + $0x4] sm:$0xf]
        %v3520 = vld [vmem:[%s9 + $0x8] sm:$0xf]
        %v3521 = vld [vmem:[%s9 + $0xc] sm:$0xf]
        %v3522 = vld [vmem:[%s10] sm:$0x1]
        %v3524 = vperm.slane %v3522, 0
        %v3530 = vunpack.c.l.b16 %v3518
        %v3531 = vunpack.c.l.b16 %v3519
        %v3532 = vunpack.c.l.b16 %v3520
        %v3533 = vunpack.c.l.b16 %v3521
        %v3534 = vpack.c.b16 %v3531, %v3530
        %v3535 = vpack.c.b16 %v3533, %v3532
        %v3538 = vsel %vm529, %v3508, 0
        %v3540 = vsel %vm529, %v3511, 0
        %v3542 = vsel %vm529, %v3514, 0
        %v3544 = vsel %vm529, %v3517, 0
        %3546 = vmatpush.bf16.msra.mxu0 0
        %3547 = vmatpush.bf16.msra.mxu0 0
        %3548 = vmatpush.bf16.msra.mxu0 0
        %3549 = vmatpush.bf16.msra.mxu0 0
        %3550 = vmatpush.bf16.msra.mxu0 0
        %3551 = vmatpush.bf16.msra.mxu0 0
        %3552 = vmatpush.bf16.msra.mxu0 %v3535
        %3553 = vmatpush.bf16.msra.mxu0 %v3534
        %3554 = vmatmul.bf16.gmra.mxu0 %v3538
        %v3555 = vpop.f32.mrf.mxu0
        %v3556 = vadd.f32 %v3524, %v3555
        %v3557 = vpop.f32.mrf.mxu0
        %v3558 = vadd.f32 %v3524, %v3557
        %3559 = vmatmul.bf16.gmra.mxu0 %v3540
        %v3560 = vpop.f32.mrf.mxu0
        %v3561 = vadd.f32 %v3524, %v3560
        %v3562 = vpop.f32.mrf.mxu0
        %v3563 = vadd.f32 %v3524, %v3562
        %3564 = vmatmul.bf16.gmra.mxu0 %v3542
        %v3565 = vpop.f32.mrf.mxu0
        %v3566 = vadd.f32 %v3524, %v3565
        %v3567 = vpop.f32.mrf.mxu0
        %v3568 = vadd.f32 %v3524, %v3567
        %3569 = vmatmul.bf16.gmra.mxu0 %v3544
        %v3570 = vpop.f32.mrf.mxu0
        %v3571 = vadd.f32 %v3524, %v3570
        %v3572 = vpop.f32.mrf.mxu0
        %v3573 = vadd.f32 %v3524, %v3572
        %3574 = vdwg.mxu0
        %3575 = vst [vmem:[%s435] sm:$0xff] %v3556
        %3576 = vst [vmem:[%s435 + $0x8] sm:$0xff] %v3558
        %3577 = vst [vmem:[%s435 + $0x10] sm:$0xff] %v3561
        %3578 = vst [vmem:[%s435 + $0x18] sm:$0xff] %v3563
        %3579 = vst [vmem:[%s435 + $0x20] sm:$0xff] %v3566
        %3580 = vst [vmem:[%s435 + $0x28] sm:$0xff] %v3568
        %3581 = vst [vmem:[%s435 + $0x30] sm:$0xff] %v3571
        %3582 = vst [vmem:[%s435 + $0x38] sm:$0xff] %v3573
        %s3583 = sand.u32 %s289, 1
        %s3584 = scalar_lea.sflag [#allocation3], %s3583
        %s3585 = sand.u32 %s289, 1
        %s3586 = smul.addr %s3585, 64
        %s3587 = scalar_lea.vmem [#allocation2], %s3586
        // Predicated region
        $region65: #{tpu_custom_call.1} parent=63 // pred_check
          %p3588 = pneg %p299
        $region66: #{tpu_custom_call.1} parent=63 // pred_check_branch
          %3590 = sbr.rel (%p3588) target = $region68
        $region67: #{tpu_custom_call.1} parent=63 // pred_region
          %3592 = vsyncadd %s3584, 0
          %s3593 = smul.addr %s25, 8
          %s3594 = smul.addr %s3593, 8
          %s3595 = scalar_lea.hbm %s11, %s3594
          %s3596 = sshll.u32 %s3587, 4
          %s3597 = int_to_ptr.vmem [resolvable:$true] %s3596
          %s3598 = sshll.u32 %s3595, 4
          %s3599 = int_to_ptr.hbm [resolvable:$true] %s3598
          %3604 = dma.vmem_to_hbm [thread:$0]  %s3597, 1024, %s3599, %s3584, 128, 128, 8
        $region68: #{tpu_custom_call.1} parent=63 // pred_fallthru
          _
      $region64: #{tpu_custom_call.1} parent=5 // pred_fallthru
        _
      %p3605 = scmp.le.s32.totalorder 2, %s20
      // Predicated region
      $region69: #{tpu_custom_call.1} parent=5 // pred_check
        %p3606 = pneg %p3605
      $region70: #{tpu_custom_call.1} parent=5 // pred_check_branch
        %3608 = sbr.rel (%p3606) target = $region72
      $region71: #{tpu_custom_call.1} parent=5 // pred_region
        %s3609 = ssub.s32 %s20, 2
        // Predicated region
        $region73: #{tpu_custom_call.1} parent=71 // pred_check
          %p3610 = pneg %p305
        $region74: #{tpu_custom_call.1} parent=71 // pred_check_branch
          %3612 = sbr.rel (%p3610) target = $region76
        $region75: #{tpu_custom_call.1} parent=71 // pred_region
          %s3613 = sand.u32 %s290, 1
          %s3614 = scalar_lea.sflag [#allocation3], %s3613
          %s3615 = sand.u32 %s290, 1
          %s3616 = smul.addr %s3615, 64
          %s3617 = scalar_lea.vmem [#allocation2], %s3616
          %3619 = dma.done %s3614, 1024
        $region76: #{tpu_custom_call.1} parent=71 // pred_fallthru
          _
      $region72: #{tpu_custom_call.1} parent=5 // pred_fallthru
        _
    $region6: #{tpu_custom_call.1} parent=1 // loop_footer
      %s24 = sadd.s32 1, %s20
    $region7: #{tpu_custom_call.1} parent=1 // loop_footer_branch
      %19 = sbr.rel target = $region3
    $region8: #{tpu_custom_call.1} parent=1 // loop_exit
      _
    %3620 = vsyncpa [#allocation3], 1
    %s3621 = scalar_lea.sflag [#allocation3], 1
    %3622 = vsyncpa %s3621, 1

</llo_original>
